<compile_context>
chip_gen: v7x
topology: tpu7x:2x2x1
jax: 0.10.0
libtpu: 0.0.40
codegen_flags: <defaults>
</compile_context>

<pallas_src>
import functools

import jax
import jax.numpy as jnp
from jax.experimental import pallas as pl
from jax.experimental.pallas import tpu as pltpu


# ----------------------------------------------------------------------------
# Pallas kernel: one (batch, row-tile) step of the fused ResBlock
# ----------------------------------------------------------------------------
def resblock_kernel(
    x_ref,      # (1, TH, W, Cin)      raw input rows of this tile
    halo_ref,   # (1, 2, W, Cin)       raw row above / below this tile
    w1_ref,     # (9, Cin, Cmid)       3x3 conv weights, tap-major (ky*3+kx)
    b1_ref,     # (1, Cmid)
    s1_ref,     # (1, Cin)             BN1 scale (folded)
    t1_ref,     # (1, Cin)             BN1 shift (folded)
    s2_ref,     # (1, Cmid)            BN2 scale
    t2_ref,     # (1, Cmid)            BN2 shift
    w2_ref,     # (Cmid, Cin)          1x1 conv weights
    b2_ref,     # (1, Cin)
    o_ref,      # (1, TH, W, Cin)
    win_ref,    # VMEM scratch (TH+2, W+2, Cin): activated, zero-padded window
    *, th_rows, w, cin, cmid, num_row_tiles, cdt,
):
    t_idx = pl.program_id(1)

    s1 = s1_ref[...]                      # (1, Cin)
    t1 = t1_ref[...]

    # ---- ReLU + BN1 (inference affine), applied only to real pixels --------
    x = x_ref[...]                        # (1, TH, W, Cin)
    a_main = (jnp.maximum(x, 0.0) * s1.reshape(1, 1, 1, cin)
              + t1.reshape(1, 1, 1, cin))

    halo = halo_ref[...].reshape(2, w, cin)           # raw neighbour rows
    a_halo = (jnp.maximum(halo, 0.0) * s1.reshape(1, 1, cin)
              + t1.reshape(1, 1, cin))
    # Rows outside the image are the conv's zero padding, not BN(ReLU(0)).
    vt = jnp.where(t_idx > 0, 1.0, 0.0)
    vb = jnp.where(t_idx < num_row_tiles - 1, 1.0, 0.0)

    # ---- assemble activated, zero-padded window in VMEM --------------------
    win_ref[1:th_rows + 1, 1:w + 1, :] = a_main.reshape(th_rows, w, cin)
    win_ref[0:1, 1:w + 1, :] = a_halo[0:1] * vt
    win_ref[th_rows + 1:th_rows + 2, 1:w + 1, :] = a_halo[1:2] * vb
    # O(perimeter) zeroing: only the two 1-pixel padding columns.
    zcol = jnp.zeros((th_rows + 2, 1, cin), jnp.float32)
    win_ref[:, 0:1, :] = zcol
    win_ref[:, w + 1:w + 2, :] = zcol

    # ---- 3x3 conv: 9 statically-unrolled shifted matmuls, f32 accumulate ---
    acc = jnp.zeros((th_rows * w, cmid), jnp.float32)
    for ky in range(3):
        for kx in range(3):
            lhs = win_ref[ky:ky + th_rows, kx:kx + w, :].reshape(th_rows * w, cin)
            acc = acc + jnp.dot(lhs.astype(cdt), w1_ref[ky * 3 + kx],
                                preferred_element_type=jnp.float32)
    acc = acc + b1_ref[...]

    # ---- ReLU + BN2 + 1x1 conv + residual add -------------------------------
    acc = jnp.maximum(acc, 0.0)
    acc = acc * s2_ref[...] + t2_ref[...]
    out = jnp.dot(acc.astype(cdt), w2_ref[...],
                  preferred_element_type=jnp.float32) + b2_ref[...]
    out = out + x.reshape(th_rows * w, cin)
    o_ref[...] = out.reshape(1, th_rows, w, cin)


# ----------------------------------------------------------------------------
# Wrapper: NCHW in / NCHW out, parameter folding, pallas_call setup
# ----------------------------------------------------------------------------
def _fold_bn(gamma, beta, mean, var, eps):
    scale = gamma / jnp.sqrt(var + eps)
    shift = beta - mean * scale
    return scale, shift


def _pick_row_tile(h):
    # Largest multiple of 8 that divides H (capped so per-tile VMEM stays
    # small even on v7x's 64 MiB), else fall back to the full height.
    best = None
    t = 8
    while t <= min(h, 256):
        if h % t == 0:
            best = t
        t += 8
    return best if best is not None else h


def resblock_forward(x_nchw, params, *, eps=1e-5, row_tile=None,
                     compute_dtype=jnp.float32):
    N, Cin, H, W = x_nchw.shape
    Cmid = params["w1"].shape[0]

    th = _pick_row_tile(H) if row_tile is None else row_tile
    if H % th != 0:
        th = H
    num_th = H // th

    # Fold BN running stats + affine into per-channel scale/shift (eval mode).
    s1, t1 = _fold_bn(params["g1"], params["be1"], params["m1"], params["v1"], eps)
    s2, t2 = _fold_bn(params["g2"], params["be2"], params["m2"], params["v2"], eps)

    # NCHW -> NHWC (channel on the lane axis).
    x = jnp.transpose(x_nchw, (0, 2, 3, 1)).astype(jnp.float32)

    # Halo rows: the single row above / below each row tile (zero rows at the
    # image boundary).  Tiny array; keeps all BlockSpec tiles non-overlapping.
    xh = jnp.pad(x, ((0, 0), (1, 1), (0, 0), (0, 0)))
    halo = jnp.stack([xh[:, 0:H:th], xh[:, th + 1:H + 2:th]], axis=2)
    halo = halo.reshape(N * num_th, 2, W, Cin)

    # Conv weights: (Cmid,Cin,3,3) -> (9,Cin,Cmid); (Cin,Cmid,1,1) -> (Cmid,Cin).
    w1_k = (jnp.transpose(params["w1"], (2, 3, 1, 0))
            .reshape(9, Cin, Cmid).astype(compute_dtype))
    w2_k = jnp.transpose(params["w2"][:, :, 0, 0], (1, 0)).astype(compute_dtype)

    b1 = params["b1"].reshape(1, Cmid).astype(jnp.float32)
    b2 = params["b2"].reshape(1, Cin).astype(jnp.float32)
    s1 = s1.reshape(1, Cin).astype(jnp.float32)
    t1 = t1.reshape(1, Cin).astype(jnp.float32)
    s2 = s2.reshape(1, Cmid).astype(jnp.float32)
    t2 = t2.reshape(1, Cmid).astype(jnp.float32)

    kernel = functools.partial(
        resblock_kernel, th_rows=th, w=W, cin=Cin, cmid=Cmid,
        num_row_tiles=num_th, cdt=compute_dtype)

    flops = 2 * N * H * W * (9 * Cin * Cmid + Cmid * Cin)
    bytes_accessed = 4 * (2 * N * H * W * Cin + int(halo.size)
                          + N * num_th * (9 * Cin * Cmid + Cmid * Cin
                                          + 2 * (Cin + Cmid)))
    cost = pl.CostEstimate(flops=flops, transcendentals=0,
                           bytes_accessed=int(bytes_accessed))

    out_nhwc = pl.pallas_call(
        kernel,
        out_shape=jax.ShapeDtypeStruct((N, H, W, Cin), jnp.float32),
        grid=(N, num_th),
        in_specs=[
            pl.BlockSpec((1, th, W, Cin), lambda b, t: (b, t, 0, 0)),        # x rows
            pl.BlockSpec((1, 2, W, Cin),
                         lambda b, t: (b * num_th + t, 0, 0, 0)),            # halo rows
            pl.BlockSpec((9, Cin, Cmid), lambda b, t: (0, 0, 0)),            # w1
            pl.BlockSpec((1, Cmid), lambda b, t: (0, 0)),                    # b1
            pl.BlockSpec((1, Cin), lambda b, t: (0, 0)),                     # s1
            pl.BlockSpec((1, Cin), lambda b, t: (0, 0)),                     # t1
            pl.BlockSpec((1, Cmid), lambda b, t: (0, 0)),                    # s2
            pl.BlockSpec((1, Cmid), lambda b, t: (0, 0)),                    # t2
            pl.BlockSpec((Cmid, Cin), lambda b, t: (0, 0)),                  # w2
            pl.BlockSpec((1, Cin), lambda b, t: (0, 0)),                     # b2
        ],
        out_specs=pl.BlockSpec((1, th, W, Cin), lambda b, t: (b, t, 0, 0)),
        scratch_shapes=[pltpu.VMEM((th + 2, W + 2, Cin), jnp.float32)],
        compiler_params=pltpu.CompilerParams(
            dimension_semantics=("parallel", "parallel"),
            vmem_limit_bytes=32 * 1024 * 1024,
        ),
        cost_estimate=cost,
    )(x, halo, w1_k, b1, s1, t1, s2, t2, w2_k, b2)

    # NHWC -> NCHW
    return jnp.transpose(out_nhwc, (0, 3, 1, 2))


# ----------------------------------------------------------------------------
# Pure-JAX reference (NCHW, matching PyTorch eval-mode semantics)
# ----------------------------------------------------------------------------
def resblock_reference(x, p, *, eps=1e-5):
    s1 = p["g1"] / jnp.sqrt(p["v1"] + eps)
    t1 = p["be1"] - p["m1"] * s1
    s2 = p["g2"] / jnp.sqrt(p["v2"] + eps)
    t2 = p["be2"] - p["m2"] * s2

    h = jnp.maximum(x, 0.0)
    h = h * s1[None, :, None, None] + t1[None, :, None, None]
    h = jax.lax.conv_general_dilated(
        h, p["w1"], (1, 1), ((1, 1), (1, 1)),
        dimension_numbers=("NCHW", "OIHW", "NCHW"),
    ) + p["b1"][None, :, None, None]
    h = jnp.maximum(h, 0.0)
    h = h * s2[None, :, None, None] + t2[None, :, None, None]
    h = jax.lax.conv_general_dilated(
        h, p["w2"], (1, 1), ((0, 0), (0, 0)),
        dimension_numbers=("NCHW", "OIHW", "NCHW"),
    ) + p["b2"][None, :, None, None]
    return h + x


# ----------------------------------------------------------------------------
# Deterministic parameter construction
# ----------------------------------------------------------------------------
def make_params(key, in_channel, channel):
    ks = jax.random.split(key, 12)
    f32 = jnp.float32
    return {
        # Conv2d(in_channel, channel, 3, padding=1)
        "w1": 0.1 * jax.random.normal(ks[0], (channel, in_channel, 3, 3), f32),
        "b1": 0.1 * jax.random.normal(ks[1], (channel,), f32),
        # Conv2d(channel, in_channel, 1)
        "w2": 0.1 * jax.random.normal(ks[2], (in_channel, channel, 1, 1), f32),
        "b2": 0.1 * jax.random.normal(ks[3], (in_channel,), f32),
        # BatchNorm2d(in_channel) — gamma/beta + running stats (eval mode)
        "g1": jax.random.uniform(ks[4], (in_channel,), f32, 0.5, 1.5),
        "be1": 0.1 * jax.random.normal(ks[5], (in_channel,), f32),
        "m1": 0.1 * jax.random.normal(ks[6], (in_channel,), f32),
        "v1": jax.random.uniform(ks[7], (in_channel,), f32, 0.5, 1.5),
        # BatchNorm2d(channel)
        "g2": jax.random.uniform(ks[8], (channel,), f32, 0.5, 1.5),
        "be2": 0.1 * jax.random.normal(ks[9], (channel,), f32),
        "m2": 0.1 * jax.random.normal(ks[10], (channel,), f32),
        "v2": jax.random.uniform(ks[11], (channel,), f32, 0.5, 1.5),
    }


if __name__ == "__main__":
    # TODO(synk): BatchNorm training-mode batch-statistics / running-stat
    # updates are stateful and not implemented; this kernel is eval-mode BN.
    key = jax.random.PRNGKey(0)
    k_x, k_p = jax.random.split(key)

    N, in_channel, channel, H, W = 2, 4, 8, 16, 16
    x = jax.random.normal(k_x, (N, in_channel, H, W), jnp.float32)
    params = make_params(k_p, in_channel, channel)

    # row_tile=8 -> grid (N, H//8) = (2, 2): exercises the halo / row-tiling
    # path (interior and boundary tiles) with full pipelining.
    fwd = jax.jit(functools.partial(resblock_forward, row_tile=8))
    out = jax.block_until_ready(fwd(x, params))

    ref = resblock_reference(x, params)
    assert out.shape == x.shape
    err = float(jnp.max(jnp.abs(out - ref)))
    assert jnp.allclose(out, ref, rtol=1e-4, atol=1e-4), err
    print("KERNEL_OK")
</pallas_src>

<mosaic_0001>
module attributes {stable_mosaic.version = 11 : i64} {
  func.func @resblock_kernel(%arg0: i32, %arg1: i32, %arg2: memref<1x8x16x4xf32, #tpu.memory_space<vmem>>, %arg3: memref<1x2x16x4xf32, #tpu.memory_space<vmem>>, %arg4: memref<9x4x8xf32, #tpu.memory_space<vmem>>, %arg5: memref<1x8xf32, #tpu.memory_space<vmem>>, %arg6: memref<1x4xf32, #tpu.memory_space<vmem>>, %arg7: memref<1x4xf32, #tpu.memory_space<vmem>>, %arg8: memref<1x8xf32, #tpu.memory_space<vmem>>, %arg9: memref<1x8xf32, #tpu.memory_space<vmem>>, %arg10: memref<8x4xf32, #tpu.memory_space<vmem>>, %arg11: memref<1x4xf32, #tpu.memory_space<vmem>>, %arg12: memref<1x8x16x4xf32, #tpu.memory_space<vmem>>, %arg13: memref<10x18x4xf32, #tpu.memory_space<vmem>>) attributes {dimension_semantics = [#tpu.dimension_semantics<parallel>, #tpu.dimension_semantics<parallel>], iteration_bounds = array<i64: 2, 2>, scalar_prefetch = 0 : i64, scratch_operands = 1 : i64, tpu.core_type = #tpu.core_type<tc>, window_params = [{transform_indices = @transform_0, window_bounds = array<i64: 1, 8, 16, 4>}, {transform_indices = @transform_1, window_bounds = array<i64: 1, 2, 16, 4>}, {pipeline_mode = #tpu.pipeline_mode<synchronous>, transform_indices = @transform_2, window_bounds = array<i64: 9, 4, 8>}, {pipeline_mode = #tpu.pipeline_mode<synchronous>, transform_indices = @transform_3, window_bounds = array<i64: 1, 8>}, {pipeline_mode = #tpu.pipeline_mode<synchronous>, transform_indices = @transform_4, window_bounds = array<i64: 1, 4>}, {pipeline_mode = #tpu.pipeline_mode<synchronous>, transform_indices = @transform_5, window_bounds = array<i64: 1, 4>}, {pipeline_mode = #tpu.pipeline_mode<synchronous>, transform_indices = @transform_6, window_bounds = array<i64: 1, 8>}, {pipeline_mode = #tpu.pipeline_mode<synchronous>, transform_indices = @transform_7, window_bounds = array<i64: 1, 8>}, {pipeline_mode = #tpu.pipeline_mode<synchronous>, transform_indices = @transform_8, window_bounds = array<i64: 8, 4>}, {pipeline_mode = #tpu.pipeline_mode<synchronous>, transform_indices = @transform_9, window_bounds = array<i64: 1, 4>}, {transform_indices = @transform_10, window_bounds = array<i64: 1, 8, 16, 4>}]} {
    %c0 = arith.constant 0 : index
    %c0_0 = arith.constant 0 : index
    %0 = vector.load %arg6[%c0, %c0_0] : memref<1x4xf32, #tpu.memory_space<vmem>>, vector<1x4xf32>
    %c0_1 = arith.constant 0 : index
    %c0_2 = arith.constant 0 : index
    %1 = vector.load %arg7[%c0_1, %c0_2] : memref<1x4xf32, #tpu.memory_space<vmem>>, vector<1x4xf32>
    %c0_3 = arith.constant 0 : index
    %c0_4 = arith.constant 0 : index
    %c0_5 = arith.constant 0 : index
    %c0_6 = arith.constant 0 : index
    %2 = vector.load %arg2[%c0_3, %c0_4, %c0_5, %c0_6] : memref<1x8x16x4xf32, #tpu.memory_space<vmem>>, vector<1x8x16x4xf32>
    %cst = arith.constant 0.000000e+00 : f32
    %3 = vector.broadcast %cst : f32 to vector<1x8x16x4xf32>
    %4 = arith.maximumf %2, %3 : vector<1x8x16x4xf32>
    %5 = vector.shape_cast %0 : vector<1x4xf32> to vector<1x1x1x4xf32>
    %6 = vector.broadcast %5 : vector<1x1x1x4xf32> to vector<1x8x16x4xf32>
    %7 = arith.mulf %4, %6 : vector<1x8x16x4xf32>
    %8 = vector.shape_cast %1 : vector<1x4xf32> to vector<1x1x1x4xf32>
    %9 = vector.broadcast %8 : vector<1x1x1x4xf32> to vector<1x8x16x4xf32>
    %10 = arith.addf %7, %9 : vector<1x8x16x4xf32>
    %c0_7 = arith.constant 0 : index
    %c0_8 = arith.constant 0 : index
    %c0_9 = arith.constant 0 : index
    %c0_10 = arith.constant 0 : index
    %11 = vector.load %arg3[%c0_7, %c0_8, %c0_9, %c0_10] : memref<1x2x16x4xf32, #tpu.memory_space<vmem>>, vector<1x2x16x4xf32>
    %12 = vector.shape_cast %11 : vector<1x2x16x4xf32> to vector<2x16x4xf32>
    %cst_11 = arith.constant 0.000000e+00 : f32
    %13 = vector.broadcast %cst_11 : f32 to vector<2x16x4xf32>
    %14 = arith.maximumf %12, %13 : vector<2x16x4xf32>
    %15 = vector.shape_cast %0 : vector<1x4xf32> to vector<1x1x4xf32>
    %16 = vector.broadcast %15 : vector<1x1x4xf32> to vector<2x16x4xf32>
    %17 = arith.mulf %14, %16 : vector<2x16x4xf32>
    %18 = vector.shape_cast %1 : vector<1x4xf32> to vector<1x1x4xf32>
    %19 = vector.broadcast %18 : vector<1x1x4xf32> to vector<2x16x4xf32>
    %20 = arith.addf %17, %19 : vector<2x16x4xf32>
    %c0_i32 = arith.constant 0 : i32
    %21 = arith.cmpi sgt, %arg1, %c0_i32 : i32
    %cst_12 = arith.constant 1.000000e+00 : f32
    %cst_13 = arith.constant 0.000000e+00 : f32
    %22 = arith.select %21, %cst_12, %cst_13 : f32
    %c1_i32 = arith.constant 1 : i32
    %23 = arith.cmpi slt, %arg1, %c1_i32 : i32
    %cst_14 = arith.constant 1.000000e+00 : f32
    %cst_15 = arith.constant 0.000000e+00 : f32
    %24 = arith.select %23, %cst_14, %cst_15 : f32
    %25 = vector.shape_cast %10 : vector<1x8x16x4xf32> to vector<8x16x4xf32>
    %c1 = arith.constant 1 : index
    %c1_16 = arith.constant 1 : index
    %c0_17 = arith.constant 0 : index
    %26 = vector.load %arg13[%c1, %c1_16, %c0_17] : memref<10x18x4xf32, #tpu.memory_space<vmem>>, vector<8x16x4xf32>
    tpu.vector_store %arg13[%c1, %c1_16, %c0_17], %25 {strides = array<i32>} : memref<10x18x4xf32, #tpu.memory_space<vmem>>, vector<8x16x4xf32>,
    %27 = vector.extract_strided_slice %20 {offsets = [0, 0, 0], sizes = [1, 16, 4], strides = [1, 1, 1]} : vector<2x16x4xf32> to vector<1x16x4xf32>
    %28 = vector.broadcast %22 : f32 to vector<1x16x4xf32>
    %29 = arith.mulf %27, %28 : vector<1x16x4xf32>
    %c0_18 = arith.constant 0 : index
    %c1_19 = arith.constant 1 : index
    %c0_20 = arith.constant 0 : index
    %30 = vector.load %arg13[%c0_18, %c1_19, %c0_20] : memref<10x18x4xf32, #tpu.memory_space<vmem>>, vector<1x16x4xf32>
    tpu.vector_store %arg13[%c0_18, %c1_19, %c0_20], %29 {strides = array<i32>} : memref<10x18x4xf32, #tpu.memory_space<vmem>>, vector<1x16x4xf32>,
    %31 = vector.extract_strided_slice %20 {offsets = [1, 0, 0], sizes = [1, 16, 4], strides = [1, 1, 1]} : vector<2x16x4xf32> to vector<1x16x4xf32>
    %32 = vector.broadcast %24 : f32 to vector<1x16x4xf32>
    %33 = arith.mulf %31, %32 : vector<1x16x4xf32>
    %c9 = arith.constant 9 : index
    %c1_21 = arith.constant 1 : index
    %c0_22 = arith.constant 0 : index
    %34 = vector.load %arg13[%c9, %c1_21, %c0_22] : memref<10x18x4xf32, #tpu.memory_space<vmem>>, vector<1x16x4xf32>
    tpu.vector_store %arg13[%c9, %c1_21, %c0_22], %33 {strides = array<i32>} : memref<10x18x4xf32, #tpu.memory_space<vmem>>, vector<1x16x4xf32>,
    %cst_23 = arith.constant 0.000000e+00 : f32
    %35 = vector.broadcast %cst_23 : f32 to vector<10x1x4xf32>
    %c0_24 = arith.constant 0 : index
    %c0_25 = arith.constant 0 : index
    %c0_26 = arith.constant 0 : index
    %36 = vector.load %arg13[%c0_24, %c0_25, %c0_26] : memref<10x18x4xf32, #tpu.memory_space<vmem>>, vector<10x1x4xf32>
    tpu.vector_store %arg13[%c0_24, %c0_25, %c0_26], %35 {strides = array<i32>} : memref<10x18x4xf32, #tpu.memory_space<vmem>>, vector<10x1x4xf32>,
    %c0_27 = arith.constant 0 : index
    %c17 = arith.constant 17 : index
    %c0_28 = arith.constant 0 : index
    %37 = vector.load %arg13[%c0_27, %c17, %c0_28] : memref<10x18x4xf32, #tpu.memory_space<vmem>>, vector<10x1x4xf32>
    tpu.vector_store %arg13[%c0_27, %c17, %c0_28], %35 {strides = array<i32>} : memref<10x18x4xf32, #tpu.memory_space<vmem>>, vector<10x1x4xf32>,
    %cst_29 = arith.constant 0.000000e+00 : f32
    %38 = vector.broadcast %cst_29 : f32 to vector<128x8xf32>
    %c0_30 = arith.constant 0 : index
    %c0_31 = arith.constant 0 : index
    %c0_32 = arith.constant 0 : index
    %39 = vector.load %arg13[%c0_30, %c0_31, %c0_32] : memref<10x18x4xf32, #tpu.memory_space<vmem>>, vector<8x16x4xf32>
    %40 = vector.shape_cast %39 : vector<8x16x4xf32> to vector<128x4xf32>
    %c0_33 = arith.constant 0 : index
    %c0_34 = arith.constant 0 : index
    %c0_35 = arith.constant 0 : index
    %41 = vector.load %arg4[%c0_33, %c0_34, %c0_35] : memref<9x4x8xf32, #tpu.memory_space<vmem>>, vector<1x4x8xf32>
    %42 = vector.shape_cast %41 : vector<1x4x8xf32> to vector<4x8xf32>
    %cst_36 = arith.constant dense<0.000000e+00> : vector<128x8xf32>
    %43 = tpu.matmul %40, %42, %cst_36 {dimension_numbers = #tpu.dot_dimension_numbers<[1], [0], [0], [1], [0, 0, 1, 1], [], []>} : vector<128x4xf32>, vector<4x8xf32>, vector<128x8xf32> -> vector<128x8xf32>
    %44 = arith.addf %38, %43 : vector<128x8xf32>
    %c0_37 = arith.constant 0 : index
    %c1_38 = arith.constant 1 : index
    %c0_39 = arith.constant 0 : index
    %45 = vector.load %arg13[%c0_37, %c1_38, %c0_39] : memref<10x18x4xf32, #tpu.memory_space<vmem>>, vector<8x16x4xf32>
    %46 = vector.shape_cast %45 : vector<8x16x4xf32> to vector<128x4xf32>
    %c1_40 = arith.constant 1 : index
    %c0_41 = arith.constant 0 : index
    %c0_42 = arith.constant 0 : index
    %47 = vector.load %arg4[%c1_40, %c0_41, %c0_42] : memref<9x4x8xf32, #tpu.memory_space<vmem>>, vector<1x4x8xf32>
    %48 = vector.shape_cast %47 : vector<1x4x8xf32> to vector<4x8xf32>
    %cst_43 = arith.constant dense<0.000000e+00> : vector<128x8xf32>
    %49 = tpu.matmul %46, %48, %cst_43 {dimension_numbers = #tpu.dot_dimension_numbers<[1], [0], [0], [1], [0, 0, 1, 1], [], []>} : vector<128x4xf32>, vector<4x8xf32>, vector<128x8xf32> -> vector<128x8xf32>
    %50 = arith.addf %44, %49 : vector<128x8xf32>
    %c0_44 = arith.constant 0 : index
    %c2 = arith.constant 2 : index
    %c0_45 = arith.constant 0 : index
    %51 = vector.load %arg13[%c0_44, %c2, %c0_45] : memref<10x18x4xf32, #tpu.memory_space<vmem>>, vector<8x16x4xf32>
    %52 = vector.shape_cast %51 : vector<8x16x4xf32> to vector<128x4xf32>
    %c2_46 = arith.constant 2 : index
    %c0_47 = arith.constant 0 : index
    %c0_48 = arith.constant 0 : index
    %53 = vector.load %arg4[%c2_46, %c0_47, %c0_48] : memref<9x4x8xf32, #tpu.memory_space<vmem>>, vector<1x4x8xf32>
    %54 = vector.shape_cast %53 : vector<1x4x8xf32> to vector<4x8xf32>
    %cst_49 = arith.constant dense<0.000000e+00> : vector<128x8xf32>
    %55 = tpu.matmul %52, %54, %cst_49 {dimension_numbers = #tpu.dot_dimension_numbers<[1], [0], [0], [1], [0, 0, 1, 1], [], []>} : vector<128x4xf32>, vector<4x8xf32>, vector<128x8xf32> -> vector<128x8xf32>
    %56 = arith.addf %50, %55 : vector<128x8xf32>
    %c1_50 = arith.constant 1 : index
    %c0_51 = arith.constant 0 : index
    %c0_52 = arith.constant 0 : index
    %57 = vector.load %arg13[%c1_50, %c0_51, %c0_52] : memref<10x18x4xf32, #tpu.memory_space<vmem>>, vector<8x16x4xf32>
    %58 = vector.shape_cast %57 : vector<8x16x4xf32> to vector<128x4xf32>
    %c3 = arith.constant 3 : index
    %c0_53 = arith.constant 0 : index
    %c0_54 = arith.constant 0 : index
    %59 = vector.load %arg4[%c3, %c0_53, %c0_54] : memref<9x4x8xf32, #tpu.memory_space<vmem>>, vector<1x4x8xf32>
    %60 = vector.shape_cast %59 : vector<1x4x8xf32> to vector<4x8xf32>
    %cst_55 = arith.constant dense<0.000000e+00> : vector<128x8xf32>
    %61 = tpu.matmul %58, %60, %cst_55 {dimension_numbers = #tpu.dot_dimension_numbers<[1], [0], [0], [1], [0, 0, 1, 1], [], []>} : vector<128x4xf32>, vector<4x8xf32>, vector<128x8xf32> -> vector<128x8xf32>
    %62 = arith.addf %56, %61 : vector<128x8xf32>
    %c1_56 = arith.constant 1 : index
    %c1_57 = arith.constant 1 : index
    %c0_58 = arith.constant 0 : index
    %63 = vector.load %arg13[%c1_56, %c1_57, %c0_58] : memref<10x18x4xf32, #tpu.memory_space<vmem>>, vector<8x16x4xf32>
    %64 = vector.shape_cast %63 : vector<8x16x4xf32> to vector<128x4xf32>
    %c4 = arith.constant 4 : index
    %c0_59 = arith.constant 0 : index
    %c0_60 = arith.constant 0 : index
    %65 = vector.load %arg4[%c4, %c0_59, %c0_60] : memref<9x4x8xf32, #tpu.memory_space<vmem>>, vector<1x4x8xf32>
    %66 = vector.shape_cast %65 : vector<1x4x8xf32> to vector<4x8xf32>
    %cst_61 = arith.constant dense<0.000000e+00> : vector<128x8xf32>
    %67 = tpu.matmul %64, %66, %cst_61 {dimension_numbers = #tpu.dot_dimension_numbers<[1], [0], [0], [1], [0, 0, 1, 1], [], []>} : vector<128x4xf32>, vector<4x8xf32>, vector<128x8xf32> -> vector<128x8xf32>
    %68 = arith.addf %62, %67 : vector<128x8xf32>
    %c1_62 = arith.constant 1 : index
    %c2_63 = arith.constant 2 : index
    %c0_64 = arith.constant 0 : index
    %69 = vector.load %arg13[%c1_62, %c2_63, %c0_64] : memref<10x18x4xf32, #tpu.memory_space<vmem>>, vector<8x16x4xf32>
    %70 = vector.shape_cast %69 : vector<8x16x4xf32> to vector<128x4xf32>
    %c5 = arith.constant 5 : index
    %c0_65 = arith.constant 0 : index
    %c0_66 = arith.constant 0 : index
    %71 = vector.load %arg4[%c5, %c0_65, %c0_66] : memref<9x4x8xf32, #tpu.memory_space<vmem>>, vector<1x4x8xf32>
    %72 = vector.shape_cast %71 : vector<1x4x8xf32> to vector<4x8xf32>
    %cst_67 = arith.constant dense<0.000000e+00> : vector<128x8xf32>
    %73 = tpu.matmul %70, %72, %cst_67 {dimension_numbers = #tpu.dot_dimension_numbers<[1], [0], [0], [1], [0, 0, 1, 1], [], []>} : vector<128x4xf32>, vector<4x8xf32>, vector<128x8xf32> -> vector<128x8xf32>
    %74 = arith.addf %68, %73 : vector<128x8xf32>
    %c2_68 = arith.constant 2 : index
    %c0_69 = arith.constant 0 : index
    %c0_70 = arith.constant 0 : index
    %75 = vector.load %arg13[%c2_68, %c0_69, %c0_70] : memref<10x18x4xf32, #tpu.memory_space<vmem>>, vector<8x16x4xf32>
    %76 = vector.shape_cast %75 : vector<8x16x4xf32> to vector<128x4xf32>
    %c6 = arith.constant 6 : index
    %c0_71 = arith.constant 0 : index
    %c0_72 = arith.constant 0 : index
    %77 = vector.load %arg4[%c6, %c0_71, %c0_72] : memref<9x4x8xf32, #tpu.memory_space<vmem>>, vector<1x4x8xf32>
    %78 = vector.shape_cast %77 : vector<1x4x8xf32> to vector<4x8xf32>
    %cst_73 = arith.constant dense<0.000000e+00> : vector<128x8xf32>
    %79 = tpu.matmul %76, %78, %cst_73 {dimension_numbers = #tpu.dot_dimension_numbers<[1], [0], [0], [1], [0, 0, 1, 1], [], []>} : vector<128x4xf32>, vector<4x8xf32>, vector<128x8xf32> -> vector<128x8xf32>
    %80 = arith.addf %74, %79 : vector<128x8xf32>
    %c2_74 = arith.constant 2 : index
    %c1_75 = arith.constant 1 : index
    %c0_76 = arith.constant 0 : index
    %81 = vector.load %arg13[%c2_74, %c1_75, %c0_76] : memref<10x18x4xf32, #tpu.memory_space<vmem>>, vector<8x16x4xf32>
    %82 = vector.shape_cast %81 : vector<8x16x4xf32> to vector<128x4xf32>
    %c7 = arith.constant 7 : index
    %c0_77 = arith.constant 0 : index
    %c0_78 = arith.constant 0 : index
    %83 = vector.load %arg4[%c7, %c0_77, %c0_78] : memref<9x4x8xf32, #tpu.memory_space<vmem>>, vector<1x4x8xf32>
    %84 = vector.shape_cast %83 : vector<1x4x8xf32> to vector<4x8xf32>
    %cst_79 = arith.constant dense<0.000000e+00> : vector<128x8xf32>
    %85 = tpu.matmul %82, %84, %cst_79 {dimension_numbers = #tpu.dot_dimension_numbers<[1], [0], [0], [1], [0, 0, 1, 1], [], []>} : vector<128x4xf32>, vector<4x8xf32>, vector<128x8xf32> -> vector<128x8xf32>
    %86 = arith.addf %80, %85 : vector<128x8xf32>
    %c2_80 = arith.constant 2 : index
    %c2_81 = arith.constant 2 : index
    %c0_82 = arith.constant 0 : index
    %87 = vector.load %arg13[%c2_80, %c2_81, %c0_82] : memref<10x18x4xf32, #tpu.memory_space<vmem>>, vector<8x16x4xf32>
    %88 = vector.shape_cast %87 : vector<8x16x4xf32> to vector<128x4xf32>
    %c8 = arith.constant 8 : index
    %c0_83 = arith.constant 0 : index
    %c0_84 = arith.constant 0 : index
    %89 = vector.load %arg4[%c8, %c0_83, %c0_84] : memref<9x4x8xf32, #tpu.memory_space<vmem>>, vector<1x4x8xf32>
    %90 = vector.shape_cast %89 : vector<1x4x8xf32> to vector<4x8xf32>
    %cst_85 = arith.constant dense<0.000000e+00> : vector<128x8xf32>
    %91 = tpu.matmul %88, %90, %cst_85 {dimension_numbers = #tpu.dot_dimension_numbers<[1], [0], [0], [1], [0, 0, 1, 1], [], []>} : vector<128x4xf32>, vector<4x8xf32>, vector<128x8xf32> -> vector<128x8xf32>
    %92 = arith.addf %86, %91 : vector<128x8xf32>
    %c0_86 = arith.constant 0 : index
    %c0_87 = arith.constant 0 : index
    %93 = vector.load %arg5[%c0_86, %c0_87] : memref<1x8xf32, #tpu.memory_space<vmem>>, vector<1x8xf32>
    %94 = vector.broadcast %93 : vector<1x8xf32> to vector<128x8xf32>
    %95 = arith.addf %92, %94 : vector<128x8xf32>
    %cst_88 = arith.constant 0.000000e+00 : f32
    %96 = vector.broadcast %cst_88 : f32 to vector<128x8xf32>
    %97 = arith.maximumf %95, %96 : vector<128x8xf32>
    %c0_89 = arith.constant 0 : index
    %c0_90 = arith.constant 0 : index
    %98 = vector.load %arg8[%c0_89, %c0_90] : memref<1x8xf32, #tpu.memory_space<vmem>>, vector<1x8xf32>
    %99 = vector.broadcast %98 : vector<1x8xf32> to vector<128x8xf32>
    %100 = arith.mulf %97, %99 : vector<128x8xf32>
    %c0_91 = arith.constant 0 : index
    %c0_92 = arith.constant 0 : index
    %101 = vector.load %arg9[%c0_91, %c0_92] : memref<1x8xf32, #tpu.memory_space<vmem>>, vector<1x8xf32>
    %102 = vector.broadcast %101 : vector<1x8xf32> to vector<128x8xf32>
    %103 = arith.addf %100, %102 : vector<128x8xf32>
    %c0_93 = arith.constant 0 : index
    %c0_94 = arith.constant 0 : index
    %104 = vector.load %arg10[%c0_93, %c0_94] : memref<8x4xf32, #tpu.memory_space<vmem>>, vector<8x4xf32>
    %cst_95 = arith.constant dense<0.000000e+00> : vector<128x4xf32>
    %105 = tpu.matmul %103, %104, %cst_95 {dimension_numbers = #tpu.dot_dimension_numbers<[1], [0], [0], [1], [0, 0, 1, 1], [], []>} : vector<128x8xf32>, vector<8x4xf32>, vector<128x4xf32> -> vector<128x4xf32>
    %c0_96 = arith.constant 0 : index
    %c0_97 = arith.constant 0 : index
    %106 = vector.load %arg11[%c0_96, %c0_97] : memref<1x4xf32, #tpu.memory_space<vmem>>, vector<1x4xf32>
    %107 = vector.broadcast %106 : vector<1x4xf32> to vector<128x4xf32>
    %108 = arith.addf %105, %107 : vector<128x4xf32>
    %109 = vector.shape_cast %2 : vector<1x8x16x4xf32> to vector<128x4xf32>
    %110 = arith.addf %108, %109 : vector<128x4xf32>
    %111 = vector.shape_cast %110 : vector<128x4xf32> to vector<1x8x16x4xf32>
    %c0_98 = arith.constant 0 : index
    %c0_99 = arith.constant 0 : index
    %c0_100 = arith.constant 0 : index
    %c0_101 = arith.constant 0 : index
    %112 = vector.load %arg12[%c0_98, %c0_99, %c0_100, %c0_101] : memref<1x8x16x4xf32, #tpu.memory_space<vmem>>, vector<1x8x16x4xf32>
    tpu.vector_store %arg12[%c0_98, %c0_99, %c0_100, %c0_101], %111 {strides = array<i32>} : memref<1x8x16x4xf32, #tpu.memory_space<vmem>>, vector<1x8x16x4xf32>,
    return
  }
  func.func @transform_0(%arg0: i32, %arg1: i32) -> (i32, i32, i32, i32) {
    %c0_i32 = arith.constant 0 : i32
    %c0_i32_0 = arith.constant 0 : i32
    %c0_i32_1 = arith.constant 0 : i32
    return %arg0, %arg1, %c0_i32, %c0_i32_0 : i32, i32, i32, i32
  }
  func.func @transform_1(%arg0: i32, %arg1: i32) -> (i32, i32, i32, i32) {
    %c2_i32 = arith.constant 2 : i32
    %0 = arith.muli %arg0, %c2_i32 : i32
    %1 = arith.addi %0, %arg1 : i32
    %c0_i32 = arith.constant 0 : i32
    %c0_i32_0 = arith.constant 0 : i32
    %c0_i32_1 = arith.constant 0 : i32
    %c0_i32_2 = arith.constant 0 : i32
    return %1, %c0_i32, %c0_i32_0, %c0_i32_1 : i32, i32, i32, i32
  }
  func.func @transform_2(%arg0: i32, %arg1: i32) -> (i32, i32, i32) {
    %c0_i32 = arith.constant 0 : i32
    %c0_i32_0 = arith.constant 0 : i32
    %c0_i32_1 = arith.constant 0 : i32
    %c0_i32_2 = arith.constant 0 : i32
    return %c0_i32, %c0_i32_0, %c0_i32_1 : i32, i32, i32
  }
  func.func @transform_3(%arg0: i32, %arg1: i32) -> (i32, i32) {
    %c0_i32 = arith.constant 0 : i32
    %c0_i32_0 = arith.constant 0 : i32
    %c0_i32_1 = arith.constant 0 : i32
    return %c0_i32, %c0_i32_0 : i32, i32
  }
  func.func @transform_4(%arg0: i32, %arg1: i32) -> (i32, i32) {
    %c0_i32 = arith.constant 0 : i32
    %c0_i32_0 = arith.constant 0 : i32
    %c0_i32_1 = arith.constant 0 : i32
    return %c0_i32, %c0_i32_0 : i32, i32
  }
  func.func @transform_5(%arg0: i32, %arg1: i32) -> (i32, i32) {
    %c0_i32 = arith.constant 0 : i32
    %c0_i32_0 = arith.constant 0 : i32
    %c0_i32_1 = arith.constant 0 : i32
    return %c0_i32, %c0_i32_0 : i32, i32
  }
  func.func @transform_6(%arg0: i32, %arg1: i32) -> (i32, i32) {
    %c0_i32 = arith.constant 0 : i32
    %c0_i32_0 = arith.constant 0 : i32
    %c0_i32_1 = arith.constant 0 : i32
    return %c0_i32, %c0_i32_0 : i32, i32
  }
  func.func @transform_7(%arg0: i32, %arg1: i32) -> (i32, i32) {
    %c0_i32 = arith.constant 0 : i32
    %c0_i32_0 = arith.constant 0 : i32
    %c0_i32_1 = arith.constant 0 : i32
    return %c0_i32, %c0_i32_0 : i32, i32
  }
  func.func @transform_8(%arg0: i32, %arg1: i32) -> (i32, i32) {
    %c0_i32 = arith.constant 0 : i32
    %c0_i32_0 = arith.constant 0 : i32
    %c0_i32_1 = arith.constant 0 : i32
    return %c0_i32, %c0_i32_0 : i32, i32
  }
  func.func @transform_9(%arg0: i32, %arg1: i32) -> (i32, i32) {
    %c0_i32 = arith.constant 0 : i32
    %c0_i32_0 = arith.constant 0 : i32
    %c0_i32_1 = arith.constant 0 : i32
    return %c0_i32, %c0_i32_0 : i32, i32
  }
  func.func @transform_10(%arg0: i32, %arg1: i32) -> (i32, i32, i32, i32) {
    %c0_i32 = arith.constant 0 : i32
    %c0_i32_0 = arith.constant 0 : i32
    %c0_i32_1 = arith.constant 0 : i32
    return %arg0, %arg1, %c0_i32, %c0_i32_0 : i32, i32, i32, i32
  }
}

</mosaic_0001>

<llo_original>
// kernel: resblock_forward.1
$region0: #{resblock_forward.1}
  #allocation0 [shape = 'u32[]', space=smem, size = 0x4, offset = 0x4, fixed_abs, tag = 'smem constant byte address 0x4 - core index']
  #allocation1 [shape = 'u32[144,128]{1,0:T(1,128)}', space=vmem, size = 0x12000, scoped, tag = 'internal scratch']
  #allocation2 [shape = 'f32[10,18,4]{2,1,0:T(8,128)}', space=vmem, size = 0x1e000, scoped, tag = 'scratch operand']
  %s0 = inlined_call_operand.vmem [shape: f32[2,16,16,4], index: 0, kind: input, shape index: {}]
  %s1 = inlined_call_operand.vmem [shape: f32[4,2,16,4], index: 1, kind: input, shape index: {}]
  %s2 = inlined_call_operand.vmem [shape: f32[9,4,8], index: 2, kind: input, shape index: {}]
  %s3 = inlined_call_operand.vmem [shape: f32[1,8], index: 3, kind: input, shape index: {}]
  %s4 = inlined_call_operand.vmem [shape: f32[1,4], index: 4, kind: input, shape index: {}]
  %s5 = inlined_call_operand.vmem [shape: f32[1,4], index: 5, kind: input, shape index: {}]
  %s6 = inlined_call_operand.vmem [shape: f32[1,8], index: 6, kind: input, shape index: {}]
  %s7 = inlined_call_operand.vmem [shape: f32[1,8], index: 7, kind: input, shape index: {}]
  %s8 = inlined_call_operand.vmem [shape: f32[8,4], index: 8, kind: input, shape index: {}]
  %s9 = inlined_call_operand.vmem [shape: f32[1,4], index: 9, kind: input, shape index: {}]
  %s10 = inlined_call_operand.vmem [shape: f32[2,16,16,4], index: 10, kind: output, shape index: {}]
  %s11 = sld [smem:[#allocation0]]
  $region73: #{resblock_forward.1} parent=0
    _
  %s13 = ssub.s32 1, %s11
  %s14 = scalar_select 0, %s13, %s11
  loop: start=0, step=1, limit=6
  $region2: #{resblock_forward.1} parent=0 // loop_pre_header
    _
  $region3: #{resblock_forward.1} parent=0 // loop_header
    %s16 = sphi 0, %s20
    %p17 = scmp.ge.s32.totalorder %s16, 6
    %s23 = sphi 0, %s35
    %s24 = sphi 0, %s31
    %s25 = sphi 0, %s23
    %s26 = sphi 0, %s24
    %s27 = sphi 0, %s25
    %s28 = sphi 0, %s26
    %s40 = sphi 0, %s42
    %s43 = sphi 0, %s40
    %s44 = sphi 0, %s43
    %s60 = sphi 0, %s44
    %s70 = sphi 0, %s72
    %s73 = sphi 0, %s70
    %s74 = sphi 0, %s73
    %s90 = sphi 0, %s74
    %s94 = sphi 0, %s94
    %s96 = sphi 0, %s94
    %s97 = sphi 0, %s96
    %s111 = sphi 0, %s97
    %s115 = sphi 0, %s115
    %s117 = sphi 0, %s115
    %s118 = sphi 0, %s117
    %s132 = sphi 0, %s118
    %s136 = sphi 0, %s136
    %s138 = sphi 0, %s136
    %s139 = sphi 0, %s138
    %s153 = sphi 0, %s139
    %s157 = sphi 0, %s157
    %s159 = sphi 0, %s157
    %s160 = sphi 0, %s159
    %s174 = sphi 0, %s160
    %s178 = sphi 0, %s178
    %s180 = sphi 0, %s178
    %s181 = sphi 0, %s180
    %s195 = sphi 0, %s181
    %s199 = sphi 0, %s199
    %s201 = sphi 0, %s199
    %s202 = sphi 0, %s201
    %s216 = sphi 0, %s202
    %s220 = sphi 0, %s220
    %s222 = sphi 0, %s220
    %s223 = sphi 0, %s222
    %s237 = sphi 0, %s223
    %s241 = sphi 0, %s241
    %s243 = sphi 0, %s241
    %s244 = sphi 0, %s243
    %s258 = sphi 0, %s244
    %s266 = sphi 0, %s268
    %s269 = sphi 0, %s266
    %s270 = sphi 0, %s269
    %s286 = sphi 0, %s270
  $region4: #{resblock_forward.1} parent=0 // loop_header_branch
    %19 = sbr.rel (%p17) target = $region8
  $region5: #{resblock_forward.1} parent=0 // loop_body
    %s21 = ssub.s32 %s16, 1
    %s22 = ssub.s32 %s16, 2
    %s29 = sadd.s32 1, %s24
    %p30 = scmp.ge.s32.totalorder %s29, 2
    %s31 = scalar_select %p30, 0, %s29
    %s32 = sadd.s32 1, %s23
    %s33 = scalar_select %p30, %s32, %s23
    %p34 = scmp.ge.s32.totalorder %s33, 2
    %s35 = scalar_select %p34, 0, %s33
    %s36 = ssub.s32 %s23, %s35
    %s37 = ssub.s32 %s24, %s31
    %s38 = sor.u32 %s36, %s37
    %p39 = scmp.eq.s32.totalorder %s38, 0
    %s41 = sadd.s32 %s40, 1
    %s42 = scalar_select %p39, %s40, %s41
    %p45 = pneg %p39
    %p46 = scmp.eq.s32.totalorder %s16, 3
    %p47 = por %p45, %p46
    %p48 = scmp.ne.s32.totalorder %s40, %s43
    %p49 = scmp.eq.s32.totalorder %s16, 0
    %p50 = por %p48, %p49
    %p51 = scmp.ne.s32.totalorder %s40, %s43
    %p52 = scmp.eq.s32.totalorder %s21, 3
    %p53 = por %p51, %p52
    %p54 = scmp.ne.s32.totalorder %s43, %s44
    %p55 = scmp.eq.s32.totalorder %s21, 0
    %p56 = por %p54, %p55
    %p57 = scmp.ne.s32.totalorder %s43, %s44
    %p58 = scmp.eq.s32.totalorder %s22, 3
    %p59 = por %p57, %p58
    %p61 = scmp.ne.s32.totalorder %s44, %s60
    %p62 = scmp.eq.s32.totalorder %s22, 0
    %p63 = por %p61, %p62
    %s64 = smul.u32 %s23, 2
    %s65 = sadd.s32 %s64, %s24
    %s66 = smul.u32 %s35, 2
    %s67 = sadd.s32 %s66, %s31
    %s68 = ssub.s32 %s65, %s67
    %p69 = scmp.eq.s32.totalorder %s68, 0
    %s71 = sadd.s32 %s70, 1
    %s72 = scalar_select %p69, %s70, %s71
    %p75 = pneg %p69
    %p76 = scmp.eq.s32.totalorder %s16, 3
    %p77 = por %p75, %p76
    %p78 = scmp.ne.s32.totalorder %s70, %s73
    %p79 = scmp.eq.s32.totalorder %s16, 0
    %p80 = por %p78, %p79
    %p81 = scmp.ne.s32.totalorder %s70, %s73
    %p82 = scmp.eq.s32.totalorder %s21, 3
    %p83 = por %p81, %p82
    %p84 = scmp.ne.s32.totalorder %s73, %s74
    %p85 = scmp.eq.s32.totalorder %s21, 0
    %p86 = por %p84, %p85
    %p87 = scmp.ne.s32.totalorder %s73, %s74
    %p88 = scmp.eq.s32.totalorder %s22, 3
    %p89 = por %p87, %p88
    %p91 = scmp.ne.s32.totalorder %s74, %s90
    %p92 = scmp.eq.s32.totalorder %s22, 0
    %p93 = por %p91, %p92
    %s95 = sadd.s32 %s94, 1
    %p98 = scmp.eq.s32.totalorder %s16, 3
    %p99 = scmp.ne.s32.totalorder %s94, %s96
    %p100 = scmp.eq.s32.totalorder %s16, 0
    %p101 = por %p99, %p100
    %p102 = scmp.ne.s32.totalorder %s94, %s96
    %p103 = scmp.eq.s32.totalorder %s21, 3
    %p104 = por %p102, %p103
    %p105 = scmp.ne.s32.totalorder %s96, %s97
    %p106 = scmp.eq.s32.totalorder %s21, 0
    %p107 = por %p105, %p106
    %p108 = scmp.ne.s32.totalorder %s96, %s97
    %p109 = scmp.eq.s32.totalorder %s22, 3
    %p110 = por %p108, %p109
    %p112 = scmp.ne.s32.totalorder %s97, %s111
    %p113 = scmp.eq.s32.totalorder %s22, 0
    %p114 = por %p112, %p113
    %s116 = sadd.s32 %s115, 1
    %p119 = scmp.eq.s32.totalorder %s16, 3
    %p120 = scmp.ne.s32.totalorder %s115, %s117
    %p121 = scmp.eq.s32.totalorder %s16, 0
    %p122 = por %p120, %p121
    %p123 = scmp.ne.s32.totalorder %s115, %s117
    %p124 = scmp.eq.s32.totalorder %s21, 3
    %p125 = por %p123, %p124
    %p126 = scmp.ne.s32.totalorder %s117, %s118
    %p127 = scmp.eq.s32.totalorder %s21, 0
    %p128 = por %p126, %p127
    %p129 = scmp.ne.s32.totalorder %s117, %s118
    %p130 = scmp.eq.s32.totalorder %s22, 3
    %p131 = por %p129, %p130
    %p133 = scmp.ne.s32.totalorder %s118, %s132
    %p134 = scmp.eq.s32.totalorder %s22, 0
    %p135 = por %p133, %p134
    %s137 = sadd.s32 %s136, 1
    %p140 = scmp.eq.s32.totalorder %s16, 3
    %p141 = scmp.ne.s32.totalorder %s136, %s138
    %p142 = scmp.eq.s32.totalorder %s16, 0
    %p143 = por %p141, %p142
    %p144 = scmp.ne.s32.totalorder %s136, %s138
    %p145 = scmp.eq.s32.totalorder %s21, 3
    %p146 = por %p144, %p145
    %p147 = scmp.ne.s32.totalorder %s138, %s139
    %p148 = scmp.eq.s32.totalorder %s21, 0
    %p149 = por %p147, %p148
    %p150 = scmp.ne.s32.totalorder %s138, %s139
    %p151 = scmp.eq.s32.totalorder %s22, 3
    %p152 = por %p150, %p151
    %p154 = scmp.ne.s32.totalorder %s139, %s153
    %p155 = scmp.eq.s32.totalorder %s22, 0
    %p156 = por %p154, %p155
    %s158 = sadd.s32 %s157, 1
    %p161 = scmp.eq.s32.totalorder %s16, 3
    %p162 = scmp.ne.s32.totalorder %s157, %s159
    %p163 = scmp.eq.s32.totalorder %s16, 0
    %p164 = por %p162, %p163
    %p165 = scmp.ne.s32.totalorder %s157, %s159
    %p166 = scmp.eq.s32.totalorder %s21, 3
    %p167 = por %p165, %p166
    %p168 = scmp.ne.s32.totalorder %s159, %s160
    %p169 = scmp.eq.s32.totalorder %s21, 0
    %p170 = por %p168, %p169
    %p171 = scmp.ne.s32.totalorder %s159, %s160
    %p172 = scmp.eq.s32.totalorder %s22, 3
    %p173 = por %p171, %p172
    %p175 = scmp.ne.s32.totalorder %s160, %s174
    %p176 = scmp.eq.s32.totalorder %s22, 0
    %p177 = por %p175, %p176
    %s179 = sadd.s32 %s178, 1
    %p182 = scmp.eq.s32.totalorder %s16, 3
    %p183 = scmp.ne.s32.totalorder %s178, %s180
    %p184 = scmp.eq.s32.totalorder %s16, 0
    %p185 = por %p183, %p184
    %p186 = scmp.ne.s32.totalorder %s178, %s180
    %p187 = scmp.eq.s32.totalorder %s21, 3
    %p188 = por %p186, %p187
    %p189 = scmp.ne.s32.totalorder %s180, %s181
    %p190 = scmp.eq.s32.totalorder %s21, 0
    %p191 = por %p189, %p190
    %p192 = scmp.ne.s32.totalorder %s180, %s181
    %p193 = scmp.eq.s32.totalorder %s22, 3
    %p194 = por %p192, %p193
    %p196 = scmp.ne.s32.totalorder %s181, %s195
    %p197 = scmp.eq.s32.totalorder %s22, 0
    %p198 = por %p196, %p197
    %s200 = sadd.s32 %s199, 1
    %p203 = scmp.eq.s32.totalorder %s16, 3
    %p204 = scmp.ne.s32.totalorder %s199, %s201
    %p205 = scmp.eq.s32.totalorder %s16, 0
    %p206 = por %p204, %p205
    %p207 = scmp.ne.s32.totalorder %s199, %s201
    %p208 = scmp.eq.s32.totalorder %s21, 3
    %p209 = por %p207, %p208
    %p210 = scmp.ne.s32.totalorder %s201, %s202
    %p211 = scmp.eq.s32.totalorder %s21, 0
    %p212 = por %p210, %p211
    %p213 = scmp.ne.s32.totalorder %s201, %s202
    %p214 = scmp.eq.s32.totalorder %s22, 3
    %p215 = por %p213, %p214
    %p217 = scmp.ne.s32.totalorder %s202, %s216
    %p218 = scmp.eq.s32.totalorder %s22, 0
    %p219 = por %p217, %p218
    %s221 = sadd.s32 %s220, 1
    %p224 = scmp.eq.s32.totalorder %s16, 3
    %p225 = scmp.ne.s32.totalorder %s220, %s222
    %p226 = scmp.eq.s32.totalorder %s16, 0
    %p227 = por %p225, %p226
    %p228 = scmp.ne.s32.totalorder %s220, %s222
    %p229 = scmp.eq.s32.totalorder %s21, 3
    %p230 = por %p228, %p229
    %p231 = scmp.ne.s32.totalorder %s222, %s223
    %p232 = scmp.eq.s32.totalorder %s21, 0
    %p233 = por %p231, %p232
    %p234 = scmp.ne.s32.totalorder %s222, %s223
    %p235 = scmp.eq.s32.totalorder %s22, 3
    %p236 = por %p234, %p235
    %p238 = scmp.ne.s32.totalorder %s223, %s237
    %p239 = scmp.eq.s32.totalorder %s22, 0
    %p240 = por %p238, %p239
    %s242 = sadd.s32 %s241, 1
    %p245 = scmp.eq.s32.totalorder %s16, 3
    %p246 = scmp.ne.s32.totalorder %s241, %s243
    %p247 = scmp.eq.s32.totalorder %s16, 0
    %p248 = por %p246, %p247
    %p249 = scmp.ne.s32.totalorder %s241, %s243
    %p250 = scmp.eq.s32.totalorder %s21, 3
    %p251 = por %p249, %p250
    %p252 = scmp.ne.s32.totalorder %s243, %s244
    %p253 = scmp.eq.s32.totalorder %s21, 0
    %p254 = por %p252, %p253
    %p255 = scmp.ne.s32.totalorder %s243, %s244
    %p256 = scmp.eq.s32.totalorder %s22, 3
    %p257 = por %p255, %p256
    %p259 = scmp.ne.s32.totalorder %s244, %s258
    %p260 = scmp.eq.s32.totalorder %s22, 0
    %p261 = por %p259, %p260
    %s262 = ssub.s32 %s23, %s35
    %s263 = ssub.s32 %s24, %s31
    %s264 = sor.u32 %s262, %s263
    %p265 = scmp.eq.s32.totalorder %s264, 0
    %s267 = sadd.s32 %s266, 1
    %s268 = scalar_select %p265, %s266, %s267
    %p271 = pneg %p265
    %p272 = scmp.eq.s32.totalorder %s16, 3
    %p273 = por %p271, %p272
    %p274 = scmp.ne.s32.totalorder %s266, %s269
    %p275 = scmp.eq.s32.totalorder %s16, 0
    %p276 = por %p274, %p275
    %p277 = scmp.ne.s32.totalorder %s266, %s269
    %p278 = scmp.eq.s32.totalorder %s21, 3
    %p279 = por %p277, %p278
    %p280 = scmp.ne.s32.totalorder %s269, %s270
    %p281 = scmp.eq.s32.totalorder %s21, 0
    %p282 = por %p280, %p281
    %p283 = scmp.ne.s32.totalorder %s269, %s270
    %p284 = scmp.eq.s32.totalorder %s22, 3
    %p285 = por %p283, %p284
    %p287 = scmp.ne.s32.totalorder %s270, %s286
    %p288 = scmp.eq.s32.totalorder %s22, 0
    %p289 = por %p287, %p288
    %p290 = scmp.le.s32.totalorder 1, %s16
    %p291 = scmp.lt.s32.totalorder %s16, 5
    %p292 = pnand %p290, %p291
    %p293 = pneg %p292
    // Predicated region
    $region9: #{resblock_forward.1} parent=5 // pred_check
      _
    $region10: #{resblock_forward.1} parent=5 // pred_check_branch
      %295 = sbr.rel (%p292) target = $region12
    $region11: #{resblock_forward.1} parent=5 // pred_region
      %s296 = ssub.s32 %s16, 1
      // Predicated region
      $region13: #{resblock_forward.1} parent=11 // pred_check
        %p297 = pneg %p107
      $region14: #{resblock_forward.1} parent=11 // pred_check_branch
        %299 = sbr.rel (%p297) target = $region16
      $region15: #{resblock_forward.1} parent=11 // pred_region
        _
      $region16: #{resblock_forward.1} parent=11 // pred_fallthru
        _
      // Predicated region
      $region17: #{resblock_forward.1} parent=11 // pred_check
        %p300 = pneg %p128
      $region18: #{resblock_forward.1} parent=11 // pred_check_branch
        %302 = sbr.rel (%p300) target = $region20
      $region19: #{resblock_forward.1} parent=11 // pred_region
        _
      $region20: #{resblock_forward.1} parent=11 // pred_fallthru
        _
      // Predicated region
      $region21: #{resblock_forward.1} parent=11 // pred_check
        %p303 = pneg %p149
      $region22: #{resblock_forward.1} parent=11 // pred_check_branch
        %305 = sbr.rel (%p303) target = $region24
      $region23: #{resblock_forward.1} parent=11 // pred_region
        _
      $region24: #{resblock_forward.1} parent=11 // pred_fallthru
        _
      // Predicated region
      $region25: #{resblock_forward.1} parent=11 // pred_check
        %p306 = pneg %p170
      $region26: #{resblock_forward.1} parent=11 // pred_check_branch
        %308 = sbr.rel (%p306) target = $region28
      $region27: #{resblock_forward.1} parent=11 // pred_region
        _
      $region28: #{resblock_forward.1} parent=11 // pred_fallthru
        _
      // Predicated region
      $region29: #{resblock_forward.1} parent=11 // pred_check
        %p309 = pneg %p191
      $region30: #{resblock_forward.1} parent=11 // pred_check_branch
        %311 = sbr.rel (%p309) target = $region32
      $region31: #{resblock_forward.1} parent=11 // pred_region
        _
      $region32: #{resblock_forward.1} parent=11 // pred_fallthru
        _
      // Predicated region
      $region33: #{resblock_forward.1} parent=11 // pred_check
        %p312 = pneg %p212
      $region34: #{resblock_forward.1} parent=11 // pred_check_branch
        %314 = sbr.rel (%p312) target = $region36
      $region35: #{resblock_forward.1} parent=11 // pred_region
        _
      $region36: #{resblock_forward.1} parent=11 // pred_fallthru
        _
      // Predicated region
      $region37: #{resblock_forward.1} parent=11 // pred_check
        %p315 = pneg %p233
      $region38: #{resblock_forward.1} parent=11 // pred_check_branch
        %317 = sbr.rel (%p315) target = $region40
      $region39: #{resblock_forward.1} parent=11 // pred_region
        _
      $region40: #{resblock_forward.1} parent=11 // pred_fallthru
        _
      // Predicated region
      $region41: #{resblock_forward.1} parent=11 // pred_check
        %p318 = pneg %p254
      $region42: #{resblock_forward.1} parent=11 // pred_check_branch
        %320 = sbr.rel (%p318) target = $region44
      $region43: #{resblock_forward.1} parent=11 // pred_region
        _
      $region44: #{resblock_forward.1} parent=11 // pred_fallthru
        _
    $region12: #{resblock_forward.1} parent=5 // pred_fallthru
      _
    %p321 = scmp.lt.s32.totalorder %s16, 4
    // Predicated region
    $region45: #{resblock_forward.1} parent=5 // pred_check
      %p322 = pneg %p321
    $region46: #{resblock_forward.1} parent=5 // pred_check_branch
      %324 = sbr.rel (%p322) target = $region48
    $region47: #{resblock_forward.1} parent=5 // pred_region
      // Predicated region
      $region49: #{resblock_forward.1} parent=47 // pred_check
        %p325 = pneg %p50
      $region50: #{resblock_forward.1} parent=47 // pred_check_branch
        %327 = sbr.rel (%p325) target = $region52
      $region51: #{resblock_forward.1} parent=47 // pred_region
        %s328 = smul.u32 8, %s24
        %p329 = scmp.lt.s32.totalorder %s23, 1
        %s330 = scalar_select %p329, %s23, 1
        %p331 = scmp.lt.s32.totalorder %s328, 15
        %s332 = scalar_select %p331, %s328, 15
        %s333 = smul.addr %s332, 2
        %s334 = smul.addr %s330, 32
        %s335 = sadd.s32 %s333, %s334
        %s336 = smul.addr %s335, 8
        %s337 = scalar_lea.vmem %s0, %s336
        %s338 = smul.u32 8, %s24
      $region52: #{resblock_forward.1} parent=47 // pred_fallthru
        _
      // Predicated region
      $region53: #{resblock_forward.1} parent=47 // pred_check
        %p339 = pneg %p80
      $region54: #{resblock_forward.1} parent=47 // pred_check_branch
        %341 = sbr.rel (%p339) target = $region56
      $region55: #{resblock_forward.1} parent=47 // pred_region
        %s342 = smul.u32 %s23, 2
        %s343 = sadd.s32 %s342, %s24
        %p344 = scmp.lt.s32.totalorder %s343, 3
        %s345 = scalar_select %p344, %s343, 3
        %s346 = smul.addr %s345, 4
        %s347 = smul.addr %s346, 8
        %s348 = scalar_lea.vmem %s1, %s347
        %s349 = smul.u32 %s23, 2
        %s350 = sadd.s32 %s349, %s24
      $region56: #{resblock_forward.1} parent=47 // pred_fallthru
        _
    $region48: #{resblock_forward.1} parent=5 // pred_fallthru
      _
    %p351 = scmp.le.s32.totalorder 1, %s16
    %p352 = scmp.lt.s32.totalorder %s16, 5
    %p353 = pnand %p351, %p352
    %p354 = pneg %p353
    // Predicated region
    $region57: #{resblock_forward.1} parent=5 // pred_check
      _
    $region58: #{resblock_forward.1} parent=5 // pred_check_branch
      %356 = sbr.rel (%p353) target = $region60
    $region59: #{resblock_forward.1} parent=5 // pred_region
      %s357 = ssub.s32 %s16, 1
      %s358 = smul.u32 8, %s26
      %p359 = scmp.lt.s32.totalorder %s25, 1
      %s360 = scalar_select %p359, %s25, 1
      %p361 = scmp.lt.s32.totalorder %s358, 15
      %s362 = scalar_select %p361, %s358, 15
      %s363 = smul.addr %s362, 2
      %s364 = smul.addr %s360, 32
      %s365 = sadd.s32 %s363, %s364
      %s366 = smul.addr %s365, 8
      %s367 = scalar_lea.vmem %s0, %s366
      %p368 = pneg %p56
      %p369 = pneg %p53
      %s370 = smul.u32 %s25, 2
      %s371 = sadd.s32 %s370, %s26
      %p372 = scmp.lt.s32.totalorder %s371, 3
      %s373 = scalar_select %p372, %s371, 3
      %s374 = smul.addr %s373, 4
      %s375 = smul.addr %s374, 8
      %s376 = scalar_lea.vmem %s1, %s375
      %p377 = pneg %p86
      %p378 = pneg %p83
      %p379 = pneg %p107
      %p380 = pneg %p104
      %p381 = pneg %p128
      %p382 = pneg %p125
      %p383 = pneg %p149
      %p384 = pneg %p146
      %p385 = pneg %p170
      %p386 = pneg %p167
      %p387 = pneg %p191
      %p388 = pneg %p188
      %p389 = pneg %p212
      %p390 = pneg %p209
      %p391 = pneg %p233
      %p392 = pneg %p230
      %p393 = pneg %p254
      %p394 = pneg %p251
      %p395 = pneg %p282
      %p396 = pneg %p279
      %s397 = smul.u32 8, %s26
      %p398 = scmp.lt.s32.totalorder %s25, 1
      %s399 = scalar_select %p398, %s25, 1
      %p400 = scmp.lt.s32.totalorder %s397, 15
      %s401 = scalar_select %p400, %s397, 15
      %s402 = smul.addr %s401, 2
      %s403 = smul.addr %s399, 32
      %s404 = sadd.s32 %s402, %s403
      %s405 = smul.addr %s404, 8
      %s406 = scalar_lea.vmem %s10, %s405
      %s407 = smul.u32 8, %s26
      %p408 = scmp.lt.s32.totalorder %s25, 1
      %s409 = scalar_select %p408, %s25, 1
      %p410 = scmp.lt.s32.totalorder %s407, 15
      %s411 = scalar_select %p410, %s407, 15
      %s412 = smul.addr %s411, 2
      %s413 = smul.addr %s409, 32
      %s414 = sadd.s32 %s412, %s413
      %s415 = smul.addr %s414, 8
      %s416 = scalar_lea.vmem %s0, %s415
      %s417 = smul.u32 8, %s26
      %s418 = smul.u32 %s25, 2
      %s419 = sadd.s32 %s418, %s26
      %p420 = scmp.lt.s32.totalorder %s419, 3
      %s421 = scalar_select %p420, %s419, 3
      %s422 = smul.addr %s421, 4
      %s423 = smul.addr %s422, 8
      %s424 = scalar_lea.vmem %s1, %s423
      %s425 = smul.u32 %s25, 2
      %s426 = sadd.s32 %s425, %s26
      %s427 = smul.u32 8, %s26
      %p428 = scmp.lt.s32.totalorder %s25, 1
      %s429 = scalar_select %p428, %s25, 1
      %p430 = scmp.lt.s32.totalorder %s427, 15
      %s431 = scalar_select %p430, %s427, 15
      %s432 = smul.addr %s431, 2
      %s433 = smul.addr %s429, 32
      %s434 = sadd.s32 %s432, %s433
      %s435 = smul.addr %s434, 8
      %s436 = scalar_lea.vmem %s10, %s435
      %s437 = smul.u32 8, %s26
      %v438 = vld [vmem:[%s4] sm:$0x1]
      %v439 = vld [vmem:[%s5] sm:$0x1]
      %v440 = vld [vmem:[%s416] sm:$0xff]
      %v441 = vld [vmem:[%s416 + $0x8] sm:$0xff]
      %v442 = vld [vmem:[%s416 + $0x10] sm:$0xff]
      %v443 = vld [vmem:[%s416 + $0x18] sm:$0xff]
      %v444 = vld [vmem:[%s416 + $0x20] sm:$0xff]
      %v445 = vld [vmem:[%s416 + $0x28] sm:$0xff]
      %v446 = vld [vmem:[%s416 + $0x30] sm:$0xff]
      %v447 = vld [vmem:[%s416 + $0x38] sm:$0xff]
      %v448 = vld [vmem:[%s416 + $0x40] sm:$0xff]
      %v449 = vld [vmem:[%s416 + $0x48] sm:$0xff]
      %v450 = vld [vmem:[%s416 + $0x50] sm:$0xff]
      %v451 = vld [vmem:[%s416 + $0x58] sm:$0xff]
      %v452 = vld [vmem:[%s416 + $0x60] sm:$0xff]
      %v453 = vld [vmem:[%s416 + $0x68] sm:$0xff]
      %v454 = vld [vmem:[%s416 + $0x70] sm:$0xff]
      %v455 = vld [vmem:[%s416 + $0x78] sm:$0xff]
      %v456 = vmax.f32 %v440, 0.0
      %v457 = vmax.f32 %v441, 0.0
      %v458 = vmax.f32 %v442, 0.0
      %v459 = vmax.f32 %v443, 0.0
      %v460 = vmax.f32 %v444, 0.0
      %v461 = vmax.f32 %v445, 0.0
      %v462 = vmax.f32 %v446, 0.0
      %v463 = vmax.f32 %v447, 0.0
      %v464 = vmax.f32 %v448, 0.0
      %v465 = vmax.f32 %v449, 0.0
      %v466 = vmax.f32 %v450, 0.0
      %v467 = vmax.f32 %v451, 0.0
      %v468 = vmax.f32 %v452, 0.0
      %v469 = vmax.f32 %v453, 0.0
      %v470 = vmax.f32 %v454, 0.0
      %v471 = vmax.f32 %v455, 0.0
      %v473 = vlaneseq
      %v474 = vshrl.u32 %v473, 7
      %v475 = vsub.s32 0, %v474
      %v476 = vrot.slane %v438, %v475
      %v478 = vmul.f32 %v456, %v476
      %v479 = vmul.f32 %v457, %v476
      %v480 = vmul.f32 %v458, %v476
      %v481 = vmul.f32 %v459, %v476
      %v482 = vmul.f32 %v460, %v476
      %v483 = vmul.f32 %v461, %v476
      %v484 = vmul.f32 %v462, %v476
      %v485 = vmul.f32 %v463, %v476
      %v486 = vmul.f32 %v464, %v476
      %v487 = vmul.f32 %v465, %v476
      %v488 = vmul.f32 %v466, %v476
      %v489 = vmul.f32 %v467, %v476
      %v490 = vmul.f32 %v468, %v476
      %v491 = vmul.f32 %v469, %v476
      %v492 = vmul.f32 %v470, %v476
      %v493 = vmul.f32 %v471, %v476
      %v495 = vlaneseq
      %v496 = vshrl.u32 %v495, 7
      %v497 = vsub.s32 0, %v496
      %v498 = vrot.slane %v439, %v497
      %v500 = vadd.f32 %v478, %v498
      %v501 = vadd.f32 %v479, %v498
      %v502 = vadd.f32 %v480, %v498
      %v503 = vadd.f32 %v481, %v498
      %v504 = vadd.f32 %v482, %v498
      %v505 = vadd.f32 %v483, %v498
      %v506 = vadd.f32 %v484, %v498
      %v507 = vadd.f32 %v485, %v498
      %v508 = vadd.f32 %v486, %v498
      %v509 = vadd.f32 %v487, %v498
      %v510 = vadd.f32 %v488, %v498
      %v511 = vadd.f32 %v489, %v498
      %v512 = vadd.f32 %v490, %v498
      %v513 = vadd.f32 %v491, %v498
      %v514 = vadd.f32 %v492, %v498
      %v515 = vadd.f32 %v493, %v498
      %v516 = vld [vmem:[%s424] sm:$0xff]
      %v517 = vld [vmem:[%s424 + $0x8] sm:$0xff]
      %v518 = vld [vmem:[%s424 + $0x10] sm:$0xff]
      %v519 = vld [vmem:[%s424 + $0x18] sm:$0xff]
      %v520 = vmax.f32 %v516, 0.0
      %v521 = vmax.f32 %v517, 0.0
      %v522 = vmax.f32 %v518, 0.0
      %v523 = vmax.f32 %v519, 0.0
      %v524 = vmul.f32 %v520, %v476
      %v525 = vmul.f32 %v521, %v476
      %v526 = vmul.f32 %v522, %v476
      %v527 = vmul.f32 %v523, %v476
      %v528 = vadd.f32 %v524, %v498
      %v529 = vadd.f32 %v525, %v498
      %v530 = vadd.f32 %v526, %v498
      %v531 = vadd.f32 %v527, %v498
      %p532 = scmp.gt.s32.totalorder %s26, 0
      %s533 = scalar_select %p532, 1.0, 0.0
      %p534 = scmp.lt.s32.totalorder %s26, 1
      %s535 = scalar_select %p534, 1.0, 0.0
      %s536 = scalar_lea.vmem [#allocation2], 24
      %vm537 = vcmask 31744
      %538 = vst.msk [vmem:[%s536 + $0x1] sm:$0xff] %vm537, %v500
      %539 = vst.msk [vmem:[%s536 + $0x9] sm:$0xff] %vm537, %v501
      %540 = vst.msk [vmem:[%s536 + $0x19] sm:$0xff] %vm537, %v502
      %541 = vst.msk [vmem:[%s536 + $0x21] sm:$0xff] %vm537, %v503
      %542 = vst.msk [vmem:[%s536 + $0x31] sm:$0xff] %vm537, %v504
      %543 = vst.msk [vmem:[%s536 + $0x39] sm:$0xff] %vm537, %v505
      %544 = vst.msk [vmem:[%s536 + $0x49] sm:$0xff] %vm537, %v506
      %545 = vst.msk [vmem:[%s536 + $0x51] sm:$0xff] %vm537, %v507
      %546 = vst.msk [vmem:[%s536 + $0x61] sm:$0xff] %vm537, %v508
      %547 = vst.msk [vmem:[%s536 + $0x69] sm:$0xff] %vm537, %v509
      %548 = vst.msk [vmem:[%s536 + $0x79] sm:$0xff] %vm537, %v510
      %549 = vst.msk [vmem:[%s536 + $0x81] sm:$0xff] %vm537, %v511
      %550 = vst.msk [vmem:[%s536 + $0x91] sm:$0xff] %vm537, %v512
      %551 = vst.msk [vmem:[%s536 + $0x99] sm:$0xff] %vm537, %v513
      %552 = vst.msk [vmem:[%s536 + $0xa9] sm:$0xff] %vm537, %v514
      %553 = vst.msk [vmem:[%s536 + $0xb1] sm:$0xff] %vm537, %v515
      %v554 = vstv %s533
      %v555 = vmul.f32 %v528, %v554
      %v556 = vmul.f32 %v529, %v554
      %557 = vst.msk [vmem:[#allocation2 + $0x1] sm:$0xff] %vm537, %v555
      %558 = vst.msk [vmem:[#allocation2 + $0x9] sm:$0xff] %vm537, %v556
      %v559 = vstv %s535
      %v560 = vmul.f32 %v530, %v559
      %v561 = vmul.f32 %v531, %v559
      %s562 = scalar_lea.vmem [#allocation2], 216
      %563 = vst.msk [vmem:[%s562 + $0x1] sm:$0xff] %vm537, %v560
      %564 = vst.msk [vmem:[%s562 + $0x9] sm:$0xff] %vm537, %v561
      %vm565 = vcmask 24576
      %566 = vst.msk [vmem:[#allocation2] sm:$0x1] %vm565, 0.0
      %567 = vst.msk [vmem:[#allocation2 + $0x18] sm:$0x1] %vm565, 0.0
      %568 = vst.msk [vmem:[#allocation2 + $0x30] sm:$0x1] %vm565, 0.0
      %569 = vst.msk [vmem:[#allocation2 + $0x48] sm:$0x1] %vm565, 0.0
      %570 = vst.msk [vmem:[#allocation2 + $0x60] sm:$0x1] %vm565, 0.0
      %571 = vst.msk [vmem:[#allocation2 + $0x78] sm:$0x1] %vm565, 0.0
      %572 = vst.msk [vmem:[#allocation2 + $0x90] sm:$0x1] %vm565, 0.0
      %573 = vst.msk [vmem:[#allocation2 + $0xa8] sm:$0x1] %vm565, 0.0
      %574 = vst.msk [vmem:[#allocation2 + $0xc0] sm:$0x1] %vm565, 0.0
      %575 = vst.msk [vmem:[#allocation2 + $0xd8] sm:$0x1] %vm565, 0.0
      %576 = vst.msk [vmem:[#allocation2 + $0x11] sm:$0x1] %vm565, 0.0
      %577 = vst.msk [vmem:[#allocation2 + $0x29] sm:$0x1] %vm565, 0.0
      %578 = vst.msk [vmem:[#allocation2 + $0x41] sm:$0x1] %vm565, 0.0
      %579 = vst.msk [vmem:[#allocation2 + $0x59] sm:$0x1] %vm565, 0.0
      %580 = vst.msk [vmem:[#allocation2 + $0x71] sm:$0x1] %vm565, 0.0
      %581 = vst.msk [vmem:[#allocation2 + $0x89] sm:$0x1] %vm565, 0.0
      %582 = vst.msk [vmem:[#allocation2 + $0xa1] sm:$0x1] %vm565, 0.0
      %583 = vst.msk [vmem:[#allocation2 + $0xb9] sm:$0x1] %vm565, 0.0
      %584 = vst.msk [vmem:[#allocation2 + $0xd1] sm:$0x1] %vm565, 0.0
      %585 = vst.msk [vmem:[#allocation2 + $0xe9] sm:$0x1] %vm565, 0.0
      %v586 = vld [vmem:[#allocation2] sm:$0xff]
      %v587 = vld [vmem:[#allocation2 + $0x8] sm:$0xff]
      %v588 = vld [vmem:[#allocation2 + $0x18] sm:$0xff]
      %v589 = vld [vmem:[#allocation2 + $0x20] sm:$0xff]
      %v590 = vld [vmem:[#allocation2 + $0x30] sm:$0xff]
      %v591 = vld [vmem:[#allocation2 + $0x38] sm:$0xff]
      %v592 = vld [vmem:[#allocation2 + $0x48] sm:$0xff]
      %v593 = vld [vmem:[#allocation2 + $0x50] sm:$0xff]
      %v594 = vld [vmem:[#allocation2 + $0x60] sm:$0xff]
      %v595 = vld [vmem:[#allocation2 + $0x68] sm:$0xff]
      %v596 = vld [vmem:[#allocation2 + $0x78] sm:$0xff]
      %v597 = vld [vmem:[#allocation2 + $0x80] sm:$0xff]
      %v598 = vld [vmem:[#allocation2 + $0x90] sm:$0xff]
      %v599 = vld [vmem:[#allocation2 + $0x98] sm:$0xff]
      %v600 = vld [vmem:[#allocation2 + $0xa8] sm:$0xff]
      %v601 = vld [vmem:[#allocation2 + $0xb0] sm:$0xff]
      %v602 = vld [vmem:[%s2] sm:$0xf]
      %v603 = vld [vmem:[#allocation2 + $0x1] sm:$0xff]
      %v604 = vld [vmem:[#allocation2 + $0x9] sm:$0xff]
      %v605 = vld [vmem:[#allocation2 + $0x19] sm:$0xff]
      %v606 = vld [vmem:[#allocation2 + $0x21] sm:$0xff]
      %v607 = vld [vmem:[#allocation2 + $0x31] sm:$0xff]
      %v608 = vld [vmem:[#allocation2 + $0x39] sm:$0xff]
      %v609 = vld [vmem:[#allocation2 + $0x49] sm:$0xff]
      %v610 = vld [vmem:[#allocation2 + $0x51] sm:$0xff]
      %v611 = vld [vmem:[#allocation2 + $0x61] sm:$0xff]
      %v612 = vld [vmem:[#allocation2 + $0x69] sm:$0xff]
      %v613 = vld [vmem:[#allocation2 + $0x79] sm:$0xff]
      %v614 = vld [vmem:[#allocation2 + $0x81] sm:$0xff]
      %v615 = vld [vmem:[#allocation2 + $0x91] sm:$0xff]
      %v616 = vld [vmem:[#allocation2 + $0x99] sm:$0xff]
      %v617 = vld [vmem:[#allocation2 + $0xa9] sm:$0xff]
      %v618 = vld [vmem:[#allocation2 + $0xb1] sm:$0xff]
      %s619 = scalar_lea.vmem %s2, 4
      %v620 = vld [vmem:[%s619] sm:$0xf]
      %v622 = vsel %vm537, %v603, 0
      %v625 = vsel %vm537, %v604, 0
      %v628 = vsel %vm537, %v605, 0
      %v631 = vsel %vm537, %v606, 0
      %v634 = vsel %vm537, %v607, 0
      %v637 = vsel %vm537, %v608, 0
      %v640 = vsel %vm537, %v609, 0
      %v643 = vsel %vm537, %v610, 0
      %v646 = vsel %vm537, %v611, 0
      %v649 = vsel %vm537, %v612, 0
      %v652 = vsel %vm537, %v613, 0
      %v655 = vsel %vm537, %v614, 0
      %v658 = vsel %vm537, %v615, 0
      %v661 = vsel %vm537, %v616, 0
      %v664 = vsel %vm537, %v617, 0
      %v667 = vsel %vm537, %v618, 0
      %vm669 = vcmask 1043456
      %v671 = vsel %vm669, %v620, 0
      %673 = vmatprep.subr.mxu0 0.0
      %674 = vmatpush1.msra.mxu0 %v671
      %675 = vmatprep.subr.mxu0 0.0
      %676 = vmatpush1.msra.mxu0 0.0
      %677 = vmatprep.subr.mxu0 0.0
      %678 = vmatpush1.msra.mxu0 0.0
      %679 = vmatprep.subr.mxu0 0.0
      %680 = vmatpush1.msra.mxu0 0.0
      %681 = vmatprep.subr.mxu0 0.0
      %682 = vmatpush1.msra.mxu0 0.0
      %683 = vmatprep.subr.mxu0 0.0
      %684 = vmatpush1.msra.mxu0 0.0
      %685 = vmatprep.subr.mxu0 0.0
      %686 = vmatpush1.msra.mxu0 0.0
      %687 = vmatprep.subr.mxu0 0.0
      %688 = vmatpush1.msra.mxu0 0.0
      %689 = vmatprep.subr.mxu0 0.0
      %690 = vmatpush1.msra.mxu0 0.0
      %691 = vmatprep.subr.mxu0 0.0
      %692 = vmatpush1.msra.mxu0 0.0
      %693 = vmatprep.subr.mxu0 0.0
      %694 = vmatpush1.msra.mxu0 0.0
      %695 = vmatprep.subr.mxu0 0.0
      %696 = vmatpush1.msra.mxu0 0.0
      %697 = vmatprep.subr.mxu0 0.0
      %698 = vmatpush1.msra.mxu0 0.0
      %699 = vmatprep.subr.mxu0 0.0
      %700 = vmatpush1.msra.mxu0 0.0
      %701 = vmatprep.subr.mxu0 0.0
      %702 = vmatpush1.msra.mxu0 0.0
      %703 = vmatprep.subr.mxu0 0.0
      %704 = vmatpush1.msra.mxu0 0.0
      %705 = vmatprep.subr.mxu0 0.0
      %706 = vmatpush1.msra.mxu0 0.0
      %707 = vmatprep.subr.mxu0 0.0
      %708 = vmatpush1.msra.mxu0 0.0
      %709 = vmatprep.subr.mxu0 0.0
      %710 = vmatpush1.msra.mxu0 0.0
      %711 = vmatprep.subr.mxu0 0.0
      %712 = vmatpush1.msra.mxu0 0.0
      %713 = vmatprep.subr.mxu0 0.0
      %714 = vmatpush1.msra.mxu0 0.0
      %715 = vmatprep.subr.mxu0 0.0
      %716 = vmatpush1.msra.mxu0 0.0
      %717 = vmatprep.subr.mxu0 0.0
      %718 = vmatpush1.msra.mxu0 0.0
      %719 = vmatprep.subr.mxu0 0.0
      %720 = vmatpush1.msra.mxu0 0.0
      %721 = vmatprep.subr.mxu0 0.0
      %722 = vmatpush1.msra.mxu0 0.0
      %723 = vmatprep.subr.mxu0 0.0
      %724 = vmatpush1.msra.mxu0 0.0
      %725 = vmatprep.subr.mxu0 0.0
      %726 = vmatpush1.msra.mxu0 0.0
      %727 = vmatprep.subr.mxu0 0.0
      %728 = vmatpush1.msra.mxu0 0.0
      %729 = vmatprep.subr.mxu0 0.0
      %730 = vmatpush1.msra.mxu0 0.0
      %731 = vmatprep.subr.mxu0 0.0
      %732 = vmatpush1.msra.mxu0 0.0
      %733 = vmatprep.subr.mxu0 0.0
      %734 = vmatpush1.msra.mxu0 0.0
      %735 = vmatprep.subr.mxu0 0.0
      %736 = vmatpush1.msra.mxu0 0.0
      %737 = vmatprep.mubr.f32.mxu0 0.0
      %738 = vmatmul.mubr.f32.gmra.mrb[0].mxu0 %v622
      %v739 = vpop.f32.mrb[0].mxu0
      %v740 = vadd.f32 0.0, %v739
      %v741 = vpop.f32.mrb[0].mxu0
      %742 = vmatprep.mubr.f32.mxu0 0.0
      %743 = vmatmul.mubr.f32.gmra.mrb[0].mxu0 %v625
      %v744 = vpop.f32.mrb[0].mxu0
      %v745 = vadd.f32 0.0, %v744
      %v746 = vpop.f32.mrb[0].mxu0
      %747 = vmatprep.mubr.f32.mxu0 0.0
      %748 = vmatmul.mubr.f32.gmra.mrb[0].mxu0 %v628
      %v749 = vpop.f32.mrb[0].mxu0
      %v750 = vadd.f32 0.0, %v749
      %v751 = vpop.f32.mrb[0].mxu0
      %752 = vmatprep.mubr.f32.mxu0 0.0
      %753 = vmatmul.mubr.f32.gmra.mrb[0].mxu0 %v631
      %v754 = vpop.f32.mrb[0].mxu0
      %v755 = vadd.f32 0.0, %v754
      %v756 = vpop.f32.mrb[0].mxu0
      %757 = vmatprep.mubr.f32.mxu0 0.0
      %758 = vmatmul.mubr.f32.gmra.mrb[0].mxu0 %v634
      %v759 = vpop.f32.mrb[0].mxu0
      %v760 = vadd.f32 0.0, %v759
      %v761 = vpop.f32.mrb[0].mxu0
      %762 = vmatprep.mubr.f32.mxu0 0.0
      %763 = vmatmul.mubr.f32.gmra.mrb[0].mxu0 %v637
      %v764 = vpop.f32.mrb[0].mxu0
      %v765 = vadd.f32 0.0, %v764
      %v766 = vpop.f32.mrb[0].mxu0
      %767 = vmatprep.mubr.f32.mxu0 0.0
      %768 = vmatmul.mubr.f32.gmra.mrb[0].mxu0 %v640
      %v769 = vpop.f32.mrb[0].mxu0
      %v770 = vadd.f32 0.0, %v769
      %v771 = vpop.f32.mrb[0].mxu0
      %772 = vmatprep.mubr.f32.mxu0 0.0
      %773 = vmatmul.mubr.f32.gmra.mrb[0].mxu0 %v643
      %v774 = vpop.f32.mrb[0].mxu0
      %v775 = vadd.f32 0.0, %v774
      %v776 = vpop.f32.mrb[0].mxu0
      %777 = vmatprep.mubr.f32.mxu0 0.0
      %778 = vmatmul.mubr.f32.gmra.mrb[0].mxu0 %v646
      %v779 = vpop.f32.mrb[0].mxu0
      %v780 = vadd.f32 0.0, %v779
      %v781 = vpop.f32.mrb[0].mxu0
      %782 = vmatprep.mubr.f32.mxu0 0.0
      %783 = vmatmul.mubr.f32.gmra.mrb[0].mxu0 %v649
      %v784 = vpop.f32.mrb[0].mxu0
      %v785 = vadd.f32 0.0, %v784
      %v786 = vpop.f32.mrb[0].mxu0
      %787 = vmatprep.mubr.f32.mxu0 0.0
      %788 = vmatmul.mubr.f32.gmra.mrb[0].mxu0 %v652
      %v789 = vpop.f32.mrb[0].mxu0
      %v790 = vadd.f32 0.0, %v789
      %v791 = vpop.f32.mrb[0].mxu0
      %792 = vmatprep.mubr.f32.mxu0 0.0
      %793 = vmatmul.mubr.f32.gmra.mrb[0].mxu0 %v655
      %v794 = vpop.f32.mrb[0].mxu0
      %v795 = vadd.f32 0.0, %v794
      %v796 = vpop.f32.mrb[0].mxu0
      %797 = vmatprep.mubr.f32.mxu0 0.0
      %798 = vmatmul.mubr.f32.gmra.mrb[0].mxu0 %v658
      %v799 = vpop.f32.mrb[0].mxu0
      %v800 = vadd.f32 0.0, %v799
      %v801 = vpop.f32.mrb[0].mxu0
      %802 = vmatprep.mubr.f32.mxu0 0.0
      %803 = vmatmul.mubr.f32.gmra.mrb[0].mxu0 %v661
      %v804 = vpop.f32.mrb[0].mxu0
      %v805 = vadd.f32 0.0, %v804
      %v806 = vpop.f32.mrb[0].mxu0
      %807 = vmatprep.mubr.f32.mxu0 0.0
      %808 = vmatmul.mubr.f32.gmra.mrb[0].mxu0 %v664
      %v809 = vpop.f32.mrb[0].mxu0
      %v810 = vadd.f32 0.0, %v809
      %v811 = vpop.f32.mrb[0].mxu0
      %812 = vmatprep.mubr.f32.mxu0 0.0
      %813 = vmatmul.mubr.f32.gmra.mrb[0].mxu0 %v667
      %v814 = vpop.f32.mrb[0].mxu0
      %v815 = vadd.f32 0.0, %v814
      %v816 = vpop.f32.mrb[0].mxu0
      %817 = vdwg.mxu0
      %v819 = vsel %vm537, %v586, 0
      %v822 = vsel %vm537, %v587, 0
      %v825 = vsel %vm537, %v588, 0
      %v828 = vsel %vm537, %v589, 0
      %v831 = vsel %vm537, %v590, 0
      %v834 = vsel %vm537, %v591, 0
      %v837 = vsel %vm537, %v592, 0
      %v840 = vsel %vm537, %v593, 0
      %v843 = vsel %vm537, %v594, 0
      %v846 = vsel %vm537, %v595, 0
      %v849 = vsel %vm537, %v596, 0
      %v852 = vsel %vm537, %v597, 0
      %v855 = vsel %vm537, %v598, 0
      %v858 = vsel %vm537, %v599, 0
      %v861 = vsel %vm537, %v600, 0
      %v864 = vsel %vm537, %v601, 0
      %v867 = vsel %vm669, %v602, 0
      %869 = vmatprep.subr.mxu0 0.0
      %870 = vmatpush1.msra.mxu0 %v867
      %871 = vmatprep.subr.mxu0 0.0
      %872 = vmatpush1.msra.mxu0 0.0
      %873 = vmatprep.subr.mxu0 0.0
      %874 = vmatpush1.msra.mxu0 0.0
      %875 = vmatprep.subr.mxu0 0.0
      %876 = vmatpush1.msra.mxu0 0.0
      %877 = vmatprep.subr.mxu0 0.0
      %878 = vmatpush1.msra.mxu0 0.0
      %879 = vmatprep.subr.mxu0 0.0
      %880 = vmatpush1.msra.mxu0 0.0
      %881 = vmatprep.subr.mxu0 0.0
      %882 = vmatpush1.msra.mxu0 0.0
      %883 = vmatprep.subr.mxu0 0.0
      %884 = vmatpush1.msra.mxu0 0.0
      %885 = vmatprep.subr.mxu0 0.0
      %886 = vmatpush1.msra.mxu0 0.0
      %887 = vmatprep.subr.mxu0 0.0
      %888 = vmatpush1.msra.mxu0 0.0
      %889 = vmatprep.subr.mxu0 0.0
      %890 = vmatpush1.msra.mxu0 0.0
      %891 = vmatprep.subr.mxu0 0.0
      %892 = vmatpush1.msra.mxu0 0.0
      %893 = vmatprep.subr.mxu0 0.0
      %894 = vmatpush1.msra.mxu0 0.0
      %895 = vmatprep.subr.mxu0 0.0
      %896 = vmatpush1.msra.mxu0 0.0
      %897 = vmatprep.subr.mxu0 0.0
      %898 = vmatpush1.msra.mxu0 0.0
      %899 = vmatprep.subr.mxu0 0.0
      %900 = vmatpush1.msra.mxu0 0.0
      %901 = vmatprep.subr.mxu0 0.0
      %902 = vmatpush1.msra.mxu0 0.0
      %903 = vmatprep.subr.mxu0 0.0
      %904 = vmatpush1.msra.mxu0 0.0
      %905 = vmatprep.subr.mxu0 0.0
      %906 = vmatpush1.msra.mxu0 0.0
      %907 = vmatprep.subr.mxu0 0.0
      %908 = vmatpush1.msra.mxu0 0.0
      %909 = vmatprep.subr.mxu0 0.0
      %910 = vmatpush1.msra.mxu0 0.0
      %911 = vmatprep.subr.mxu0 0.0
      %912 = vmatpush1.msra.mxu0 0.0
      %913 = vmatprep.subr.mxu0 0.0
      %914 = vmatpush1.msra.mxu0 0.0
      %915 = vmatprep.subr.mxu0 0.0
      %916 = vmatpush1.msra.mxu0 0.0
      %917 = vmatprep.subr.mxu0 0.0
      %918 = vmatpush1.msra.mxu0 0.0
      %919 = vmatprep.subr.mxu0 0.0
      %920 = vmatpush1.msra.mxu0 0.0
      %921 = vmatprep.subr.mxu0 0.0
      %922 = vmatpush1.msra.mxu0 0.0
      %923 = vmatprep.subr.mxu0 0.0
      %924 = vmatpush1.msra.mxu0 0.0
      %925 = vmatprep.subr.mxu0 0.0
      %926 = vmatpush1.msra.mxu0 0.0
      %927 = vmatprep.subr.mxu0 0.0
      %928 = vmatpush1.msra.mxu0 0.0
      %929 = vmatprep.subr.mxu0 0.0
      %930 = vmatpush1.msra.mxu0 0.0
      %931 = vmatprep.subr.mxu0 0.0
      %932 = vmatpush1.msra.mxu0 0.0
      %933 = vmatprep.mubr.f32.mxu0 0.0
      %934 = vmatmul.mubr.f32.gmra.mrb[0].mxu0 %v819
      %v935 = vpop.f32.mrb[0].mxu0
      %v936 = vadd.f32 %v740, %v935
      %v937 = vpop.f32.mrb[0].mxu0
      %938 = vmatprep.mubr.f32.mxu0 0.0
      %939 = vmatmul.mubr.f32.gmra.mrb[0].mxu0 %v822
      %v940 = vpop.f32.mrb[0].mxu0
      %v941 = vadd.f32 %v745, %v940
      %v942 = vpop.f32.mrb[0].mxu0
      %943 = vmatprep.mubr.f32.mxu0 0.0
      %944 = vmatmul.mubr.f32.gmra.mrb[0].mxu0 %v825
      %v945 = vpop.f32.mrb[0].mxu0
      %v946 = vadd.f32 %v750, %v945
      %v947 = vpop.f32.mrb[0].mxu0
      %948 = vmatprep.mubr.f32.mxu0 0.0
      %949 = vmatmul.mubr.f32.gmra.mrb[0].mxu0 %v828
      %v950 = vpop.f32.mrb[0].mxu0
      %v951 = vadd.f32 %v755, %v950
      %v952 = vpop.f32.mrb[0].mxu0
      %953 = vmatprep.mubr.f32.mxu0 0.0
      %954 = vmatmul.mubr.f32.gmra.mrb[0].mxu0 %v831
      %v955 = vpop.f32.mrb[0].mxu0
      %v956 = vadd.f32 %v760, %v955
      %v957 = vpop.f32.mrb[0].mxu0
      %958 = vmatprep.mubr.f32.mxu0 0.0
      %959 = vmatmul.mubr.f32.gmra.mrb[0].mxu0 %v834
      %v960 = vpop.f32.mrb[0].mxu0
      %v961 = vadd.f32 %v765, %v960
      %v962 = vpop.f32.mrb[0].mxu0
      %963 = vmatprep.mubr.f32.mxu0 0.0
      %964 = vmatmul.mubr.f32.gmra.mrb[0].mxu0 %v837
      %v965 = vpop.f32.mrb[0].mxu0
      %v966 = vadd.f32 %v770, %v965
      %v967 = vpop.f32.mrb[0].mxu0
      %968 = vmatprep.mubr.f32.mxu0 0.0
      %969 = vmatmul.mubr.f32.gmra.mrb[0].mxu0 %v840
      %v970 = vpop.f32.mrb[0].mxu0
      %v971 = vadd.f32 %v775, %v970
      %v972 = vpop.f32.mrb[0].mxu0
      %973 = vmatprep.mubr.f32.mxu0 0.0
      %974 = vmatmul.mubr.f32.gmra.mrb[0].mxu0 %v843
      %v975 = vpop.f32.mrb[0].mxu0
      %v976 = vadd.f32 %v780, %v975
      %v977 = vpop.f32.mrb[0].mxu0
      %978 = vmatprep.mubr.f32.mxu0 0.0
      %979 = vmatmul.mubr.f32.gmra.mrb[0].mxu0 %v846
      %v980 = vpop.f32.mrb[0].mxu0
      %v981 = vadd.f32 %v785, %v980
      %v982 = vpop.f32.mrb[0].mxu0
      %983 = vmatprep.mubr.f32.mxu0 0.0
      %984 = vmatmul.mubr.f32.gmra.mrb[0].mxu0 %v849
      %v985 = vpop.f32.mrb[0].mxu0
      %v986 = vadd.f32 %v790, %v985
      %v987 = vpop.f32.mrb[0].mxu0
      %988 = vmatprep.mubr.f32.mxu0 0.0
      %989 = vmatmul.mubr.f32.gmra.mrb[0].mxu0 %v852
      %v990 = vpop.f32.mrb[0].mxu0
      %v991 = vadd.f32 %v795, %v990
      %v992 = vpop.f32.mrb[0].mxu0
      %993 = vmatprep.mubr.f32.mxu0 0.0
      %994 = vmatmul.mubr.f32.gmra.mrb[0].mxu0 %v855
      %v995 = vpop.f32.mrb[0].mxu0
      %v996 = vadd.f32 %v800, %v995
      %v997 = vpop.f32.mrb[0].mxu0
      %998 = vmatprep.mubr.f32.mxu0 0.0
      %999 = vmatmul.mubr.f32.gmra.mrb[0].mxu0 %v858
      %v1000 = vpop.f32.mrb[0].mxu0
      %v1001 = vadd.f32 %v805, %v1000
      %v1002 = vpop.f32.mrb[0].mxu0
      %1003 = vmatprep.mubr.f32.mxu0 0.0
      %1004 = vmatmul.mubr.f32.gmra.mrb[0].mxu0 %v861
      %v1005 = vpop.f32.mrb[0].mxu0
      %v1006 = vadd.f32 %v810, %v1005
      %v1007 = vpop.f32.mrb[0].mxu0
      %1008 = vmatprep.mubr.f32.mxu0 0.0
      %1009 = vmatmul.mubr.f32.gmra.mrb[0].mxu0 %v864
      %v1010 = vpop.f32.mrb[0].mxu0
      %v1011 = vadd.f32 %v815, %v1010
      %v1012 = vpop.f32.mrb[0].mxu0
      %1013 = vdwg.mxu0
      %v1014 = vld [vmem:[#allocation2 + $0x2] sm:$0xff]
      %v1015 = vld [vmem:[#allocation2 + $0xa] sm:$0xff]
      %v1016 = vld [vmem:[#allocation2 + $0x1a] sm:$0xff]
      %v1017 = vld [vmem:[#allocation2 + $0x22] sm:$0xff]
      %v1018 = vld [vmem:[#allocation2 + $0x32] sm:$0xff]
      %v1019 = vld [vmem:[#allocation2 + $0x3a] sm:$0xff]
      %v1020 = vld [vmem:[#allocation2 + $0x4a] sm:$0xff]
      %v1021 = vld [vmem:[#allocation2 + $0x52] sm:$0xff]
      %v1022 = vld [vmem:[#allocation2 + $0x62] sm:$0xff]
      %v1023 = vld [vmem:[#allocation2 + $0x6a] sm:$0xff]
      %v1024 = vld [vmem:[#allocation2 + $0x7a] sm:$0xff]
      %v1025 = vld [vmem:[#allocation2 + $0x82] sm:$0xff]
      %v1026 = vld [vmem:[#allocation2 + $0x92] sm:$0xff]
      %v1027 = vld [vmem:[#allocation2 + $0x9a] sm:$0xff]
      %v1028 = vld [vmem:[#allocation2 + $0xaa] sm:$0xff]
      %v1029 = vld [vmem:[#allocation2 + $0xb2] sm:$0xff]
      %s1030 = scalar_lea.vmem %s2, 8
      %v1031 = vld [vmem:[%s1030] sm:$0xf]
      %v1033 = vsel %vm537, %v1014, 0
      %v1036 = vsel %vm537, %v1015, 0
      %v1039 = vsel %vm537, %v1016, 0
      %v1042 = vsel %vm537, %v1017, 0
      %v1045 = vsel %vm537, %v1018, 0
      %v1048 = vsel %vm537, %v1019, 0
      %v1051 = vsel %vm537, %v1020, 0
      %v1054 = vsel %vm537, %v1021, 0
      %v1057 = vsel %vm537, %v1022, 0
      %v1060 = vsel %vm537, %v1023, 0
      %v1063 = vsel %vm537, %v1024, 0
      %v1066 = vsel %vm537, %v1025, 0
      %v1069 = vsel %vm537, %v1026, 0
      %v1072 = vsel %vm537, %v1027, 0
      %v1075 = vsel %vm537, %v1028, 0
      %v1078 = vsel %vm537, %v1029, 0
      %v1081 = vsel %vm669, %v1031, 0
      %1083 = vmatprep.subr.mxu0 0.0
      %1084 = vmatpush1.msra.mxu0 %v1081
      %1085 = vmatprep.subr.mxu0 0.0
      %1086 = vmatpush1.msra.mxu0 0.0
      %1087 = vmatprep.subr.mxu0 0.0
      %1088 = vmatpush1.msra.mxu0 0.0
      %1089 = vmatprep.subr.mxu0 0.0
      %1090 = vmatpush1.msra.mxu0 0.0
      %1091 = vmatprep.subr.mxu0 0.0
      %1092 = vmatpush1.msra.mxu0 0.0
      %1093 = vmatprep.subr.mxu0 0.0
      %1094 = vmatpush1.msra.mxu0 0.0
      %1095 = vmatprep.subr.mxu0 0.0
      %1096 = vmatpush1.msra.mxu0 0.0
      %1097 = vmatprep.subr.mxu0 0.0
      %1098 = vmatpush1.msra.mxu0 0.0
      %1099 = vmatprep.subr.mxu0 0.0
      %1100 = vmatpush1.msra.mxu0 0.0
      %1101 = vmatprep.subr.mxu0 0.0
      %1102 = vmatpush1.msra.mxu0 0.0
      %1103 = vmatprep.subr.mxu0 0.0
      %1104 = vmatpush1.msra.mxu0 0.0
      %1105 = vmatprep.subr.mxu0 0.0
      %1106 = vmatpush1.msra.mxu0 0.0
      %1107 = vmatprep.subr.mxu0 0.0
      %1108 = vmatpush1.msra.mxu0 0.0
      %1109 = vmatprep.subr.mxu0 0.0
      %1110 = vmatpush1.msra.mxu0 0.0
      %1111 = vmatprep.subr.mxu0 0.0
      %1112 = vmatpush1.msra.mxu0 0.0
      %1113 = vmatprep.subr.mxu0 0.0
      %1114 = vmatpush1.msra.mxu0 0.0
      %1115 = vmatprep.subr.mxu0 0.0
      %1116 = vmatpush1.msra.mxu0 0.0
      %1117 = vmatprep.subr.mxu0 0.0
      %1118 = vmatpush1.msra.mxu0 0.0
      %1119 = vmatprep.subr.mxu0 0.0
      %1120 = vmatpush1.msra.mxu0 0.0
      %1121 = vmatprep.subr.mxu0 0.0
      %1122 = vmatpush1.msra.mxu0 0.0
      %1123 = vmatprep.subr.mxu0 0.0
      %1124 = vmatpush1.msra.mxu0 0.0
      %1125 = vmatprep.subr.mxu0 0.0
      %1126 = vmatpush1.msra.mxu0 0.0
      %1127 = vmatprep.subr.mxu0 0.0
      %1128 = vmatpush1.msra.mxu0 0.0
      %1129 = vmatprep.subr.mxu0 0.0
      %1130 = vmatpush1.msra.mxu0 0.0
      %1131 = vmatprep.subr.mxu0 0.0
      %1132 = vmatpush1.msra.mxu0 0.0
      %1133 = vmatprep.subr.mxu0 0.0
      %1134 = vmatpush1.msra.mxu0 0.0
      %1135 = vmatprep.subr.mxu0 0.0
      %1136 = vmatpush1.msra.mxu0 0.0
      %1137 = vmatprep.subr.mxu0 0.0
      %1138 = vmatpush1.msra.mxu0 0.0
      %1139 = vmatprep.subr.mxu0 0.0
      %1140 = vmatpush1.msra.mxu0 0.0
      %1141 = vmatprep.subr.mxu0 0.0
      %1142 = vmatpush1.msra.mxu0 0.0
      %1143 = vmatprep.subr.mxu0 0.0
      %1144 = vmatpush1.msra.mxu0 0.0
      %1145 = vmatprep.subr.mxu0 0.0
      %1146 = vmatpush1.msra.mxu0 0.0
      %1147 = vmatprep.mubr.f32.mxu0 0.0
      %1148 = vmatmul.mubr.f32.gmra.mrb[0].mxu0 %v1033
      %v1149 = vpop.f32.mrb[0].mxu0
      %v1150 = vadd.f32 0.0, %v1149
      %v1151 = vpop.f32.mrb[0].mxu0
      %1152 = vmatprep.mubr.f32.mxu0 0.0
      %1153 = vmatmul.mubr.f32.gmra.mrb[0].mxu0 %v1036
      %v1154 = vpop.f32.mrb[0].mxu0
      %v1155 = vadd.f32 0.0, %v1154
      %v1156 = vpop.f32.mrb[0].mxu0
      %1157 = vmatprep.mubr.f32.mxu0 0.0
      %1158 = vmatmul.mubr.f32.gmra.mrb[0].mxu0 %v1039
      %v1159 = vpop.f32.mrb[0].mxu0
      %v1160 = vadd.f32 0.0, %v1159
      %v1161 = vpop.f32.mrb[0].mxu0
      %1162 = vmatprep.mubr.f32.mxu0 0.0
      %1163 = vmatmul.mubr.f32.gmra.mrb[0].mxu0 %v1042
      %v1164 = vpop.f32.mrb[0].mxu0
      %v1165 = vadd.f32 0.0, %v1164
      %v1166 = vpop.f32.mrb[0].mxu0
      %1167 = vmatprep.mubr.f32.mxu0 0.0
      %1168 = vmatmul.mubr.f32.gmra.mrb[0].mxu0 %v1045
      %v1169 = vpop.f32.mrb[0].mxu0
      %v1170 = vadd.f32 0.0, %v1169
      %v1171 = vpop.f32.mrb[0].mxu0
      %1172 = vmatprep.mubr.f32.mxu0 0.0
      %1173 = vmatmul.mubr.f32.gmra.mrb[0].mxu0 %v1048
      %v1174 = vpop.f32.mrb[0].mxu0
      %v1175 = vadd.f32 0.0, %v1174
      %v1176 = vpop.f32.mrb[0].mxu0
      %1177 = vmatprep.mubr.f32.mxu0 0.0
      %1178 = vmatmul.mubr.f32.gmra.mrb[0].mxu0 %v1051
      %v1179 = vpop.f32.mrb[0].mxu0
      %v1180 = vadd.f32 0.0, %v1179
      %v1181 = vpop.f32.mrb[0].mxu0
      %1182 = vmatprep.mubr.f32.mxu0 0.0
      %1183 = vmatmul.mubr.f32.gmra.mrb[0].mxu0 %v1054
      %v1184 = vpop.f32.mrb[0].mxu0
      %v1185 = vadd.f32 0.0, %v1184
      %v1186 = vpop.f32.mrb[0].mxu0
      %1187 = vmatprep.mubr.f32.mxu0 0.0
      %1188 = vmatmul.mubr.f32.gmra.mrb[0].mxu0 %v1057
      %v1189 = vpop.f32.mrb[0].mxu0
      %v1190 = vadd.f32 0.0, %v1189
      %v1191 = vpop.f32.mrb[0].mxu0
      %1192 = vmatprep.mubr.f32.mxu0 0.0
      %1193 = vmatmul.mubr.f32.gmra.mrb[0].mxu0 %v1060
      %v1194 = vpop.f32.mrb[0].mxu0
      %v1195 = vadd.f32 0.0, %v1194
      %v1196 = vpop.f32.mrb[0].mxu0
      %1197 = vmatprep.mubr.f32.mxu0 0.0
      %1198 = vmatmul.mubr.f32.gmra.mrb[0].mxu0 %v1063
      %v1199 = vpop.f32.mrb[0].mxu0
      %v1200 = vadd.f32 0.0, %v1199
      %v1201 = vpop.f32.mrb[0].mxu0
      %1202 = vmatprep.mubr.f32.mxu0 0.0
      %1203 = vmatmul.mubr.f32.gmra.mrb[0].mxu0 %v1066
      %v1204 = vpop.f32.mrb[0].mxu0
      %v1205 = vadd.f32 0.0, %v1204
      %v1206 = vpop.f32.mrb[0].mxu0
      %1207 = vmatprep.mubr.f32.mxu0 0.0
      %1208 = vmatmul.mubr.f32.gmra.mrb[0].mxu0 %v1069
      %v1209 = vpop.f32.mrb[0].mxu0
      %v1210 = vadd.f32 0.0, %v1209
      %v1211 = vpop.f32.mrb[0].mxu0
      %1212 = vmatprep.mubr.f32.mxu0 0.0
      %1213 = vmatmul.mubr.f32.gmra.mrb[0].mxu0 %v1072
      %v1214 = vpop.f32.mrb[0].mxu0
      %v1215 = vadd.f32 0.0, %v1214
      %v1216 = vpop.f32.mrb[0].mxu0
      %1217 = vmatprep.mubr.f32.mxu0 0.0
      %1218 = vmatmul.mubr.f32.gmra.mrb[0].mxu0 %v1075
      %v1219 = vpop.f32.mrb[0].mxu0
      %v1220 = vadd.f32 0.0, %v1219
      %v1221 = vpop.f32.mrb[0].mxu0
      %1222 = vmatprep.mubr.f32.mxu0 0.0
      %1223 = vmatmul.mubr.f32.gmra.mrb[0].mxu0 %v1078
      %v1224 = vpop.f32.mrb[0].mxu0
      %v1225 = vadd.f32 0.0, %v1224
      %v1226 = vpop.f32.mrb[0].mxu0
      %1227 = vdwg.mxu0
      %v1228 = vadd.f32 %v936, %v1150
      %v1229 = vadd.f32 %v941, %v1155
      %v1230 = vadd.f32 %v946, %v1160
      %v1231 = vadd.f32 %v951, %v1165
      %v1232 = vadd.f32 %v956, %v1170
      %v1233 = vadd.f32 %v961, %v1175
      %v1234 = vadd.f32 %v966, %v1180
      %v1235 = vadd.f32 %v971, %v1185
      %v1236 = vadd.f32 %v976, %v1190
      %v1237 = vadd.f32 %v981, %v1195
      %v1238 = vadd.f32 %v986, %v1200
      %v1239 = vadd.f32 %v991, %v1205
      %v1240 = vadd.f32 %v996, %v1210
      %v1241 = vadd.f32 %v1001, %v1215
      %v1242 = vadd.f32 %v1006, %v1220
      %v1243 = vadd.f32 %v1011, %v1225
      %v1244 = vld [vmem:[%s536] sm:$0xff]
      %v1245 = vld [vmem:[%s536 + $0x8] sm:$0xff]
      %v1246 = vld [vmem:[%s536 + $0x18] sm:$0xff]
      %v1247 = vld [vmem:[%s536 + $0x20] sm:$0xff]
      %v1248 = vld [vmem:[%s536 + $0x30] sm:$0xff]
      %v1249 = vld [vmem:[%s536 + $0x38] sm:$0xff]
      %v1250 = vld [vmem:[%s536 + $0x48] sm:$0xff]
      %v1251 = vld [vmem:[%s536 + $0x50] sm:$0xff]
      %v1252 = vld [vmem:[%s536 + $0x60] sm:$0xff]
      %v1253 = vld [vmem:[%s536 + $0x68] sm:$0xff]
      %v1254 = vld [vmem:[%s536 + $0x78] sm:$0xff]
      %v1255 = vld [vmem:[%s536 + $0x80] sm:$0xff]
      %v1256 = vld [vmem:[%s536 + $0x90] sm:$0xff]
      %v1257 = vld [vmem:[%s536 + $0x98] sm:$0xff]
      %v1258 = vld [vmem:[%s536 + $0xa8] sm:$0xff]
      %v1259 = vld [vmem:[%s536 + $0xb0] sm:$0xff]
      %s1260 = scalar_lea.vmem %s2, 12
      %v1261 = vld [vmem:[%s1260] sm:$0xf]
      %v1263 = vsel %vm537, %v1244, 0
      %v1266 = vsel %vm537, %v1245, 0
      %v1269 = vsel %vm537, %v1246, 0
      %v1272 = vsel %vm537, %v1247, 0
      %v1275 = vsel %vm537, %v1248, 0
      %v1278 = vsel %vm537, %v1249, 0
      %v1281 = vsel %vm537, %v1250, 0
      %v1284 = vsel %vm537, %v1251, 0
      %v1287 = vsel %vm537, %v1252, 0
      %v1290 = vsel %vm537, %v1253, 0
      %v1293 = vsel %vm537, %v1254, 0
      %v1296 = vsel %vm537, %v1255, 0
      %v1299 = vsel %vm537, %v1256, 0
      %v1302 = vsel %vm537, %v1257, 0
      %v1305 = vsel %vm537, %v1258, 0
      %v1308 = vsel %vm537, %v1259, 0
      %v1311 = vsel %vm669, %v1261, 0
      %1313 = vmatprep.subr.mxu0 0.0
      %1314 = vmatpush1.msra.mxu0 %v1311
      %1315 = vmatprep.subr.mxu0 0.0
      %1316 = vmatpush1.msra.mxu0 0.0
      %1317 = vmatprep.subr.mxu0 0.0
      %1318 = vmatpush1.msra.mxu0 0.0
      %1319 = vmatprep.subr.mxu0 0.0
      %1320 = vmatpush1.msra.mxu0 0.0
      %1321 = vmatprep.subr.mxu0 0.0
      %1322 = vmatpush1.msra.mxu0 0.0
      %1323 = vmatprep.subr.mxu0 0.0
      %1324 = vmatpush1.msra.mxu0 0.0
      %1325 = vmatprep.subr.mxu0 0.0
      %1326 = vmatpush1.msra.mxu0 0.0
      %1327 = vmatprep.subr.mxu0 0.0
      %1328 = vmatpush1.msra.mxu0 0.0
      %1329 = vmatprep.subr.mxu0 0.0
      %1330 = vmatpush1.msra.mxu0 0.0
      %1331 = vmatprep.subr.mxu0 0.0
      %1332 = vmatpush1.msra.mxu0 0.0
      %1333 = vmatprep.subr.mxu0 0.0
      %1334 = vmatpush1.msra.mxu0 0.0
      %1335 = vmatprep.subr.mxu0 0.0
      %1336 = vmatpush1.msra.mxu0 0.0
      %1337 = vmatprep.subr.mxu0 0.0
      %1338 = vmatpush1.msra.mxu0 0.0
      %1339 = vmatprep.subr.mxu0 0.0
      %1340 = vmatpush1.msra.mxu0 0.0
      %1341 = vmatprep.subr.mxu0 0.0
      %1342 = vmatpush1.msra.mxu0 0.0
      %1343 = vmatprep.subr.mxu0 0.0
      %1344 = vmatpush1.msra.mxu0 0.0
      %1345 = vmatprep.subr.mxu0 0.0
      %1346 = vmatpush1.msra.mxu0 0.0
      %1347 = vmatprep.subr.mxu0 0.0
      %1348 = vmatpush1.msra.mxu0 0.0
      %1349 = vmatprep.subr.mxu0 0.0
      %1350 = vmatpush1.msra.mxu0 0.0
      %1351 = vmatprep.subr.mxu0 0.0
      %1352 = vmatpush1.msra.mxu0 0.0
      %1353 = vmatprep.subr.mxu0 0.0
      %1354 = vmatpush1.msra.mxu0 0.0
      %1355 = vmatprep.subr.mxu0 0.0
      %1356 = vmatpush1.msra.mxu0 0.0
      %1357 = vmatprep.subr.mxu0 0.0
      %1358 = vmatpush1.msra.mxu0 0.0
      %1359 = vmatprep.subr.mxu0 0.0
      %1360 = vmatpush1.msra.mxu0 0.0
      %1361 = vmatprep.subr.mxu0 0.0
      %1362 = vmatpush1.msra.mxu0 0.0
      %1363 = vmatprep.subr.mxu0 0.0
      %1364 = vmatpush1.msra.mxu0 0.0
      %1365 = vmatprep.subr.mxu0 0.0
      %1366 = vmatpush1.msra.mxu0 0.0
      %1367 = vmatprep.subr.mxu0 0.0
      %1368 = vmatpush1.msra.mxu0 0.0
      %1369 = vmatprep.subr.mxu0 0.0
      %1370 = vmatpush1.msra.mxu0 0.0
      %1371 = vmatprep.subr.mxu0 0.0
      %1372 = vmatpush1.msra.mxu0 0.0
      %1373 = vmatprep.subr.mxu0 0.0
      %1374 = vmatpush1.msra.mxu0 0.0
      %1375 = vmatprep.subr.mxu0 0.0
      %1376 = vmatpush1.msra.mxu0 0.0
      %1377 = vmatprep.mubr.f32.mxu0 0.0
      %1378 = vmatmul.mubr.f32.gmra.mrb[0].mxu0 %v1263
      %v1379 = vpop.f32.mrb[0].mxu0
      %v1380 = vadd.f32 0.0, %v1379
      %v1381 = vpop.f32.mrb[0].mxu0
      %1382 = vmatprep.mubr.f32.mxu0 0.0
      %1383 = vmatmul.mubr.f32.gmra.mrb[0].mxu0 %v1266
      %v1384 = vpop.f32.mrb[0].mxu0
      %v1385 = vadd.f32 0.0, %v1384
      %v1386 = vpop.f32.mrb[0].mxu0
      %1387 = vmatprep.mubr.f32.mxu0 0.0
      %1388 = vmatmul.mubr.f32.gmra.mrb[0].mxu0 %v1269
      %v1389 = vpop.f32.mrb[0].mxu0
      %v1390 = vadd.f32 0.0, %v1389
      %v1391 = vpop.f32.mrb[0].mxu0
      %1392 = vmatprep.mubr.f32.mxu0 0.0
      %1393 = vmatmul.mubr.f32.gmra.mrb[0].mxu0 %v1272
      %v1394 = vpop.f32.mrb[0].mxu0
      %v1395 = vadd.f32 0.0, %v1394
      %v1396 = vpop.f32.mrb[0].mxu0
      %1397 = vmatprep.mubr.f32.mxu0 0.0
      %1398 = vmatmul.mubr.f32.gmra.mrb[0].mxu0 %v1275
      %v1399 = vpop.f32.mrb[0].mxu0
      %v1400 = vadd.f32 0.0, %v1399
      %v1401 = vpop.f32.mrb[0].mxu0
      %1402 = vmatprep.mubr.f32.mxu0 0.0
      %1403 = vmatmul.mubr.f32.gmra.mrb[0].mxu0 %v1278
      %v1404 = vpop.f32.mrb[0].mxu0
      %v1405 = vadd.f32 0.0, %v1404
      %v1406 = vpop.f32.mrb[0].mxu0
      %1407 = vmatprep.mubr.f32.mxu0 0.0
      %1408 = vmatmul.mubr.f32.gmra.mrb[0].mxu0 %v1281
      %v1409 = vpop.f32.mrb[0].mxu0
      %v1410 = vadd.f32 0.0, %v1409
      %v1411 = vpop.f32.mrb[0].mxu0
      %1412 = vmatprep.mubr.f32.mxu0 0.0
      %1413 = vmatmul.mubr.f32.gmra.mrb[0].mxu0 %v1284
      %v1414 = vpop.f32.mrb[0].mxu0
      %v1415 = vadd.f32 0.0, %v1414
      %v1416 = vpop.f32.mrb[0].mxu0
      %1417 = vmatprep.mubr.f32.mxu0 0.0
      %1418 = vmatmul.mubr.f32.gmra.mrb[0].mxu0 %v1287
      %v1419 = vpop.f32.mrb[0].mxu0
      %v1420 = vadd.f32 0.0, %v1419
      %v1421 = vpop.f32.mrb[0].mxu0
      %1422 = vmatprep.mubr.f32.mxu0 0.0
      %1423 = vmatmul.mubr.f32.gmra.mrb[0].mxu0 %v1290
      %v1424 = vpop.f32.mrb[0].mxu0
      %v1425 = vadd.f32 0.0, %v1424
      %v1426 = vpop.f32.mrb[0].mxu0
      %1427 = vmatprep.mubr.f32.mxu0 0.0
      %1428 = vmatmul.mubr.f32.gmra.mrb[0].mxu0 %v1293
      %v1429 = vpop.f32.mrb[0].mxu0
      %v1430 = vadd.f32 0.0, %v1429
      %v1431 = vpop.f32.mrb[0].mxu0
      %1432 = vmatprep.mubr.f32.mxu0 0.0
      %1433 = vmatmul.mubr.f32.gmra.mrb[0].mxu0 %v1296
      %v1434 = vpop.f32.mrb[0].mxu0
      %v1435 = vadd.f32 0.0, %v1434
      %v1436 = vpop.f32.mrb[0].mxu0
      %1437 = vmatprep.mubr.f32.mxu0 0.0
      %1438 = vmatmul.mubr.f32.gmra.mrb[0].mxu0 %v1299
      %v1439 = vpop.f32.mrb[0].mxu0
      %v1440 = vadd.f32 0.0, %v1439
      %v1441 = vpop.f32.mrb[0].mxu0
      %1442 = vmatprep.mubr.f32.mxu0 0.0
      %1443 = vmatmul.mubr.f32.gmra.mrb[0].mxu0 %v1302
      %v1444 = vpop.f32.mrb[0].mxu0
      %v1445 = vadd.f32 0.0, %v1444
      %v1446 = vpop.f32.mrb[0].mxu0
      %1447 = vmatprep.mubr.f32.mxu0 0.0
      %1448 = vmatmul.mubr.f32.gmra.mrb[0].mxu0 %v1305
      %v1449 = vpop.f32.mrb[0].mxu0
      %v1450 = vadd.f32 0.0, %v1449
      %v1451 = vpop.f32.mrb[0].mxu0
      %1452 = vmatprep.mubr.f32.mxu0 0.0
      %1453 = vmatmul.mubr.f32.gmra.mrb[0].mxu0 %v1308
      %v1454 = vpop.f32.mrb[0].mxu0
      %v1455 = vadd.f32 0.0, %v1454
      %v1456 = vpop.f32.mrb[0].mxu0
      %1457 = vdwg.mxu0
      %v1458 = vadd.f32 %v1228, %v1380
      %v1459 = vadd.f32 %v1229, %v1385
      %v1460 = vadd.f32 %v1230, %v1390
      %v1461 = vadd.f32 %v1231, %v1395
      %v1462 = vadd.f32 %v1232, %v1400
      %v1463 = vadd.f32 %v1233, %v1405
      %v1464 = vadd.f32 %v1234, %v1410
      %v1465 = vadd.f32 %v1235, %v1415
      %v1466 = vadd.f32 %v1236, %v1420
      %v1467 = vadd.f32 %v1237, %v1425
      %v1468 = vadd.f32 %v1238, %v1430
      %v1469 = vadd.f32 %v1239, %v1435
      %v1470 = vadd.f32 %v1240, %v1440
      %v1471 = vadd.f32 %v1241, %v1445
      %v1472 = vadd.f32 %v1242, %v1450
      %v1473 = vadd.f32 %v1243, %v1455
      %v1474 = vld [vmem:[%s536 + $0x1] sm:$0xff]
      %v1475 = vld [vmem:[%s536 + $0x9] sm:$0xff]
      %v1476 = vld [vmem:[%s536 + $0x19] sm:$0xff]
      %v1477 = vld [vmem:[%s536 + $0x21] sm:$0xff]
      %v1478 = vld [vmem:[%s536 + $0x31] sm:$0xff]
      %v1479 = vld [vmem:[%s536 + $0x39] sm:$0xff]
      %v1480 = vld [vmem:[%s536 + $0x49] sm:$0xff]
      %v1481 = vld [vmem:[%s536 + $0x51] sm:$0xff]
      %v1482 = vld [vmem:[%s536 + $0x61] sm:$0xff]
      %v1483 = vld [vmem:[%s536 + $0x69] sm:$0xff]
      %v1484 = vld [vmem:[%s536 + $0x79] sm:$0xff]
      %v1485 = vld [vmem:[%s536 + $0x81] sm:$0xff]
      %v1486 = vld [vmem:[%s536 + $0x91] sm:$0xff]
      %v1487 = vld [vmem:[%s536 + $0x99] sm:$0xff]
      %v1488 = vld [vmem:[%s536 + $0xa9] sm:$0xff]
      %v1489 = vld [vmem:[%s536 + $0xb1] sm:$0xff]
      %s1490 = scalar_lea.vmem %s2, 16
      %v1491 = vld [vmem:[%s1490] sm:$0xf]
      %v1493 = vsel %vm537, %v1474, 0
      %v1496 = vsel %vm537, %v1475, 0
      %v1499 = vsel %vm537, %v1476, 0
      %v1502 = vsel %vm537, %v1477, 0
      %v1505 = vsel %vm537, %v1478, 0
      %v1508 = vsel %vm537, %v1479, 0
      %v1511 = vsel %vm537, %v1480, 0
      %v1514 = vsel %vm537, %v1481, 0
      %v1517 = vsel %vm537, %v1482, 0
      %v1520 = vsel %vm537, %v1483, 0
      %v1523 = vsel %vm537, %v1484, 0
      %v1526 = vsel %vm537, %v1485, 0
      %v1529 = vsel %vm537, %v1486, 0
      %v1532 = vsel %vm537, %v1487, 0
      %v1535 = vsel %vm537, %v1488, 0
      %v1538 = vsel %vm537, %v1489, 0
      %v1541 = vsel %vm669, %v1491, 0
      %1543 = vmatprep.subr.mxu0 0.0
      %1544 = vmatpush1.msra.mxu0 %v1541
      %1545 = vmatprep.subr.mxu0 0.0
      %1546 = vmatpush1.msra.mxu0 0.0
      %1547 = vmatprep.subr.mxu0 0.0
      %1548 = vmatpush1.msra.mxu0 0.0
      %1549 = vmatprep.subr.mxu0 0.0
      %1550 = vmatpush1.msra.mxu0 0.0
      %1551 = vmatprep.subr.mxu0 0.0
      %1552 = vmatpush1.msra.mxu0 0.0
      %1553 = vmatprep.subr.mxu0 0.0
      %1554 = vmatpush1.msra.mxu0 0.0
      %1555 = vmatprep.subr.mxu0 0.0
      %1556 = vmatpush1.msra.mxu0 0.0
      %1557 = vmatprep.subr.mxu0 0.0
      %1558 = vmatpush1.msra.mxu0 0.0
      %1559 = vmatprep.subr.mxu0 0.0
      %1560 = vmatpush1.msra.mxu0 0.0
      %1561 = vmatprep.subr.mxu0 0.0
      %1562 = vmatpush1.msra.mxu0 0.0
      %1563 = vmatprep.subr.mxu0 0.0
      %1564 = vmatpush1.msra.mxu0 0.0
      %1565 = vmatprep.subr.mxu0 0.0
      %1566 = vmatpush1.msra.mxu0 0.0
      %1567 = vmatprep.subr.mxu0 0.0
      %1568 = vmatpush1.msra.mxu0 0.0
      %1569 = vmatprep.subr.mxu0 0.0
      %1570 = vmatpush1.msra.mxu0 0.0
      %1571 = vmatprep.subr.mxu0 0.0
      %1572 = vmatpush1.msra.mxu0 0.0
      %1573 = vmatprep.subr.mxu0 0.0
      %1574 = vmatpush1.msra.mxu0 0.0
      %1575 = vmatprep.subr.mxu0 0.0
      %1576 = vmatpush1.msra.mxu0 0.0
      %1577 = vmatprep.subr.mxu0 0.0
      %1578 = vmatpush1.msra.mxu0 0.0
      %1579 = vmatprep.subr.mxu0 0.0
      %1580 = vmatpush1.msra.mxu0 0.0
      %1581 = vmatprep.subr.mxu0 0.0
      %1582 = vmatpush1.msra.mxu0 0.0
      %1583 = vmatprep.subr.mxu0 0.0
      %1584 = vmatpush1.msra.mxu0 0.0
      %1585 = vmatprep.subr.mxu0 0.0
      %1586 = vmatpush1.msra.mxu0 0.0
      %1587 = vmatprep.subr.mxu0 0.0
      %1588 = vmatpush1.msra.mxu0 0.0
      %1589 = vmatprep.subr.mxu0 0.0
      %1590 = vmatpush1.msra.mxu0 0.0
      %1591 = vmatprep.subr.mxu0 0.0
      %1592 = vmatpush1.msra.mxu0 0.0
      %1593 = vmatprep.subr.mxu0 0.0
      %1594 = vmatpush1.msra.mxu0 0.0
      %1595 = vmatprep.subr.mxu0 0.0
      %1596 = vmatpush1.msra.mxu0 0.0
      %1597 = vmatprep.subr.mxu0 0.0
      %1598 = vmatpush1.msra.mxu0 0.0
      %1599 = vmatprep.subr.mxu0 0.0
      %1600 = vmatpush1.msra.mxu0 0.0
      %1601 = vmatprep.subr.mxu0 0.0
      %1602 = vmatpush1.msra.mxu0 0.0
      %1603 = vmatprep.subr.mxu0 0.0
      %1604 = vmatpush1.msra.mxu0 0.0
      %1605 = vmatprep.subr.mxu0 0.0
      %1606 = vmatpush1.msra.mxu0 0.0
      %1607 = vmatprep.mubr.f32.mxu0 0.0
      %1608 = vmatmul.mubr.f32.gmra.mrb[0].mxu0 %v1493
      %v1609 = vpop.f32.mrb[0].mxu0
      %v1610 = vadd.f32 0.0, %v1609
      %v1611 = vpop.f32.mrb[0].mxu0
      %1612 = vmatprep.mubr.f32.mxu0 0.0
      %1613 = vmatmul.mubr.f32.gmra.mrb[0].mxu0 %v1496
      %v1614 = vpop.f32.mrb[0].mxu0
      %v1615 = vadd.f32 0.0, %v1614
      %v1616 = vpop.f32.mrb[0].mxu0
      %1617 = vmatprep.mubr.f32.mxu0 0.0
      %1618 = vmatmul.mubr.f32.gmra.mrb[0].mxu0 %v1499
      %v1619 = vpop.f32.mrb[0].mxu0
      %v1620 = vadd.f32 0.0, %v1619
      %v1621 = vpop.f32.mrb[0].mxu0
      %1622 = vmatprep.mubr.f32.mxu0 0.0
      %1623 = vmatmul.mubr.f32.gmra.mrb[0].mxu0 %v1502
      %v1624 = vpop.f32.mrb[0].mxu0
      %v1625 = vadd.f32 0.0, %v1624
      %v1626 = vpop.f32.mrb[0].mxu0
      %1627 = vmatprep.mubr.f32.mxu0 0.0
      %1628 = vmatmul.mubr.f32.gmra.mrb[0].mxu0 %v1505
      %v1629 = vpop.f32.mrb[0].mxu0
      %v1630 = vadd.f32 0.0, %v1629
      %v1631 = vpop.f32.mrb[0].mxu0
      %1632 = vmatprep.mubr.f32.mxu0 0.0
      %1633 = vmatmul.mubr.f32.gmra.mrb[0].mxu0 %v1508
      %v1634 = vpop.f32.mrb[0].mxu0
      %v1635 = vadd.f32 0.0, %v1634
      %v1636 = vpop.f32.mrb[0].mxu0
      %1637 = vmatprep.mubr.f32.mxu0 0.0
      %1638 = vmatmul.mubr.f32.gmra.mrb[0].mxu0 %v1511
      %v1639 = vpop.f32.mrb[0].mxu0
      %v1640 = vadd.f32 0.0, %v1639
      %v1641 = vpop.f32.mrb[0].mxu0
      %1642 = vmatprep.mubr.f32.mxu0 0.0
      %1643 = vmatmul.mubr.f32.gmra.mrb[0].mxu0 %v1514
      %v1644 = vpop.f32.mrb[0].mxu0
      %v1645 = vadd.f32 0.0, %v1644
      %v1646 = vpop.f32.mrb[0].mxu0
      %1647 = vmatprep.mubr.f32.mxu0 0.0
      %1648 = vmatmul.mubr.f32.gmra.mrb[0].mxu0 %v1517
      %v1649 = vpop.f32.mrb[0].mxu0
      %v1650 = vadd.f32 0.0, %v1649
      %v1651 = vpop.f32.mrb[0].mxu0
      %1652 = vmatprep.mubr.f32.mxu0 0.0
      %1653 = vmatmul.mubr.f32.gmra.mrb[0].mxu0 %v1520
      %v1654 = vpop.f32.mrb[0].mxu0
      %v1655 = vadd.f32 0.0, %v1654
      %v1656 = vpop.f32.mrb[0].mxu0
      %1657 = vmatprep.mubr.f32.mxu0 0.0
      %1658 = vmatmul.mubr.f32.gmra.mrb[0].mxu0 %v1523
      %v1659 = vpop.f32.mrb[0].mxu0
      %v1660 = vadd.f32 0.0, %v1659
      %v1661 = vpop.f32.mrb[0].mxu0
      %1662 = vmatprep.mubr.f32.mxu0 0.0
      %1663 = vmatmul.mubr.f32.gmra.mrb[0].mxu0 %v1526
      %v1664 = vpop.f32.mrb[0].mxu0
      %v1665 = vadd.f32 0.0, %v1664
      %v1666 = vpop.f32.mrb[0].mxu0
      %1667 = vmatprep.mubr.f32.mxu0 0.0
      %1668 = vmatmul.mubr.f32.gmra.mrb[0].mxu0 %v1529
      %v1669 = vpop.f32.mrb[0].mxu0
      %v1670 = vadd.f32 0.0, %v1669
      %v1671 = vpop.f32.mrb[0].mxu0
      %1672 = vmatprep.mubr.f32.mxu0 0.0
      %1673 = vmatmul.mubr.f32.gmra.mrb[0].mxu0 %v1532
      %v1674 = vpop.f32.mrb[0].mxu0
      %v1675 = vadd.f32 0.0, %v1674
      %v1676 = vpop.f32.mrb[0].mxu0
      %1677 = vmatprep.mubr.f32.mxu0 0.0
      %1678 = vmatmul.mubr.f32.gmra.mrb[0].mxu0 %v1535
      %v1679 = vpop.f32.mrb[0].mxu0
      %v1680 = vadd.f32 0.0, %v1679
      %v1681 = vpop.f32.mrb[0].mxu0
      %1682 = vmatprep.mubr.f32.mxu0 0.0
      %1683 = vmatmul.mubr.f32.gmra.mrb[0].mxu0 %v1538
      %v1684 = vpop.f32.mrb[0].mxu0
      %v1685 = vadd.f32 0.0, %v1684
      %v1686 = vpop.f32.mrb[0].mxu0
      %1687 = vdwg.mxu0
      %v1688 = vadd.f32 %v1458, %v1610
      %v1689 = vadd.f32 %v1459, %v1615
      %v1690 = vadd.f32 %v1460, %v1620
      %v1691 = vadd.f32 %v1461, %v1625
      %v1692 = vadd.f32 %v1462, %v1630
      %v1693 = vadd.f32 %v1463, %v1635
      %v1694 = vadd.f32 %v1464, %v1640
      %v1695 = vadd.f32 %v1465, %v1645
      %v1696 = vadd.f32 %v1466, %v1650
      %v1697 = vadd.f32 %v1467, %v1655
      %v1698 = vadd.f32 %v1468, %v1660
      %v1699 = vadd.f32 %v1469, %v1665
      %v1700 = vadd.f32 %v1470, %v1670
      %v1701 = vadd.f32 %v1471, %v1675
      %v1702 = vadd.f32 %v1472, %v1680
      %v1703 = vadd.f32 %v1473, %v1685
      %v1704 = vld [vmem:[%s536 + $0x2] sm:$0xff]
      %v1705 = vld [vmem:[%s536 + $0xa] sm:$0xff]
      %v1706 = vld [vmem:[%s536 + $0x1a] sm:$0xff]
      %v1707 = vld [vmem:[%s536 + $0x22] sm:$0xff]
      %v1708 = vld [vmem:[%s536 + $0x32] sm:$0xff]
      %v1709 = vld [vmem:[%s536 + $0x3a] sm:$0xff]
      %v1710 = vld [vmem:[%s536 + $0x4a] sm:$0xff]
      %v1711 = vld [vmem:[%s536 + $0x52] sm:$0xff]
      %v1712 = vld [vmem:[%s536 + $0x62] sm:$0xff]
      %v1713 = vld [vmem:[%s536 + $0x6a] sm:$0xff]
      %v1714 = vld [vmem:[%s536 + $0x7a] sm:$0xff]
      %v1715 = vld [vmem:[%s536 + $0x82] sm:$0xff]
      %v1716 = vld [vmem:[%s536 + $0x92] sm:$0xff]
      %v1717 = vld [vmem:[%s536 + $0x9a] sm:$0xff]
      %v1718 = vld [vmem:[%s536 + $0xaa] sm:$0xff]
      %v1719 = vld [vmem:[%s536 + $0xb2] sm:$0xff]
      %s1720 = scalar_lea.vmem %s2, 20
      %v1721 = vld [vmem:[%s1720] sm:$0xf]
      %v1723 = vsel %vm537, %v1704, 0
      %v1726 = vsel %vm537, %v1705, 0
      %v1729 = vsel %vm537, %v1706, 0
      %v1732 = vsel %vm537, %v1707, 0
      %v1735 = vsel %vm537, %v1708, 0
      %v1738 = vsel %vm537, %v1709, 0
      %v1741 = vsel %vm537, %v1710, 0
      %v1744 = vsel %vm537, %v1711, 0
      %v1747 = vsel %vm537, %v1712, 0
      %v1750 = vsel %vm537, %v1713, 0
      %v1753 = vsel %vm537, %v1714, 0
      %v1756 = vsel %vm537, %v1715, 0
      %v1759 = vsel %vm537, %v1716, 0
      %v1762 = vsel %vm537, %v1717, 0
      %v1765 = vsel %vm537, %v1718, 0
      %v1768 = vsel %vm537, %v1719, 0
      %v1771 = vsel %vm669, %v1721, 0
      %1773 = vmatprep.subr.mxu0 0.0
      %1774 = vmatpush1.msra.mxu0 %v1771
      %1775 = vmatprep.subr.mxu0 0.0
      %1776 = vmatpush1.msra.mxu0 0.0
      %1777 = vmatprep.subr.mxu0 0.0
      %1778 = vmatpush1.msra.mxu0 0.0
      %1779 = vmatprep.subr.mxu0 0.0
      %1780 = vmatpush1.msra.mxu0 0.0
      %1781 = vmatprep.subr.mxu0 0.0
      %1782 = vmatpush1.msra.mxu0 0.0
      %1783 = vmatprep.subr.mxu0 0.0
      %1784 = vmatpush1.msra.mxu0 0.0
      %1785 = vmatprep.subr.mxu0 0.0
      %1786 = vmatpush1.msra.mxu0 0.0
      %1787 = vmatprep.subr.mxu0 0.0
      %1788 = vmatpush1.msra.mxu0 0.0
      %1789 = vmatprep.subr.mxu0 0.0
      %1790 = vmatpush1.msra.mxu0 0.0
      %1791 = vmatprep.subr.mxu0 0.0
      %1792 = vmatpush1.msra.mxu0 0.0
      %1793 = vmatprep.subr.mxu0 0.0
      %1794 = vmatpush1.msra.mxu0 0.0
      %1795 = vmatprep.subr.mxu0 0.0
      %1796 = vmatpush1.msra.mxu0 0.0
      %1797 = vmatprep.subr.mxu0 0.0
      %1798 = vmatpush1.msra.mxu0 0.0
      %1799 = vmatprep.subr.mxu0 0.0
      %1800 = vmatpush1.msra.mxu0 0.0
      %1801 = vmatprep.subr.mxu0 0.0
      %1802 = vmatpush1.msra.mxu0 0.0
      %1803 = vmatprep.subr.mxu0 0.0
      %1804 = vmatpush1.msra.mxu0 0.0
      %1805 = vmatprep.subr.mxu0 0.0
      %1806 = vmatpush1.msra.mxu0 0.0
      %1807 = vmatprep.subr.mxu0 0.0
      %1808 = vmatpush1.msra.mxu0 0.0
      %1809 = vmatprep.subr.mxu0 0.0
      %1810 = vmatpush1.msra.mxu0 0.0
      %1811 = vmatprep.subr.mxu0 0.0
      %1812 = vmatpush1.msra.mxu0 0.0
      %1813 = vmatprep.subr.mxu0 0.0
      %1814 = vmatpush1.msra.mxu0 0.0
      %1815 = vmatprep.subr.mxu0 0.0
      %1816 = vmatpush1.msra.mxu0 0.0
      %1817 = vmatprep.subr.mxu0 0.0
      %1818 = vmatpush1.msra.mxu0 0.0
      %1819 = vmatprep.subr.mxu0 0.0
      %1820 = vmatpush1.msra.mxu0 0.0
      %1821 = vmatprep.subr.mxu0 0.0
      %1822 = vmatpush1.msra.mxu0 0.0
      %1823 = vmatprep.subr.mxu0 0.0
      %1824 = vmatpush1.msra.mxu0 0.0
      %1825 = vmatprep.subr.mxu0 0.0
      %1826 = vmatpush1.msra.mxu0 0.0
      %1827 = vmatprep.subr.mxu0 0.0
      %1828 = vmatpush1.msra.mxu0 0.0
      %1829 = vmatprep.subr.mxu0 0.0
      %1830 = vmatpush1.msra.mxu0 0.0
      %1831 = vmatprep.subr.mxu0 0.0
      %1832 = vmatpush1.msra.mxu0 0.0
      %1833 = vmatprep.subr.mxu0 0.0
      %1834 = vmatpush1.msra.mxu0 0.0
      %1835 = vmatprep.subr.mxu0 0.0
      %1836 = vmatpush1.msra.mxu0 0.0
      %1837 = vmatprep.mubr.f32.mxu0 0.0
      %1838 = vmatmul.mubr.f32.gmra.mrb[0].mxu0 %v1723
      %v1839 = vpop.f32.mrb[0].mxu0
      %v1840 = vadd.f32 0.0, %v1839
      %v1841 = vpop.f32.mrb[0].mxu0
      %1842 = vmatprep.mubr.f32.mxu0 0.0
      %1843 = vmatmul.mubr.f32.gmra.mrb[0].mxu0 %v1726
      %v1844 = vpop.f32.mrb[0].mxu0
      %v1845 = vadd.f32 0.0, %v1844
      %v1846 = vpop.f32.mrb[0].mxu0
      %1847 = vmatprep.mubr.f32.mxu0 0.0
      %1848 = vmatmul.mubr.f32.gmra.mrb[0].mxu0 %v1729
      %v1849 = vpop.f32.mrb[0].mxu0
      %v1850 = vadd.f32 0.0, %v1849
      %v1851 = vpop.f32.mrb[0].mxu0
      %1852 = vmatprep.mubr.f32.mxu0 0.0
      %1853 = vmatmul.mubr.f32.gmra.mrb[0].mxu0 %v1732
      %v1854 = vpop.f32.mrb[0].mxu0
      %v1855 = vadd.f32 0.0, %v1854
      %v1856 = vpop.f32.mrb[0].mxu0
      %1857 = vmatprep.mubr.f32.mxu0 0.0
      %1858 = vmatmul.mubr.f32.gmra.mrb[0].mxu0 %v1735
      %v1859 = vpop.f32.mrb[0].mxu0
      %v1860 = vadd.f32 0.0, %v1859
      %v1861 = vpop.f32.mrb[0].mxu0
      %1862 = vmatprep.mubr.f32.mxu0 0.0
      %1863 = vmatmul.mubr.f32.gmra.mrb[0].mxu0 %v1738
      %v1864 = vpop.f32.mrb[0].mxu0
      %v1865 = vadd.f32 0.0, %v1864
      %v1866 = vpop.f32.mrb[0].mxu0
      %1867 = vmatprep.mubr.f32.mxu0 0.0
      %1868 = vmatmul.mubr.f32.gmra.mrb[0].mxu0 %v1741
      %v1869 = vpop.f32.mrb[0].mxu0
      %v1870 = vadd.f32 0.0, %v1869
      %v1871 = vpop.f32.mrb[0].mxu0
      %1872 = vmatprep.mubr.f32.mxu0 0.0
      %1873 = vmatmul.mubr.f32.gmra.mrb[0].mxu0 %v1744
      %v1874 = vpop.f32.mrb[0].mxu0
      %v1875 = vadd.f32 0.0, %v1874
      %v1876 = vpop.f32.mrb[0].mxu0
      %1877 = vmatprep.mubr.f32.mxu0 0.0
      %1878 = vmatmul.mubr.f32.gmra.mrb[0].mxu0 %v1747
      %v1879 = vpop.f32.mrb[0].mxu0
      %v1880 = vadd.f32 0.0, %v1879
      %v1881 = vpop.f32.mrb[0].mxu0
      %1882 = vmatprep.mubr.f32.mxu0 0.0
      %1883 = vmatmul.mubr.f32.gmra.mrb[0].mxu0 %v1750
      %v1884 = vpop.f32.mrb[0].mxu0
      %v1885 = vadd.f32 0.0, %v1884
      %v1886 = vpop.f32.mrb[0].mxu0
      %1887 = vmatprep.mubr.f32.mxu0 0.0
      %1888 = vmatmul.mubr.f32.gmra.mrb[0].mxu0 %v1753
      %v1889 = vpop.f32.mrb[0].mxu0
      %v1890 = vadd.f32 0.0, %v1889
      %v1891 = vpop.f32.mrb[0].mxu0
      %1892 = vmatprep.mubr.f32.mxu0 0.0
      %1893 = vmatmul.mubr.f32.gmra.mrb[0].mxu0 %v1756
      %v1894 = vpop.f32.mrb[0].mxu0
      %v1895 = vadd.f32 0.0, %v1894
      %v1896 = vpop.f32.mrb[0].mxu0
      %1897 = vmatprep.mubr.f32.mxu0 0.0
      %1898 = vmatmul.mubr.f32.gmra.mrb[0].mxu0 %v1759
      %v1899 = vpop.f32.mrb[0].mxu0
      %v1900 = vadd.f32 0.0, %v1899
      %v1901 = vpop.f32.mrb[0].mxu0
      %1902 = vmatprep.mubr.f32.mxu0 0.0
      %1903 = vmatmul.mubr.f32.gmra.mrb[0].mxu0 %v1762
      %v1904 = vpop.f32.mrb[0].mxu0
      %v1905 = vadd.f32 0.0, %v1904
      %v1906 = vpop.f32.mrb[0].mxu0
      %1907 = vmatprep.mubr.f32.mxu0 0.0
      %1908 = vmatmul.mubr.f32.gmra.mrb[0].mxu0 %v1765
      %v1909 = vpop.f32.mrb[0].mxu0
      %v1910 = vadd.f32 0.0, %v1909
      %v1911 = vpop.f32.mrb[0].mxu0
      %1912 = vmatprep.mubr.f32.mxu0 0.0
      %1913 = vmatmul.mubr.f32.gmra.mrb[0].mxu0 %v1768
      %v1914 = vpop.f32.mrb[0].mxu0
      %v1915 = vadd.f32 0.0, %v1914
      %v1916 = vpop.f32.mrb[0].mxu0
      %1917 = vdwg.mxu0
      %v1918 = vadd.f32 %v1688, %v1840
      %v1919 = vadd.f32 %v1689, %v1845
      %v1920 = vadd.f32 %v1690, %v1850
      %v1921 = vadd.f32 %v1691, %v1855
      %v1922 = vadd.f32 %v1692, %v1860
      %v1923 = vadd.f32 %v1693, %v1865
      %v1924 = vadd.f32 %v1694, %v1870
      %v1925 = vadd.f32 %v1695, %v1875
      %v1926 = vadd.f32 %v1696, %v1880
      %v1927 = vadd.f32 %v1697, %v1885
      %v1928 = vadd.f32 %v1698, %v1890
      %v1929 = vadd.f32 %v1699, %v1895
      %v1930 = vadd.f32 %v1700, %v1900
      %v1931 = vadd.f32 %v1701, %v1905
      %v1932 = vadd.f32 %v1702, %v1910
      %v1933 = vadd.f32 %v1703, %v1915
      %s1934 = scalar_lea.vmem [#allocation2], 48
      %v1935 = vld [vmem:[%s1934] sm:$0xff]
      %v1936 = vld [vmem:[%s1934 + $0x8] sm:$0xff]
      %v1937 = vld [vmem:[%s1934 + $0x18] sm:$0xff]
      %v1938 = vld [vmem:[%s1934 + $0x20] sm:$0xff]
      %v1939 = vld [vmem:[%s1934 + $0x30] sm:$0xff]
      %v1940 = vld [vmem:[%s1934 + $0x38] sm:$0xff]
      %v1941 = vld [vmem:[%s1934 + $0x48] sm:$0xff]
      %v1942 = vld [vmem:[%s1934 + $0x50] sm:$0xff]
      %v1943 = vld [vmem:[%s1934 + $0x60] sm:$0xff]
      %v1944 = vld [vmem:[%s1934 + $0x68] sm:$0xff]
      %v1945 = vld [vmem:[%s1934 + $0x78] sm:$0xff]
      %v1946 = vld [vmem:[%s1934 + $0x80] sm:$0xff]
      %v1947 = vld [vmem:[%s1934 + $0x90] sm:$0xff]
      %v1948 = vld [vmem:[%s1934 + $0x98] sm:$0xff]
      %v1949 = vld [vmem:[%s1934 + $0xa8] sm:$0xff]
      %v1950 = vld [vmem:[%s1934 + $0xb0] sm:$0xff]
      %s1951 = scalar_lea.vmem %s2, 24
      %v1952 = vld [vmem:[%s1951] sm:$0xf]
      %v1954 = vsel %vm537, %v1935, 0
      %v1957 = vsel %vm537, %v1936, 0
      %v1960 = vsel %vm537, %v1937, 0
      %v1963 = vsel %vm537, %v1938, 0
      %v1966 = vsel %vm537, %v1939, 0
      %v1969 = vsel %vm537, %v1940, 0
      %v1972 = vsel %vm537, %v1941, 0
      %v1975 = vsel %vm537, %v1942, 0
      %v1978 = vsel %vm537, %v1943, 0
      %v1981 = vsel %vm537, %v1944, 0
      %v1984 = vsel %vm537, %v1945, 0
      %v1987 = vsel %vm537, %v1946, 0
      %v1990 = vsel %vm537, %v1947, 0
      %v1993 = vsel %vm537, %v1948, 0
      %v1996 = vsel %vm537, %v1949, 0
      %v1999 = vsel %vm537, %v1950, 0
      %v2002 = vsel %vm669, %v1952, 0
      %2004 = vmatprep.subr.mxu0 0.0
      %2005 = vmatpush1.msra.mxu0 %v2002
      %2006 = vmatprep.subr.mxu0 0.0
      %2007 = vmatpush1.msra.mxu0 0.0
      %2008 = vmatprep.subr.mxu0 0.0
      %2009 = vmatpush1.msra.mxu0 0.0
      %2010 = vmatprep.subr.mxu0 0.0
      %2011 = vmatpush1.msra.mxu0 0.0
      %2012 = vmatprep.subr.mxu0 0.0
      %2013 = vmatpush1.msra.mxu0 0.0
      %2014 = vmatprep.subr.mxu0 0.0
      %2015 = vmatpush1.msra.mxu0 0.0
      %2016 = vmatprep.subr.mxu0 0.0
      %2017 = vmatpush1.msra.mxu0 0.0
      %2018 = vmatprep.subr.mxu0 0.0
      %2019 = vmatpush1.msra.mxu0 0.0
      %2020 = vmatprep.subr.mxu0 0.0
      %2021 = vmatpush1.msra.mxu0 0.0
      %2022 = vmatprep.subr.mxu0 0.0
      %2023 = vmatpush1.msra.mxu0 0.0
      %2024 = vmatprep.subr.mxu0 0.0
      %2025 = vmatpush1.msra.mxu0 0.0
      %2026 = vmatprep.subr.mxu0 0.0
      %2027 = vmatpush1.msra.mxu0 0.0
      %2028 = vmatprep.subr.mxu0 0.0
      %2029 = vmatpush1.msra.mxu0 0.0
      %2030 = vmatprep.subr.mxu0 0.0
      %2031 = vmatpush1.msra.mxu0 0.0
      %2032 = vmatprep.subr.mxu0 0.0
      %2033 = vmatpush1.msra.mxu0 0.0
      %2034 = vmatprep.subr.mxu0 0.0
      %2035 = vmatpush1.msra.mxu0 0.0
      %2036 = vmatprep.subr.mxu0 0.0
      %2037 = vmatpush1.msra.mxu0 0.0
      %2038 = vmatprep.subr.mxu0 0.0
      %2039 = vmatpush1.msra.mxu0 0.0
      %2040 = vmatprep.subr.mxu0 0.0
      %2041 = vmatpush1.msra.mxu0 0.0
      %2042 = vmatprep.subr.mxu0 0.0
      %2043 = vmatpush1.msra.mxu0 0.0
      %2044 = vmatprep.subr.mxu0 0.0
      %2045 = vmatpush1.msra.mxu0 0.0
      %2046 = vmatprep.subr.mxu0 0.0
      %2047 = vmatpush1.msra.mxu0 0.0
      %2048 = vmatprep.subr.mxu0 0.0
      %2049 = vmatpush1.msra.mxu0 0.0
      %2050 = vmatprep.subr.mxu0 0.0
      %2051 = vmatpush1.msra.mxu0 0.0
      %2052 = vmatprep.subr.mxu0 0.0
      %2053 = vmatpush1.msra.mxu0 0.0
      %2054 = vmatprep.subr.mxu0 0.0
      %2055 = vmatpush1.msra.mxu0 0.0
      %2056 = vmatprep.subr.mxu0 0.0
      %2057 = vmatpush1.msra.mxu0 0.0
      %2058 = vmatprep.subr.mxu0 0.0
      %2059 = vmatpush1.msra.mxu0 0.0
      %2060 = vmatprep.subr.mxu0 0.0
      %2061 = vmatpush1.msra.mxu0 0.0
      %2062 = vmatprep.subr.mxu0 0.0
      %2063 = vmatpush1.msra.mxu0 0.0
      %2064 = vmatprep.subr.mxu0 0.0
      %2065 = vmatpush1.msra.mxu0 0.0
      %2066 = vmatprep.subr.mxu0 0.0
      %2067 = vmatpush1.msra.mxu0 0.0
      %2068 = vmatprep.mubr.f32.mxu0 0.0
      %2069 = vmatmul.mubr.f32.gmra.mrb[0].mxu0 %v1954
      %v2070 = vpop.f32.mrb[0].mxu0
      %v2071 = vadd.f32 0.0, %v2070
      %v2072 = vpop.f32.mrb[0].mxu0
      %2073 = vmatprep.mubr.f32.mxu0 0.0
      %2074 = vmatmul.mubr.f32.gmra.mrb[0].mxu0 %v1957
      %v2075 = vpop.f32.mrb[0].mxu0
      %v2076 = vadd.f32 0.0, %v2075
      %v2077 = vpop.f32.mrb[0].mxu0
      %2078 = vmatprep.mubr.f32.mxu0 0.0
      %2079 = vmatmul.mubr.f32.gmra.mrb[0].mxu0 %v1960
      %v2080 = vpop.f32.mrb[0].mxu0
      %v2081 = vadd.f32 0.0, %v2080
      %v2082 = vpop.f32.mrb[0].mxu0
      %2083 = vmatprep.mubr.f32.mxu0 0.0
      %2084 = vmatmul.mubr.f32.gmra.mrb[0].mxu0 %v1963
      %v2085 = vpop.f32.mrb[0].mxu0
      %v2086 = vadd.f32 0.0, %v2085
      %v2087 = vpop.f32.mrb[0].mxu0
      %2088 = vmatprep.mubr.f32.mxu0 0.0
      %2089 = vmatmul.mubr.f32.gmra.mrb[0].mxu0 %v1966
      %v2090 = vpop.f32.mrb[0].mxu0
      %v2091 = vadd.f32 0.0, %v2090
      %v2092 = vpop.f32.mrb[0].mxu0
      %2093 = vmatprep.mubr.f32.mxu0 0.0
      %2094 = vmatmul.mubr.f32.gmra.mrb[0].mxu0 %v1969
      %v2095 = vpop.f32.mrb[0].mxu0
      %v2096 = vadd.f32 0.0, %v2095
      %v2097 = vpop.f32.mrb[0].mxu0
      %2098 = vmatprep.mubr.f32.mxu0 0.0
      %2099 = vmatmul.mubr.f32.gmra.mrb[0].mxu0 %v1972
      %v2100 = vpop.f32.mrb[0].mxu0
      %v2101 = vadd.f32 0.0, %v2100
      %v2102 = vpop.f32.mrb[0].mxu0
      %2103 = vmatprep.mubr.f32.mxu0 0.0
      %2104 = vmatmul.mubr.f32.gmra.mrb[0].mxu0 %v1975
      %v2105 = vpop.f32.mrb[0].mxu0
      %v2106 = vadd.f32 0.0, %v2105
      %v2107 = vpop.f32.mrb[0].mxu0
      %2108 = vmatprep.mubr.f32.mxu0 0.0
      %2109 = vmatmul.mubr.f32.gmra.mrb[0].mxu0 %v1978
      %v2110 = vpop.f32.mrb[0].mxu0
      %v2111 = vadd.f32 0.0, %v2110
      %v2112 = vpop.f32.mrb[0].mxu0
      %2113 = vmatprep.mubr.f32.mxu0 0.0
      %2114 = vmatmul.mubr.f32.gmra.mrb[0].mxu0 %v1981
      %v2115 = vpop.f32.mrb[0].mxu0
      %v2116 = vadd.f32 0.0, %v2115
      %v2117 = vpop.f32.mrb[0].mxu0
      %2118 = vmatprep.mubr.f32.mxu0 0.0
      %2119 = vmatmul.mubr.f32.gmra.mrb[0].mxu0 %v1984
      %v2120 = vpop.f32.mrb[0].mxu0
      %v2121 = vadd.f32 0.0, %v2120
      %v2122 = vpop.f32.mrb[0].mxu0
      %2123 = vmatprep.mubr.f32.mxu0 0.0
      %2124 = vmatmul.mubr.f32.gmra.mrb[0].mxu0 %v1987
      %v2125 = vpop.f32.mrb[0].mxu0
      %v2126 = vadd.f32 0.0, %v2125
      %v2127 = vpop.f32.mrb[0].mxu0
      %2128 = vmatprep.mubr.f32.mxu0 0.0
      %2129 = vmatmul.mubr.f32.gmra.mrb[0].mxu0 %v1990
      %v2130 = vpop.f32.mrb[0].mxu0
      %v2131 = vadd.f32 0.0, %v2130
      %v2132 = vpop.f32.mrb[0].mxu0
      %2133 = vmatprep.mubr.f32.mxu0 0.0
      %2134 = vmatmul.mubr.f32.gmra.mrb[0].mxu0 %v1993
      %v2135 = vpop.f32.mrb[0].mxu0
      %v2136 = vadd.f32 0.0, %v2135
      %v2137 = vpop.f32.mrb[0].mxu0
      %2138 = vmatprep.mubr.f32.mxu0 0.0
      %2139 = vmatmul.mubr.f32.gmra.mrb[0].mxu0 %v1996
      %v2140 = vpop.f32.mrb[0].mxu0
      %v2141 = vadd.f32 0.0, %v2140
      %v2142 = vpop.f32.mrb[0].mxu0
      %2143 = vmatprep.mubr.f32.mxu0 0.0
      %2144 = vmatmul.mubr.f32.gmra.mrb[0].mxu0 %v1999
      %v2145 = vpop.f32.mrb[0].mxu0
      %v2146 = vadd.f32 0.0, %v2145
      %v2147 = vpop.f32.mrb[0].mxu0
      %2148 = vdwg.mxu0
      %v2149 = vadd.f32 %v1918, %v2071
      %v2150 = vadd.f32 %v1919, %v2076
      %v2151 = vadd.f32 %v1920, %v2081
      %v2152 = vadd.f32 %v1921, %v2086
      %v2153 = vadd.f32 %v1922, %v2091
      %v2154 = vadd.f32 %v1923, %v2096
      %v2155 = vadd.f32 %v1924, %v2101
      %v2156 = vadd.f32 %v1925, %v2106
      %v2157 = vadd.f32 %v1926, %v2111
      %v2158 = vadd.f32 %v1927, %v2116
      %v2159 = vadd.f32 %v1928, %v2121
      %v2160 = vadd.f32 %v1929, %v2126
      %v2161 = vadd.f32 %v1930, %v2131
      %v2162 = vadd.f32 %v1931, %v2136
      %v2163 = vadd.f32 %v1932, %v2141
      %v2164 = vadd.f32 %v1933, %v2146
      %v2165 = vld [vmem:[%s1934 + $0x1] sm:$0xff]
      %v2166 = vld [vmem:[%s1934 + $0x9] sm:$0xff]
      %v2167 = vld [vmem:[%s1934 + $0x19] sm:$0xff]
      %v2168 = vld [vmem:[%s1934 + $0x21] sm:$0xff]
      %v2169 = vld [vmem:[%s1934 + $0x31] sm:$0xff]
      %v2170 = vld [vmem:[%s1934 + $0x39] sm:$0xff]
      %v2171 = vld [vmem:[%s1934 + $0x49] sm:$0xff]
      %v2172 = vld [vmem:[%s1934 + $0x51] sm:$0xff]
      %v2173 = vld [vmem:[%s1934 + $0x61] sm:$0xff]
      %v2174 = vld [vmem:[%s1934 + $0x69] sm:$0xff]
      %v2175 = vld [vmem:[%s1934 + $0x79] sm:$0xff]
      %v2176 = vld [vmem:[%s1934 + $0x81] sm:$0xff]
      %v2177 = vld [vmem:[%s1934 + $0x91] sm:$0xff]
      %v2178 = vld [vmem:[%s1934 + $0x99] sm:$0xff]
      %v2179 = vld [vmem:[%s1934 + $0xa9] sm:$0xff]
      %v2180 = vld [vmem:[%s1934 + $0xb1] sm:$0xff]
      %s2181 = scalar_lea.vmem %s2, 28
      %v2182 = vld [vmem:[%s2181] sm:$0xf]
      %v2184 = vsel %vm537, %v2165, 0
      %v2187 = vsel %vm537, %v2166, 0
      %v2190 = vsel %vm537, %v2167, 0
      %v2193 = vsel %vm537, %v2168, 0
      %v2196 = vsel %vm537, %v2169, 0
      %v2199 = vsel %vm537, %v2170, 0
      %v2202 = vsel %vm537, %v2171, 0
      %v2205 = vsel %vm537, %v2172, 0
      %v2208 = vsel %vm537, %v2173, 0
      %v2211 = vsel %vm537, %v2174, 0
      %v2214 = vsel %vm537, %v2175, 0
      %v2217 = vsel %vm537, %v2176, 0
      %v2220 = vsel %vm537, %v2177, 0
      %v2223 = vsel %vm537, %v2178, 0
      %v2226 = vsel %vm537, %v2179, 0
      %v2229 = vsel %vm537, %v2180, 0
      %v2232 = vsel %vm669, %v2182, 0
      %2234 = vmatprep.subr.mxu0 0.0
      %2235 = vmatpush1.msra.mxu0 %v2232
      %2236 = vmatprep.subr.mxu0 0.0
      %2237 = vmatpush1.msra.mxu0 0.0
      %2238 = vmatprep.subr.mxu0 0.0
      %2239 = vmatpush1.msra.mxu0 0.0
      %2240 = vmatprep.subr.mxu0 0.0
      %2241 = vmatpush1.msra.mxu0 0.0
      %2242 = vmatprep.subr.mxu0 0.0
      %2243 = vmatpush1.msra.mxu0 0.0
      %2244 = vmatprep.subr.mxu0 0.0
      %2245 = vmatpush1.msra.mxu0 0.0
      %2246 = vmatprep.subr.mxu0 0.0
      %2247 = vmatpush1.msra.mxu0 0.0
      %2248 = vmatprep.subr.mxu0 0.0
      %2249 = vmatpush1.msra.mxu0 0.0
      %2250 = vmatprep.subr.mxu0 0.0
      %2251 = vmatpush1.msra.mxu0 0.0
      %2252 = vmatprep.subr.mxu0 0.0
      %2253 = vmatpush1.msra.mxu0 0.0
      %2254 = vmatprep.subr.mxu0 0.0
      %2255 = vmatpush1.msra.mxu0 0.0
      %2256 = vmatprep.subr.mxu0 0.0
      %2257 = vmatpush1.msra.mxu0 0.0
      %2258 = vmatprep.subr.mxu0 0.0
      %2259 = vmatpush1.msra.mxu0 0.0
      %2260 = vmatprep.subr.mxu0 0.0
      %2261 = vmatpush1.msra.mxu0 0.0
      %2262 = vmatprep.subr.mxu0 0.0
      %2263 = vmatpush1.msra.mxu0 0.0
      %2264 = vmatprep.subr.mxu0 0.0
      %2265 = vmatpush1.msra.mxu0 0.0
      %2266 = vmatprep.subr.mxu0 0.0
      %2267 = vmatpush1.msra.mxu0 0.0
      %2268 = vmatprep.subr.mxu0 0.0
      %2269 = vmatpush1.msra.mxu0 0.0
      %2270 = vmatprep.subr.mxu0 0.0
      %2271 = vmatpush1.msra.mxu0 0.0
      %2272 = vmatprep.subr.mxu0 0.0
      %2273 = vmatpush1.msra.mxu0 0.0
      %2274 = vmatprep.subr.mxu0 0.0
      %2275 = vmatpush1.msra.mxu0 0.0
      %2276 = vmatprep.subr.mxu0 0.0
      %2277 = vmatpush1.msra.mxu0 0.0
      %2278 = vmatprep.subr.mxu0 0.0
      %2279 = vmatpush1.msra.mxu0 0.0
      %2280 = vmatprep.subr.mxu0 0.0
      %2281 = vmatpush1.msra.mxu0 0.0
      %2282 = vmatprep.subr.mxu0 0.0
      %2283 = vmatpush1.msra.mxu0 0.0
      %2284 = vmatprep.subr.mxu0 0.0
      %2285 = vmatpush1.msra.mxu0 0.0
      %2286 = vmatprep.subr.mxu0 0.0
      %2287 = vmatpush1.msra.mxu0 0.0
      %2288 = vmatprep.subr.mxu0 0.0
      %2289 = vmatpush1.msra.mxu0 0.0
      %2290 = vmatprep.subr.mxu0 0.0
      %2291 = vmatpush1.msra.mxu0 0.0
      %2292 = vmatprep.subr.mxu0 0.0
      %2293 = vmatpush1.msra.mxu0 0.0
      %2294 = vmatprep.subr.mxu0 0.0
      %2295 = vmatpush1.msra.mxu0 0.0
      %2296 = vmatprep.subr.mxu0 0.0
      %2297 = vmatpush1.msra.mxu0 0.0
      %2298 = vmatprep.mubr.f32.mxu0 0.0
      %2299 = vmatmul.mubr.f32.gmra.mrb[0].mxu0 %v2184
      %v2300 = vpop.f32.mrb[0].mxu0
      %v2301 = vadd.f32 0.0, %v2300
      %v2302 = vpop.f32.mrb[0].mxu0
      %2303 = vmatprep.mubr.f32.mxu0 0.0
      %2304 = vmatmul.mubr.f32.gmra.mrb[0].mxu0 %v2187
      %v2305 = vpop.f32.mrb[0].mxu0
      %v2306 = vadd.f32 0.0, %v2305
      %v2307 = vpop.f32.mrb[0].mxu0
      %2308 = vmatprep.mubr.f32.mxu0 0.0
      %2309 = vmatmul.mubr.f32.gmra.mrb[0].mxu0 %v2190
      %v2310 = vpop.f32.mrb[0].mxu0
      %v2311 = vadd.f32 0.0, %v2310
      %v2312 = vpop.f32.mrb[0].mxu0
      %2313 = vmatprep.mubr.f32.mxu0 0.0
      %2314 = vmatmul.mubr.f32.gmra.mrb[0].mxu0 %v2193
      %v2315 = vpop.f32.mrb[0].mxu0
      %v2316 = vadd.f32 0.0, %v2315
      %v2317 = vpop.f32.mrb[0].mxu0
      %2318 = vmatprep.mubr.f32.mxu0 0.0
      %2319 = vmatmul.mubr.f32.gmra.mrb[0].mxu0 %v2196
      %v2320 = vpop.f32.mrb[0].mxu0
      %v2321 = vadd.f32 0.0, %v2320
      %v2322 = vpop.f32.mrb[0].mxu0
      %2323 = vmatprep.mubr.f32.mxu0 0.0
      %2324 = vmatmul.mubr.f32.gmra.mrb[0].mxu0 %v2199
      %v2325 = vpop.f32.mrb[0].mxu0
      %v2326 = vadd.f32 0.0, %v2325
      %v2327 = vpop.f32.mrb[0].mxu0
      %2328 = vmatprep.mubr.f32.mxu0 0.0
      %2329 = vmatmul.mubr.f32.gmra.mrb[0].mxu0 %v2202
      %v2330 = vpop.f32.mrb[0].mxu0
      %v2331 = vadd.f32 0.0, %v2330
      %v2332 = vpop.f32.mrb[0].mxu0
      %2333 = vmatprep.mubr.f32.mxu0 0.0
      %2334 = vmatmul.mubr.f32.gmra.mrb[0].mxu0 %v2205
      %v2335 = vpop.f32.mrb[0].mxu0
      %v2336 = vadd.f32 0.0, %v2335
      %v2337 = vpop.f32.mrb[0].mxu0
      %2338 = vmatprep.mubr.f32.mxu0 0.0
      %2339 = vmatmul.mubr.f32.gmra.mrb[0].mxu0 %v2208
      %v2340 = vpop.f32.mrb[0].mxu0
      %v2341 = vadd.f32 0.0, %v2340
      %v2342 = vpop.f32.mrb[0].mxu0
      %2343 = vmatprep.mubr.f32.mxu0 0.0
      %2344 = vmatmul.mubr.f32.gmra.mrb[0].mxu0 %v2211
      %v2345 = vpop.f32.mrb[0].mxu0
      %v2346 = vadd.f32 0.0, %v2345
      %v2347 = vpop.f32.mrb[0].mxu0
      %2348 = vmatprep.mubr.f32.mxu0 0.0
      %2349 = vmatmul.mubr.f32.gmra.mrb[0].mxu0 %v2214
      %v2350 = vpop.f32.mrb[0].mxu0
      %v2351 = vadd.f32 0.0, %v2350
      %v2352 = vpop.f32.mrb[0].mxu0
      %2353 = vmatprep.mubr.f32.mxu0 0.0
      %2354 = vmatmul.mubr.f32.gmra.mrb[0].mxu0 %v2217
      %v2355 = vpop.f32.mrb[0].mxu0
      %v2356 = vadd.f32 0.0, %v2355
      %v2357 = vpop.f32.mrb[0].mxu0
      %2358 = vmatprep.mubr.f32.mxu0 0.0
      %2359 = vmatmul.mubr.f32.gmra.mrb[0].mxu0 %v2220
      %v2360 = vpop.f32.mrb[0].mxu0
      %v2361 = vadd.f32 0.0, %v2360
      %v2362 = vpop.f32.mrb[0].mxu0
      %2363 = vmatprep.mubr.f32.mxu0 0.0
      %2364 = vmatmul.mubr.f32.gmra.mrb[0].mxu0 %v2223
      %v2365 = vpop.f32.mrb[0].mxu0
      %v2366 = vadd.f32 0.0, %v2365
      %v2367 = vpop.f32.mrb[0].mxu0
      %2368 = vmatprep.mubr.f32.mxu0 0.0
      %2369 = vmatmul.mubr.f32.gmra.mrb[0].mxu0 %v2226
      %v2370 = vpop.f32.mrb[0].mxu0
      %v2371 = vadd.f32 0.0, %v2370
      %v2372 = vpop.f32.mrb[0].mxu0
      %2373 = vmatprep.mubr.f32.mxu0 0.0
      %2374 = vmatmul.mubr.f32.gmra.mrb[0].mxu0 %v2229
      %v2375 = vpop.f32.mrb[0].mxu0
      %v2376 = vadd.f32 0.0, %v2375
      %v2377 = vpop.f32.mrb[0].mxu0
      %2378 = vdwg.mxu0
      %v2379 = vadd.f32 %v2149, %v2301
      %v2380 = vadd.f32 %v2150, %v2306
      %v2381 = vadd.f32 %v2151, %v2311
      %v2382 = vadd.f32 %v2152, %v2316
      %v2383 = vadd.f32 %v2153, %v2321
      %v2384 = vadd.f32 %v2154, %v2326
      %v2385 = vadd.f32 %v2155, %v2331
      %v2386 = vadd.f32 %v2156, %v2336
      %v2387 = vadd.f32 %v2157, %v2341
      %v2388 = vadd.f32 %v2158, %v2346
      %v2389 = vadd.f32 %v2159, %v2351
      %v2390 = vadd.f32 %v2160, %v2356
      %v2391 = vadd.f32 %v2161, %v2361
      %v2392 = vadd.f32 %v2162, %v2366
      %v2393 = vadd.f32 %v2163, %v2371
      %v2394 = vadd.f32 %v2164, %v2376
      %v2395 = vld [vmem:[%s1934 + $0x2] sm:$0xff]
      %v2396 = vld [vmem:[%s1934 + $0xa] sm:$0xff]
      %v2397 = vld [vmem:[%s1934 + $0x1a] sm:$0xff]
      %v2398 = vld [vmem:[%s1934 + $0x22] sm:$0xff]
      %v2399 = vld [vmem:[%s1934 + $0x32] sm:$0xff]
      %v2400 = vld [vmem:[%s1934 + $0x3a] sm:$0xff]
      %v2401 = vld [vmem:[%s1934 + $0x4a] sm:$0xff]
      %v2402 = vld [vmem:[%s1934 + $0x52] sm:$0xff]
      %v2403 = vld [vmem:[%s1934 + $0x62] sm:$0xff]
      %v2404 = vld [vmem:[%s1934 + $0x6a] sm:$0xff]
      %v2405 = vld [vmem:[%s1934 + $0x7a] sm:$0xff]
      %v2406 = vld [vmem:[%s1934 + $0x82] sm:$0xff]
      %v2407 = vld [vmem:[%s1934 + $0x92] sm:$0xff]
      %v2408 = vld [vmem:[%s1934 + $0x9a] sm:$0xff]
      %v2409 = vld [vmem:[%s1934 + $0xaa] sm:$0xff]
      %v2410 = vld [vmem:[%s1934 + $0xb2] sm:$0xff]
      %s2411 = scalar_lea.vmem %s2, 32
      %v2412 = vld [vmem:[%s2411] sm:$0xf]
      %v2414 = vsel %vm537, %v2395, 0
      %v2417 = vsel %vm537, %v2396, 0
      %v2420 = vsel %vm537, %v2397, 0
      %v2423 = vsel %vm537, %v2398, 0
      %v2426 = vsel %vm537, %v2399, 0
      %v2429 = vsel %vm537, %v2400, 0
      %v2432 = vsel %vm537, %v2401, 0
      %v2435 = vsel %vm537, %v2402, 0
      %v2438 = vsel %vm537, %v2403, 0
      %v2441 = vsel %vm537, %v2404, 0
      %v2444 = vsel %vm537, %v2405, 0
      %v2447 = vsel %vm537, %v2406, 0
      %v2450 = vsel %vm537, %v2407, 0
      %v2453 = vsel %vm537, %v2408, 0
      %v2456 = vsel %vm537, %v2409, 0
      %v2459 = vsel %vm537, %v2410, 0
      %v2462 = vsel %vm669, %v2412, 0
      %2464 = vmatprep.subr.mxu0 0.0
      %2465 = vmatpush1.msra.mxu0 %v2462
      %2466 = vmatprep.subr.mxu0 0.0
      %2467 = vmatpush1.msra.mxu0 0.0
      %2468 = vmatprep.subr.mxu0 0.0
      %2469 = vmatpush1.msra.mxu0 0.0
      %2470 = vmatprep.subr.mxu0 0.0
      %2471 = vmatpush1.msra.mxu0 0.0
      %2472 = vmatprep.subr.mxu0 0.0
      %2473 = vmatpush1.msra.mxu0 0.0
      %2474 = vmatprep.subr.mxu0 0.0
      %2475 = vmatpush1.msra.mxu0 0.0
      %2476 = vmatprep.subr.mxu0 0.0
      %2477 = vmatpush1.msra.mxu0 0.0
      %2478 = vmatprep.subr.mxu0 0.0
      %2479 = vmatpush1.msra.mxu0 0.0
      %2480 = vmatprep.subr.mxu0 0.0
      %2481 = vmatpush1.msra.mxu0 0.0
      %2482 = vmatprep.subr.mxu0 0.0
      %2483 = vmatpush1.msra.mxu0 0.0
      %2484 = vmatprep.subr.mxu0 0.0
      %2485 = vmatpush1.msra.mxu0 0.0
      %2486 = vmatprep.subr.mxu0 0.0
      %2487 = vmatpush1.msra.mxu0 0.0
      %2488 = vmatprep.subr.mxu0 0.0
      %2489 = vmatpush1.msra.mxu0 0.0
      %2490 = vmatprep.subr.mxu0 0.0
      %2491 = vmatpush1.msra.mxu0 0.0
      %2492 = vmatprep.subr.mxu0 0.0
      %2493 = vmatpush1.msra.mxu0 0.0
      %2494 = vmatprep.subr.mxu0 0.0
      %2495 = vmatpush1.msra.mxu0 0.0
      %2496 = vmatprep.subr.mxu0 0.0
      %2497 = vmatpush1.msra.mxu0 0.0
      %2498 = vmatprep.subr.mxu0 0.0
      %2499 = vmatpush1.msra.mxu0 0.0
      %2500 = vmatprep.subr.mxu0 0.0
      %2501 = vmatpush1.msra.mxu0 0.0
      %2502 = vmatprep.subr.mxu0 0.0
      %2503 = vmatpush1.msra.mxu0 0.0
      %2504 = vmatprep.subr.mxu0 0.0
      %2505 = vmatpush1.msra.mxu0 0.0
      %2506 = vmatprep.subr.mxu0 0.0
      %2507 = vmatpush1.msra.mxu0 0.0
      %2508 = vmatprep.subr.mxu0 0.0
      %2509 = vmatpush1.msra.mxu0 0.0
      %2510 = vmatprep.subr.mxu0 0.0
      %2511 = vmatpush1.msra.mxu0 0.0
      %2512 = vmatprep.subr.mxu0 0.0
      %2513 = vmatpush1.msra.mxu0 0.0
      %2514 = vmatprep.subr.mxu0 0.0
      %2515 = vmatpush1.msra.mxu0 0.0
      %2516 = vmatprep.subr.mxu0 0.0
      %2517 = vmatpush1.msra.mxu0 0.0
      %2518 = vmatprep.subr.mxu0 0.0
      %2519 = vmatpush1.msra.mxu0 0.0
      %2520 = vmatprep.subr.mxu0 0.0
      %2521 = vmatpush1.msra.mxu0 0.0
      %2522 = vmatprep.subr.mxu0 0.0
      %2523 = vmatpush1.msra.mxu0 0.0
      %2524 = vmatprep.subr.mxu0 0.0
      %2525 = vmatpush1.msra.mxu0 0.0
      %2526 = vmatprep.subr.mxu0 0.0
      %2527 = vmatpush1.msra.mxu0 0.0
      %2528 = vmatprep.mubr.f32.mxu0 0.0
      %2529 = vmatmul.mubr.f32.gmra.mrb[0].mxu0 %v2414
      %v2530 = vpop.f32.mrb[0].mxu0
      %v2531 = vadd.f32 0.0, %v2530
      %v2532 = vpop.f32.mrb[0].mxu0
      %2533 = vmatprep.mubr.f32.mxu0 0.0
      %2534 = vmatmul.mubr.f32.gmra.mrb[0].mxu0 %v2417
      %v2535 = vpop.f32.mrb[0].mxu0
      %v2536 = vadd.f32 0.0, %v2535
      %v2537 = vpop.f32.mrb[0].mxu0
      %2538 = vmatprep.mubr.f32.mxu0 0.0
      %2539 = vmatmul.mubr.f32.gmra.mrb[0].mxu0 %v2420
      %v2540 = vpop.f32.mrb[0].mxu0
      %v2541 = vadd.f32 0.0, %v2540
      %v2542 = vpop.f32.mrb[0].mxu0
      %2543 = vmatprep.mubr.f32.mxu0 0.0
      %2544 = vmatmul.mubr.f32.gmra.mrb[0].mxu0 %v2423
      %v2545 = vpop.f32.mrb[0].mxu0
      %v2546 = vadd.f32 0.0, %v2545
      %v2547 = vpop.f32.mrb[0].mxu0
      %2548 = vmatprep.mubr.f32.mxu0 0.0
      %2549 = vmatmul.mubr.f32.gmra.mrb[0].mxu0 %v2426
      %v2550 = vpop.f32.mrb[0].mxu0
      %v2551 = vadd.f32 0.0, %v2550
      %v2552 = vpop.f32.mrb[0].mxu0
      %2553 = vmatprep.mubr.f32.mxu0 0.0
      %2554 = vmatmul.mubr.f32.gmra.mrb[0].mxu0 %v2429
      %v2555 = vpop.f32.mrb[0].mxu0
      %v2556 = vadd.f32 0.0, %v2555
      %v2557 = vpop.f32.mrb[0].mxu0
      %2558 = vmatprep.mubr.f32.mxu0 0.0
      %2559 = vmatmul.mubr.f32.gmra.mrb[0].mxu0 %v2432
      %v2560 = vpop.f32.mrb[0].mxu0
      %v2561 = vadd.f32 0.0, %v2560
      %v2562 = vpop.f32.mrb[0].mxu0
      %2563 = vmatprep.mubr.f32.mxu0 0.0
      %2564 = vmatmul.mubr.f32.gmra.mrb[0].mxu0 %v2435
      %v2565 = vpop.f32.mrb[0].mxu0
      %v2566 = vadd.f32 0.0, %v2565
      %v2567 = vpop.f32.mrb[0].mxu0
      %2568 = vmatprep.mubr.f32.mxu0 0.0
      %2569 = vmatmul.mubr.f32.gmra.mrb[0].mxu0 %v2438
      %v2570 = vpop.f32.mrb[0].mxu0
      %v2571 = vadd.f32 0.0, %v2570
      %v2572 = vpop.f32.mrb[0].mxu0
      %2573 = vmatprep.mubr.f32.mxu0 0.0
      %2574 = vmatmul.mubr.f32.gmra.mrb[0].mxu0 %v2441
      %v2575 = vpop.f32.mrb[0].mxu0
      %v2576 = vadd.f32 0.0, %v2575
      %v2577 = vpop.f32.mrb[0].mxu0
      %2578 = vmatprep.mubr.f32.mxu0 0.0
      %2579 = vmatmul.mubr.f32.gmra.mrb[0].mxu0 %v2444
      %v2580 = vpop.f32.mrb[0].mxu0
      %v2581 = vadd.f32 0.0, %v2580
      %v2582 = vpop.f32.mrb[0].mxu0
      %2583 = vmatprep.mubr.f32.mxu0 0.0
      %2584 = vmatmul.mubr.f32.gmra.mrb[0].mxu0 %v2447
      %v2585 = vpop.f32.mrb[0].mxu0
      %v2586 = vadd.f32 0.0, %v2585
      %v2587 = vpop.f32.mrb[0].mxu0
      %2588 = vmatprep.mubr.f32.mxu0 0.0
      %2589 = vmatmul.mubr.f32.gmra.mrb[0].mxu0 %v2450
      %v2590 = vpop.f32.mrb[0].mxu0
      %v2591 = vadd.f32 0.0, %v2590
      %v2592 = vpop.f32.mrb[0].mxu0
      %2593 = vmatprep.mubr.f32.mxu0 0.0
      %2594 = vmatmul.mubr.f32.gmra.mrb[0].mxu0 %v2453
      %v2595 = vpop.f32.mrb[0].mxu0
      %v2596 = vadd.f32 0.0, %v2595
      %v2597 = vpop.f32.mrb[0].mxu0
      %2598 = vmatprep.mubr.f32.mxu0 0.0
      %2599 = vmatmul.mubr.f32.gmra.mrb[0].mxu0 %v2456
      %v2600 = vpop.f32.mrb[0].mxu0
      %v2601 = vadd.f32 0.0, %v2600
      %v2602 = vpop.f32.mrb[0].mxu0
      %2603 = vmatprep.mubr.f32.mxu0 0.0
      %2604 = vmatmul.mubr.f32.gmra.mrb[0].mxu0 %v2459
      %v2605 = vpop.f32.mrb[0].mxu0
      %v2606 = vadd.f32 0.0, %v2605
      %v2607 = vpop.f32.mrb[0].mxu0
      %2608 = vdwg.mxu0
      %v2609 = vadd.f32 %v2379, %v2531
      %v2610 = vadd.f32 %v2380, %v2536
      %v2611 = vadd.f32 %v2381, %v2541
      %v2612 = vadd.f32 %v2382, %v2546
      %v2613 = vadd.f32 %v2383, %v2551
      %v2614 = vadd.f32 %v2384, %v2556
      %v2615 = vadd.f32 %v2385, %v2561
      %v2616 = vadd.f32 %v2386, %v2566
      %v2617 = vadd.f32 %v2387, %v2571
      %v2618 = vadd.f32 %v2388, %v2576
      %v2619 = vadd.f32 %v2389, %v2581
      %v2620 = vadd.f32 %v2390, %v2586
      %v2621 = vadd.f32 %v2391, %v2591
      %v2622 = vadd.f32 %v2392, %v2596
      %v2623 = vadd.f32 %v2393, %v2601
      %v2624 = vadd.f32 %v2394, %v2606
      %v2625 = vld [vmem:[%s3] sm:$0x1]
      %v2627 = vlaneseq
      %v2628 = vshrl.u32 %v2627, 7
      %v2629 = vsub.s32 0, %v2628
      %v2630 = vrot.slane %v2625, %v2629
      %v2632 = vadd.f32 %v2609, %v2630
      %v2633 = vadd.f32 %v2610, %v2630
      %v2634 = vadd.f32 %v2611, %v2630
      %v2635 = vadd.f32 %v2612, %v2630
      %v2636 = vadd.f32 %v2613, %v2630
      %v2637 = vadd.f32 %v2614, %v2630
      %v2638 = vadd.f32 %v2615, %v2630
      %v2639 = vadd.f32 %v2616, %v2630
      %v2640 = vadd.f32 %v2617, %v2630
      %v2641 = vadd.f32 %v2618, %v2630
      %v2642 = vadd.f32 %v2619, %v2630
      %v2643 = vadd.f32 %v2620, %v2630
      %v2644 = vadd.f32 %v2621, %v2630
      %v2645 = vadd.f32 %v2622, %v2630
      %v2646 = vadd.f32 %v2623, %v2630
      %v2647 = vadd.f32 %v2624, %v2630
      %v2648 = vmax.f32 %v2632, 0.0
      %v2649 = vmax.f32 %v2633, 0.0
      %v2650 = vmax.f32 %v2634, 0.0
      %v2651 = vmax.f32 %v2635, 0.0
      %v2652 = vmax.f32 %v2636, 0.0
      %v2653 = vmax.f32 %v2637, 0.0
      %v2654 = vmax.f32 %v2638, 0.0
      %v2655 = vmax.f32 %v2639, 0.0
      %v2656 = vmax.f32 %v2640, 0.0
      %v2657 = vmax.f32 %v2641, 0.0
      %v2658 = vmax.f32 %v2642, 0.0
      %v2659 = vmax.f32 %v2643, 0.0
      %v2660 = vmax.f32 %v2644, 0.0
      %v2661 = vmax.f32 %v2645, 0.0
      %v2662 = vmax.f32 %v2646, 0.0
      %v2663 = vmax.f32 %v2647, 0.0
      %v2664 = vld [vmem:[%s6] sm:$0x1]
      %v2666 = vlaneseq
      %v2667 = vshrl.u32 %v2666, 7
      %v2668 = vsub.s32 0, %v2667
      %v2669 = vrot.slane %v2664, %v2668
      %v2671 = vmul.f32 %v2648, %v2669
      %v2672 = vmul.f32 %v2649, %v2669
      %v2673 = vmul.f32 %v2650, %v2669
      %v2674 = vmul.f32 %v2651, %v2669
      %v2675 = vmul.f32 %v2652, %v2669
      %v2676 = vmul.f32 %v2653, %v2669
      %v2677 = vmul.f32 %v2654, %v2669
      %v2678 = vmul.f32 %v2655, %v2669
      %v2679 = vmul.f32 %v2656, %v2669
      %v2680 = vmul.f32 %v2657, %v2669
      %v2681 = vmul.f32 %v2658, %v2669
      %v2682 = vmul.f32 %v2659, %v2669
      %v2683 = vmul.f32 %v2660, %v2669
      %v2684 = vmul.f32 %v2661, %v2669
      %v2685 = vmul.f32 %v2662, %v2669
      %v2686 = vmul.f32 %v2663, %v2669
      %v2687 = vld [vmem:[%s7] sm:$0x1]
      %v2689 = vlaneseq
      %v2690 = vshrl.u32 %v2689, 7
      %v2691 = vsub.s32 0, %v2690
      %v2692 = vrot.slane %v2687, %v2691
      %v2694 = vadd.f32 %v2671, %v2692
      %v2695 = vadd.f32 %v2672, %v2692
      %v2696 = vadd.f32 %v2673, %v2692
      %v2697 = vadd.f32 %v2674, %v2692
      %v2698 = vadd.f32 %v2675, %v2692
      %v2699 = vadd.f32 %v2676, %v2692
      %v2700 = vadd.f32 %v2677, %v2692
      %v2701 = vadd.f32 %v2678, %v2692
      %v2702 = vadd.f32 %v2679, %v2692
      %v2703 = vadd.f32 %v2680, %v2692
      %v2704 = vadd.f32 %v2681, %v2692
      %v2705 = vadd.f32 %v2682, %v2692
      %v2706 = vadd.f32 %v2683, %v2692
      %v2707 = vadd.f32 %v2684, %v2692
      %v2708 = vadd.f32 %v2685, %v2692
      %v2709 = vadd.f32 %v2686, %v2692
      %v2710 = vld [vmem:[%s8] sm:$0xff]
      %v2711 = vld [vmem:[%s9] sm:$0x1]
      %v2713 = vlaneseq
      %v2714 = vshrl.u32 %v2713, 7
      %v2715 = vsub.s32 0, %v2714
      %v2716 = vrot.slane %v2711, %v2715
      %vm2718 = vcmask 64512
      %v2720 = vsel %vm2718, %v2694, 0
      %v2723 = vsel %vm2718, %v2695, 0
      %v2726 = vsel %vm2718, %v2696, 0
      %v2729 = vsel %vm2718, %v2697, 0
      %v2732 = vsel %vm2718, %v2698, 0
      %v2735 = vsel %vm2718, %v2699, 0
      %v2738 = vsel %vm2718, %v2700, 0
      %v2741 = vsel %vm2718, %v2701, 0
      %v2744 = vsel %vm2718, %v2702, 0
      %v2747 = vsel %vm2718, %v2703, 0
      %v2750 = vsel %vm2718, %v2704, 0
      %v2753 = vsel %vm2718, %v2705, 0
      %v2756 = vsel %vm2718, %v2706, 0
      %v2759 = vsel %vm2718, %v2707, 0
      %v2762 = vsel %vm2718, %v2708, 0
      %v2765 = vsel %vm2718, %v2709, 0
      %2767 = vmatprep.subr.mxu0 0.0
      %2768 = vmatpush1.msra.mxu0 %v2710
      %2769 = vmatprep.subr.mxu0 0.0
      %2770 = vmatpush1.msra.mxu0 0.0
      %2771 = vmatprep.subr.mxu0 0.0
      %2772 = vmatpush1.msra.mxu0 0.0
      %2773 = vmatprep.subr.mxu0 0.0
      %2774 = vmatpush1.msra.mxu0 0.0
      %2775 = vmatprep.subr.mxu0 0.0
      %2776 = vmatpush1.msra.mxu0 0.0
      %2777 = vmatprep.subr.mxu0 0.0
      %2778 = vmatpush1.msra.mxu0 0.0
      %2779 = vmatprep.subr.mxu0 0.0
      %2780 = vmatpush1.msra.mxu0 0.0
      %2781 = vmatprep.subr.mxu0 0.0
      %2782 = vmatpush1.msra.mxu0 0.0
      %2783 = vmatprep.subr.mxu0 0.0
      %2784 = vmatpush1.msra.mxu0 0.0
      %2785 = vmatprep.subr.mxu0 0.0
      %2786 = vmatpush1.msra.mxu0 0.0
      %2787 = vmatprep.subr.mxu0 0.0
      %2788 = vmatpush1.msra.mxu0 0.0
      %2789 = vmatprep.subr.mxu0 0.0
      %2790 = vmatpush1.msra.mxu0 0.0
      %2791 = vmatprep.subr.mxu0 0.0
      %2792 = vmatpush1.msra.mxu0 0.0
      %2793 = vmatprep.subr.mxu0 0.0
      %2794 = vmatpush1.msra.mxu0 0.0
      %2795 = vmatprep.subr.mxu0 0.0
      %2796 = vmatpush1.msra.mxu0 0.0
      %2797 = vmatprep.subr.mxu0 0.0
      %2798 = vmatpush1.msra.mxu0 0.0
      %2799 = vmatprep.subr.mxu0 0.0
      %2800 = vmatpush1.msra.mxu0 0.0
      %2801 = vmatprep.subr.mxu0 0.0
      %2802 = vmatpush1.msra.mxu0 0.0
      %2803 = vmatprep.subr.mxu0 0.0
      %2804 = vmatpush1.msra.mxu0 0.0
      %2805 = vmatprep.subr.mxu0 0.0
      %2806 = vmatpush1.msra.mxu0 0.0
      %2807 = vmatprep.subr.mxu0 0.0
      %2808 = vmatpush1.msra.mxu0 0.0
      %2809 = vmatprep.subr.mxu0 0.0
      %2810 = vmatpush1.msra.mxu0 0.0
      %2811 = vmatprep.subr.mxu0 0.0
      %2812 = vmatpush1.msra.mxu0 0.0
      %2813 = vmatprep.subr.mxu0 0.0
      %2814 = vmatpush1.msra.mxu0 0.0
      %2815 = vmatprep.subr.mxu0 0.0
      %2816 = vmatpush1.msra.mxu0 0.0
      %2817 = vmatprep.subr.mxu0 0.0
      %2818 = vmatpush1.msra.mxu0 0.0
      %2819 = vmatprep.subr.mxu0 0.0
      %2820 = vmatpush1.msra.mxu0 0.0
      %2821 = vmatprep.subr.mxu0 0.0
      %2822 = vmatpush1.msra.mxu0 0.0
      %2823 = vmatprep.subr.mxu0 0.0
      %2824 = vmatpush1.msra.mxu0 0.0
      %2825 = vmatprep.subr.mxu0 0.0
      %2826 = vmatpush1.msra.mxu0 0.0
      %2827 = vmatprep.subr.mxu0 0.0
      %2828 = vmatpush1.msra.mxu0 0.0
      %2829 = vmatprep.subr.mxu0 0.0
      %2830 = vmatpush1.msra.mxu0 0.0
      %2831 = vmatprep.mubr.f32.mxu0 0.0
      %2832 = vmatmul.mubr.f32.gmra.mrb[0].mxu0 %v2720
      %v2833 = vpop.f32.mrb[0].mxu0
      %v2834 = vadd.f32 %v2716, %v2833
      %v2835 = vpop.f32.mrb[0].mxu0
      %2836 = vmatprep.mubr.f32.mxu0 0.0
      %2837 = vmatmul.mubr.f32.gmra.mrb[0].mxu0 %v2723
      %v2838 = vpop.f32.mrb[0].mxu0
      %v2839 = vadd.f32 %v2716, %v2838
      %v2840 = vpop.f32.mrb[0].mxu0
      %2841 = vmatprep.mubr.f32.mxu0 0.0
      %2842 = vmatmul.mubr.f32.gmra.mrb[0].mxu0 %v2726
      %v2843 = vpop.f32.mrb[0].mxu0
      %v2844 = vadd.f32 %v2716, %v2843
      %v2845 = vpop.f32.mrb[0].mxu0
      %2846 = vmatprep.mubr.f32.mxu0 0.0
      %2847 = vmatmul.mubr.f32.gmra.mrb[0].mxu0 %v2729
      %v2848 = vpop.f32.mrb[0].mxu0
      %v2849 = vadd.f32 %v2716, %v2848
      %v2850 = vpop.f32.mrb[0].mxu0
      %2851 = vmatprep.mubr.f32.mxu0 0.0
      %2852 = vmatmul.mubr.f32.gmra.mrb[0].mxu0 %v2732
      %v2853 = vpop.f32.mrb[0].mxu0
      %v2854 = vadd.f32 %v2716, %v2853
      %v2855 = vpop.f32.mrb[0].mxu0
      %2856 = vmatprep.mubr.f32.mxu0 0.0
      %2857 = vmatmul.mubr.f32.gmra.mrb[0].mxu0 %v2735
      %v2858 = vpop.f32.mrb[0].mxu0
      %v2859 = vadd.f32 %v2716, %v2858
      %v2860 = vpop.f32.mrb[0].mxu0
      %2861 = vmatprep.mubr.f32.mxu0 0.0
      %2862 = vmatmul.mubr.f32.gmra.mrb[0].mxu0 %v2738
      %v2863 = vpop.f32.mrb[0].mxu0
      %v2864 = vadd.f32 %v2716, %v2863
      %v2865 = vpop.f32.mrb[0].mxu0
      %2866 = vmatprep.mubr.f32.mxu0 0.0
      %2867 = vmatmul.mubr.f32.gmra.mrb[0].mxu0 %v2741
      %v2868 = vpop.f32.mrb[0].mxu0
      %v2869 = vadd.f32 %v2716, %v2868
      %v2870 = vpop.f32.mrb[0].mxu0
      %2871 = vmatprep.mubr.f32.mxu0 0.0
      %2872 = vmatmul.mubr.f32.gmra.mrb[0].mxu0 %v2744
      %v2873 = vpop.f32.mrb[0].mxu0
      %v2874 = vadd.f32 %v2716, %v2873
      %v2875 = vpop.f32.mrb[0].mxu0
      %2876 = vmatprep.mubr.f32.mxu0 0.0
      %2877 = vmatmul.mubr.f32.gmra.mrb[0].mxu0 %v2747
      %v2878 = vpop.f32.mrb[0].mxu0
      %v2879 = vadd.f32 %v2716, %v2878
      %v2880 = vpop.f32.mrb[0].mxu0
      %2881 = vmatprep.mubr.f32.mxu0 0.0
      %2882 = vmatmul.mubr.f32.gmra.mrb[0].mxu0 %v2750
      %v2883 = vpop.f32.mrb[0].mxu0
      %v2884 = vadd.f32 %v2716, %v2883
      %v2885 = vpop.f32.mrb[0].mxu0
      %2886 = vmatprep.mubr.f32.mxu0 0.0
      %2887 = vmatmul.mubr.f32.gmra.mrb[0].mxu0 %v2753
      %v2888 = vpop.f32.mrb[0].mxu0
      %v2889 = vadd.f32 %v2716, %v2888
      %v2890 = vpop.f32.mrb[0].mxu0
      %2891 = vmatprep.mubr.f32.mxu0 0.0
      %2892 = vmatmul.mubr.f32.gmra.mrb[0].mxu0 %v2756
      %v2893 = vpop.f32.mrb[0].mxu0
      %v2894 = vadd.f32 %v2716, %v2893
      %v2895 = vpop.f32.mrb[0].mxu0
      %2896 = vmatprep.mubr.f32.mxu0 0.0
      %2897 = vmatmul.mubr.f32.gmra.mrb[0].mxu0 %v2759
      %v2898 = vpop.f32.mrb[0].mxu0
      %v2899 = vadd.f32 %v2716, %v2898
      %v2900 = vpop.f32.mrb[0].mxu0
      %2901 = vmatprep.mubr.f32.mxu0 0.0
      %2902 = vmatmul.mubr.f32.gmra.mrb[0].mxu0 %v2762
      %v2903 = vpop.f32.mrb[0].mxu0
      %v2904 = vadd.f32 %v2716, %v2903
      %v2905 = vpop.f32.mrb[0].mxu0
      %2906 = vmatprep.mubr.f32.mxu0 0.0
      %2907 = vmatmul.mubr.f32.gmra.mrb[0].mxu0 %v2765
      %v2908 = vpop.f32.mrb[0].mxu0
      %v2909 = vadd.f32 %v2716, %v2908
      %v2910 = vpop.f32.mrb[0].mxu0
      %2911 = vdwg.mxu0
      %v2912 = vadd.f32 %v2834, %v440
      %v2913 = vadd.f32 %v2839, %v441
      %v2914 = vadd.f32 %v2844, %v442
      %v2915 = vadd.f32 %v2849, %v443
      %v2916 = vadd.f32 %v2854, %v444
      %v2917 = vadd.f32 %v2859, %v445
      %v2918 = vadd.f32 %v2864, %v446
      %v2919 = vadd.f32 %v2869, %v447
      %v2920 = vadd.f32 %v2874, %v448
      %v2921 = vadd.f32 %v2879, %v449
      %v2922 = vadd.f32 %v2884, %v450
      %v2923 = vadd.f32 %v2889, %v451
      %v2924 = vadd.f32 %v2894, %v452
      %v2925 = vadd.f32 %v2899, %v453
      %v2926 = vadd.f32 %v2904, %v454
      %v2927 = vadd.f32 %v2909, %v455
      %2928 = vst.msk [vmem:[%s436] sm:$0xff] %vm537, %v2912
      %2929 = vst.msk [vmem:[%s436 + $0x8] sm:$0xff] %vm537, %v2913
      %2930 = vst.msk [vmem:[%s436 + $0x10] sm:$0xff] %vm537, %v2914
      %2931 = vst.msk [vmem:[%s436 + $0x18] sm:$0xff] %vm537, %v2915
      %2932 = vst.msk [vmem:[%s436 + $0x20] sm:$0xff] %vm537, %v2916
      %2933 = vst.msk [vmem:[%s436 + $0x28] sm:$0xff] %vm537, %v2917
      %2934 = vst.msk [vmem:[%s436 + $0x30] sm:$0xff] %vm537, %v2918
      %2935 = vst.msk [vmem:[%s436 + $0x38] sm:$0xff] %vm537, %v2919
      %2936 = vst.msk [vmem:[%s436 + $0x40] sm:$0xff] %vm537, %v2920
      %2937 = vst.msk [vmem:[%s436 + $0x48] sm:$0xff] %vm537, %v2921
      %2938 = vst.msk [vmem:[%s436 + $0x50] sm:$0xff] %vm537, %v2922
      %2939 = vst.msk [vmem:[%s436 + $0x58] sm:$0xff] %vm537, %v2923
      %2940 = vst.msk [vmem:[%s436 + $0x60] sm:$0xff] %vm537, %v2924
      %2941 = vst.msk [vmem:[%s436 + $0x68] sm:$0xff] %vm537, %v2925
      %2942 = vst.msk [vmem:[%s436 + $0x70] sm:$0xff] %vm537, %v2926
      %2943 = vst.msk [vmem:[%s436 + $0x78] sm:$0xff] %vm537, %v2927
      %s2944 = smul.u32 8, %s26
      %p2945 = scmp.lt.s32.totalorder %s25, 1
      %s2946 = scalar_select %p2945, %s25, 1
      %p2947 = scmp.lt.s32.totalorder %s2944, 15
      %s2948 = scalar_select %p2947, %s2944, 15
      %s2949 = smul.addr %s2948, 2
      %s2950 = smul.addr %s2946, 32
      %s2951 = sadd.s32 %s2949, %s2950
      %s2952 = smul.addr %s2951, 8
      %s2953 = scalar_lea.vmem %s10, %s2952
      // Predicated region
      $region61: #{resblock_forward.1} parent=59 // pred_check
        %p2954 = pneg %p279
      $region62: #{resblock_forward.1} parent=59 // pred_check_branch
        %2956 = sbr.rel (%p2954) target = $region64
      $region63: #{resblock_forward.1} parent=59 // pred_region
        %s2957 = smul.u32 8, %s26
      $region64: #{resblock_forward.1} parent=59 // pred_fallthru
        _
    $region60: #{resblock_forward.1} parent=5 // pred_fallthru
      _
    %p2958 = scmp.le.s32.totalorder 2, %s16
    // Predicated region
    $region65: #{resblock_forward.1} parent=5 // pred_check
      %p2959 = pneg %p2958
    $region66: #{resblock_forward.1} parent=5 // pred_check_branch
      %2961 = sbr.rel (%p2959) target = $region68
    $region67: #{resblock_forward.1} parent=5 // pred_region
      %s2962 = ssub.s32 %s16, 2
      // Predicated region
      $region69: #{resblock_forward.1} parent=67 // pred_check
        %p2963 = pneg %p285
      $region70: #{resblock_forward.1} parent=67 // pred_check_branch
        %2965 = sbr.rel (%p2963) target = $region72
      $region71: #{resblock_forward.1} parent=67 // pred_region
        %s2966 = smul.u32 8, %s28
        %p2967 = scmp.lt.s32.totalorder %s27, 1
        %s2968 = scalar_select %p2967, %s27, 1
        %p2969 = scmp.lt.s32.totalorder %s2966, 15
        %s2970 = scalar_select %p2969, %s2966, 15
        %s2971 = smul.addr %s2970, 2
        %s2972 = smul.addr %s2968, 32
        %s2973 = sadd.s32 %s2971, %s2972
        %s2974 = smul.addr %s2973, 8
        %s2975 = scalar_lea.vmem %s10, %s2974
      $region72: #{resblock_forward.1} parent=67 // pred_fallthru
        _
    $region68: #{resblock_forward.1} parent=5 // pred_fallthru
      _
  $region6: #{resblock_forward.1} parent=0 // loop_footer
    %s20 = sadd.s32 1, %s16
  $region7: #{resblock_forward.1} parent=0 // loop_footer_branch
    %15 = sbr.rel target = $region3
  $region8: #{resblock_forward.1} parent=0 // loop_exit
    _

</llo_original>
